<compile_context>
chip_gen: v5e
topology: v5e:2x2
jax: 0.10.0
libtpu: 0.0.40
codegen_flags: <defaults>
</compile_context>

<pallas_src>
import functools
import math

import jax
import jax.numpy as jnp
import numpy as np
from jax import lax
from jax.experimental import pallas as pl
from jax.experimental.pallas import tpu as pltpu

# ---------------- configuration (small synthetic sizes) ----------------
D_MODEL = 32
POINTNET_HIDDEN = 32
FUTURE_LEN = 4
NHEAD = 2
NUM_ATTN_LAYERS = 1
PRE_ENC_DIM = 8
BEV_FEAT_DIM = 16
BEV_H = BEV_W = 8
N_OBJ = 6
N_OBJ_PAD = 8                     # object slots padded to a sublane multiple
T_STEPS = 8
C_TRAJ = 16
BATCH = 2
GN_GROUPS = 8
PC_RANGE = (-32.0, -32.0, 32.0, 32.0)   # surrogate BDA reference-grid range (ego frame)
LN_EPS = 1e-5
GN_EPS = 1e-5

CIN_PAD = 16                      # pointnet in-channels (8 feat + 1 mask, zero-padded)
HW = BEV_H * BEV_W
NT_PAD = N_OBJ_PAD + HW           # 72 global tokens (multiple of 8)
F7 = FUTURE_LEN * 7
OUT_W = 2 * D_MODEL               # packed output: [feat(32) | dense traj (28, zero-padded to 32)]


# =====================================================================
# static packing layout (pure python, used by both init and the kernel)
# =====================================================================
def _weight_layout():
    entries = [
        ("pn_pre", CIN_PAD), ("pn_m1a", POINTNET_HIDDEN), ("pn_m1b", POINTNET_HIDDEN),
        ("pn_m2", POINTNET_HIDDEN), ("pn_o1", POINTNET_HIDDEN), ("pn_o2", POINTNET_HIDDEN),
        ("bev_conv", BEV_FEAT_DIM), ("gn_sel", D_MODEL), ("bda", D_MODEL),
    ]
    for l in range(NUM_ATTN_LAYERS):
        entries += [(f"wv_{l}", D_MODEL), (f"wo_{l}", D_MODEL), (f"w2_{l}", 4 * D_MODEL)]
    entries += [
        ("inp1", D_MODEL), ("inp2", D_MODEL),
        ("pos1", 2), ("pos2", D_MODEL), ("pos3", D_MODEL),
        ("dfh1a", D_MODEL), ("dfh1b", D_MODEL), ("dfh2", D_MODEL), ("dfh3", D_MODEL),
        ("fut1", D_MODEL), ("fut2", D_MODEL), ("fut3", D_MODEL),
        ("fus1a", D_MODEL), ("fus1b", D_MODEL), ("fus2", D_MODEL), ("fus3", D_MODEL),
    ]
    woff, row = {}, 0
    for name, n in entries:
        woff[name] = (row, n)
        row += n + ((-n) % 8)            # keep every block sublane-aligned
    return woff, row


def _bias_layout():
    names = ["pn_pre", "pn_m1", "pn_m2", "pn_o1", "pn_o2", "bev_conv",
             "gn_gamma", "gn_beta", "bda"]
    for l in range(NUM_ATTN_LAYERS):
        names += [f"bv_{l}", f"bo_{l}", f"ln1g_{l}", f"ln1b_{l}",
                  f"b2_{l}", f"ln2g_{l}", f"ln2b_{l}"]
    names += ["inp1", "inp2", "pos1", "pos2", "pos3",
              "dfh1", "dfh2", "dfh3", "mx", "my",
              "fut1", "fut2", "fut3", "fus1", "fus2", "fus3"]
    return {n: i for i, n in enumerate(names)}, len(names)


# =====================================================================
# the single fused kernel (one grid step == one batch element)
# =====================================================================
def _fused_scene_kernel(x_ref, m_ref, valid_ref, bev_ref, pos_ref, bias_ref, objpos_ref,
                        w32_ref, b32_ref, wqk_ref, w1_ref,
                        out_ref, *, woff, boff, nlayers):
    f32 = jnp.float32
    D = D_MODEL
    h = POINTNET_HIDDEN
    hd = D // NHEAD
    scale = 1.0 / math.sqrt(hd)

    def W(name):                                   # static, sublane-aligned weight slice
        off, n = woff[name]
        return w32_ref[pl.ds(off, n), :]

    def Bv(name):                                  # (1, 32) bias / scale row
        return b32_ref[pl.ds(boff[name], 1), :]

    def mm(x, w, b=None, relu=False):
        y = jnp.dot(x, w, preferred_element_type=f32)
        if b is not None:
            y = y + b
        return jnp.maximum(y, 0.0) if relu else y

    # ---------------- PointNet polyline encoder ----------------
    x = x_ref[0]                                   # (N_pad*T, CIN_PAD)
    m = m_ref[0]                                   # (N_pad*T, 1)
    feat = mm(x, W("pn_pre"), Bv("pn_pre"), relu=True) * m           # (N_pad*T, h)
    pooled = jnp.max(feat.reshape(N_OBJ_PAD, T_STEPS, h), axis=1)    # (N_pad, h)
    pb = mm(pooled, W("pn_m1b"), Bv("pn_m1"))                        # (N_pad, h)
    pb_full = jnp.broadcast_to(pb[:, None, :],
                               (N_OBJ_PAD, T_STEPS, h)).reshape(N_OBJ_PAD * T_STEPS, h)
    y = jnp.maximum(mm(feat, W("pn_m1a")) + pb_full, 0.0)            # split weight, no concat
    y = mm(y, W("pn_m2"), Bv("pn_m2"), relu=True) * m
    pooled2 = jnp.max(y.reshape(N_OBJ_PAD, T_STEPS, h), axis=1)
    o = mm(pooled2, W("pn_o1"), Bv("pn_o1"), relu=True)
    obj_feat = mm(o, W("pn_o2"), Bv("pn_o2"))                        # (N_pad, D)
    valid = valid_ref[0] > 0.0                                       # (N_pad, 1)
    obj_feat = jnp.where(valid, obj_feat, 0.0)

    # ---------------- 1x1 conv + GroupNorm(8) + ReLU + BDA projection ----------------
    bev = bev_ref[0]                                                 # (HW, Cb)
    yb = mm(bev, W("bev_conv"), Bv("bev_conv"))                      # (HW, D)
    ones_hw = jnp.ones((1, HW), f32)
    inv_count = 1.0 / float(HW * (D // GN_GROUPS))
    gsel = W("gn_sel")
    mean_c = jnp.dot(jnp.dot(ones_hw, yb, preferred_element_type=f32), gsel,
                     preferred_element_type=f32) * inv_count         # MXU row-sum + group sum
    d = yb - mean_c
    var_c = jnp.dot(jnp.dot(ones_hw, d * d, preferred_element_type=f32), gsel,
                    preferred_element_type=f32) * inv_count
    yn = jnp.maximum(d * lax.rsqrt(var_c + GN_EPS) * Bv("gn_gamma") + Bv("gn_beta"), 0.0)
    ba_feat = mm(yn, W("bda"), Bv("bda"))                            # (HW, D)

    # ---------------- global self-attention (post-norm encoder layers) ----------------
    src = jnp.concatenate([obj_feat, ba_feat], axis=0)               # (NT_PAD, D)
    pos = pos_ref[0]                                                 # (NT_PAD, D)
    bias = bias_ref[0]                                               # (1, NT_PAD) key-pad bias
    ones_keys = jnp.ones((NT_PAD, 1), f32)
    ones_d = jnp.ones((D, 1), f32)

    def layernorm(xv, g, b):
        mu = jnp.dot(xv, ones_d, preferred_element_type=f32) * (1.0 / D)    # MXU sum
        xc = xv - mu
        var = jnp.dot(xc * xc, ones_d, preferred_element_type=f32) * (1.0 / D)
        return xc * lax.rsqrt(var + LN_EPS) * g + b

    for l in range(nlayers):
        wqk = wqk_ref[l, pl.ds(0, D), :]                             # (D, 2D)
        bqk = wqk_ref[l, pl.ds(D, 1), :]                             # (1, 2D)
        w1 = w1_ref[l, pl.ds(0, D), :]                               # (D, 4D)
        b1 = w1_ref[l, pl.ds(D, 1), :]                               # (1, 4D)
        wo_off = woff[f"wo_{l}"][0]

        qk = mm(src + pos, wqk, bqk)                                 # (NT_PAD, 2D)
        v = mm(src, W(f"wv_{l}"), Bv(f"bv_{l}"))                     # (NT_PAD, D)

        att = None
        for hh in range(NHEAD):                                      # static, NHEAD=2
            qh = qk[:, hh * hd:(hh + 1) * hd]
            kh = qk[:, D + hh * hd:D + (hh + 1) * hd]
            vh = v[:, hh * hd:(hh + 1) * hd]
            logits = lax.dot_general(qh, kh, (((1,), (1,)), ((), ())),
                                     preferred_element_type=f32) * scale + bias
            mmax = jnp.max(logits, axis=-1, keepdims=True)           # XLU max
            e = jnp.exp(logits - mmax)
            denom = jnp.dot(e, ones_keys, preferred_element_type=f32)   # MXU row-sum
            prob = e * pl.reciprocal(denom, approx=True)             # EUP reciprocal
            head = jnp.dot(prob, vh, preferred_element_type=f32)     # (NT_PAD, hd)
            wo_h = w32_ref[pl.ds(wo_off + hh * hd, hd), :]           # (hd, D)
            contrib = jnp.dot(head, wo_h, preferred_element_type=f32)
            att = contrib if att is None else att + contrib          # no head concat
        att = att + Bv(f"bo_{l}")

        x1 = layernorm(src + att, Bv(f"ln1g_{l}"), Bv(f"ln1b_{l}"))
        ff = mm(x1, w1, b1, relu=True)
        ff = mm(ff, W(f"w2_{l}"), Bv(f"b2_{l}"))
        src = layernorm(x1 + ff, Bv(f"ln2g_{l}"), Bv(f"ln2b_{l}"))

    # ---------------- in_proj_obj + dense future prediction ----------------
    obj_tok = src[:N_OBJ_PAD]                                        # (N_pad, D)
    f = mm(obj_tok, W("inp1"), Bv("inp1"), relu=True)
    f = mm(f, W("inp2"), Bv("inp2"))
    obj_f = jnp.where(valid, f, 0.0)

    pxy = objpos_ref[0]                                              # (N_pad, 2)
    px = pxy[:, 0:1]
    py = pxy[:, 1:2]
    wp1 = w32_ref[pl.ds(woff["pos1"][0], 2), :]                      # K=2 layer on the VPU
    pf = jnp.maximum(px * wp1[0:1, :] + py * wp1[1:2, :] + Bv("pos1"), 0.0)
    pf = mm(pf, W("pos2"), Bv("pos2"), relu=True)
    pf = mm(pf, W("pos3"), Bv("pos3"))

    # dense_future_head (BN folded into weights, concat replaced by split weights)
    dh = jnp.maximum(mm(pf, W("dfh1a")) + mm(obj_f, W("dfh1b")) + Bv("dfh1"), 0.0)
    dh = mm(dh, W("dfh2"), Bv("dfh2"), relu=True)
    # (N_pad, 32): cols 0..27 are the F*7 trajectory, cols 28..31 are structurally zero
    traj = mm(dh, W("dfh3")) + Bv("dfh3") + px * Bv("mx") + py * Bv("my")

    # future_traj_mlps (constant channel selection folded into fut1 at init)
    ff2 = mm(traj, W("fut1"), Bv("fut1"), relu=True)
    ff2 = mm(ff2, W("fut2"), Bv("fut2"), relu=True)
    ff2 = mm(ff2, W("fut3"), Bv("fut3"))

    # traj_fusion_mlps (concat replaced by split weights)
    tf = jnp.maximum(mm(obj_f, W("fus1a")) + mm(ff2, W("fus1b")) + Bv("fus1"), 0.0)
    tf = mm(tf, W("fus2"), Bv("fus2"), relu=True)
    tf = mm(tf, W("fus3"), Bv("fus3"))

    feat_out = jnp.where(valid, tf, 0.0)
    traj_out = jnp.where(valid, traj, 0.0)
    out_ref[0] = jnp.concatenate([feat_out, traj_out], axis=-1)      # packed (N_pad, 64) slab


# =====================================================================
# pallas_call wrapper (single launch, grid=(B,) parallel)
# =====================================================================
def pallas_scene_encoder(x_in, m2d, valid, bev_tokens, pos_emb, bias, objpos, params):
    B = x_in.shape[0]
    NTt = N_OBJ_PAD * T_STEPS
    Cb = bev_tokens.shape[-1]
    woff, _ = _weight_layout()
    boff, _ = _bias_layout()

    kernel = functools.partial(_fused_scene_kernel, woff=woff, boff=boff,
                               nlayers=NUM_ATTN_LAYERS)
    return pl.pallas_call(
        kernel,
        out_shape=jax.ShapeDtypeStruct((B, N_OBJ_PAD, OUT_W), jnp.float32),
        grid=(B,),
        in_specs=[
            pl.BlockSpec((1, NTt, CIN_PAD), lambda b: (b, 0, 0)),
            pl.BlockSpec((1, NTt, 1), lambda b: (b, 0, 0)),
            pl.BlockSpec((1, N_OBJ_PAD, 1), lambda b: (b, 0, 0)),
            pl.BlockSpec((1, HW, Cb), lambda b: (b, 0, 0)),
            pl.BlockSpec((1, NT_PAD, D_MODEL), lambda b: (b, 0, 0)),
            pl.BlockSpec((1, 1, NT_PAD), lambda b: (b, 0, 0)),
            pl.BlockSpec((1, N_OBJ_PAD, 2), lambda b: (b, 0, 0)),
            pl.BlockSpec(params["w32"].shape, lambda b: (0, 0)),
            pl.BlockSpec(params["b32"].shape, lambda b: (0, 0)),
            pl.BlockSpec(params["wqk"].shape, lambda b: (0, 0, 0)),
            pl.BlockSpec(params["w1"].shape, lambda b: (0, 0, 0)),
        ],
        out_specs=pl.BlockSpec((1, N_OBJ_PAD, OUT_W), lambda b: (b, 0, 0)),
        compiler_params=pltpu.CompilerParams(dimension_semantics=("parallel",)),
    )(x_in, m2d, valid, bev_tokens, pos_emb, bias, objpos,
      params["w32"], params["b32"], params["wqk"], params["w1"])


# =====================================================================
# JAX glue (positional embedding, rigid transform)
# =====================================================================
def gen_sineembed_for_position(pos, hidden_dim):
    """MTR-style x/y sine embedding; pos:(B,N,2) -> (B,N,hidden_dim)."""
    half = hidden_dim // 2
    scale = 2.0 * math.pi
    dim_t = jnp.arange(half, dtype=jnp.float32)
    dim_t = 10000.0 ** (2.0 * jnp.floor(dim_t / 2.0) / half)
    pos_x = (pos[..., 0] * scale)[..., None] / dim_t
    pos_y = (pos[..., 1] * scale)[..., None] / dim_t

    def interleave(p):
        s = jnp.sin(p[..., 0::2])
        c = jnp.cos(p[..., 1::2])
        return jnp.stack([s, c], axis=-1).reshape(*p.shape[:-1], half)

    return jnp.concatenate([interleave(pos_y), interleave(pos_x)], axis=-1)


def ego_to_target(center_pos, t_x, t_y, r_s, r_c):
    """center_pos:(B,n,2); t_x,t_y,r_s,r_c:(B,1). rows [c,s],[-s,c] as in the reference."""
    trans = jnp.concatenate([t_x, t_y], axis=-1)[:, None, :]
    pnt = center_pos - trans
    rot = jnp.stack([jnp.concatenate([r_c, r_s], axis=-1),
                     jnp.concatenate([-r_s, r_c], axis=-1)], axis=-2)     # (B,2,2)
    return jnp.einsum("bnc,bcd->bnd", pnt, rot)


# =====================================================================
# Full forward pass
# =====================================================================
def scene_context_encoder_forward(params, traj_data, pre_encoder_emb, bev_feature):
    obj_trajs = traj_data["obj_trajs"].astype(jnp.float32)
    obj_mask = traj_data["obj_trajs_mask"]
    obj_last_pos = traj_data["obj_trajs_last_pos"].astype(jnp.float32)
    ego_idx = traj_data["ego_index"]
    B, N, T, _ = pre_encoder_emb.shape
    D = D_MODEL
    pad_n = N_OBJ_PAD - N

    # ---------- pad object slots to a sublane multiple (padded slots are invalid) ----------
    mask_f = obj_mask.astype(jnp.float32)
    pre_p = jnp.pad(pre_encoder_emb.astype(jnp.float32), ((0, 0), (0, pad_n), (0, 0), (0, 0)))
    mask_p = jnp.pad(mask_f, ((0, 0), (0, pad_n), (0, 0)))
    last_pos_p = jnp.pad(obj_last_pos, ((0, 0), (0, pad_n), (0, 0)))
    valid_p = mask_p.sum(-1) > 0                                            # (B, N_pad)
    valid_f = valid_p.astype(jnp.float32)[..., None]

    x_in = jnp.concatenate([pre_p, mask_p[..., None]], axis=-1)             # (B,N_pad,T,9)
    x_in = jnp.pad(x_in, ((0, 0), (0, 0), (0, 0), (0, CIN_PAD - x_in.shape[-1])))
    x_in = x_in.reshape(B, N_OBJ_PAD * T, CIN_PAD)
    m2d = mask_p.reshape(B, N_OBJ_PAD * T, 1)

    # ---------- BEV NCHW -> token layout ----------
    Cb = bev_feature.shape[1]
    bev_tokens = bev_feature.reshape(B, Cb, HW).transpose(0, 2, 1)

    # ---------- BDA reference positions + ego -> target-agent frame ----------
    # TODO(synk): BEVDeformableAggregation definition is not provided; approximated by a fixed
    # ego-frame reference grid plus a linear projection of the downsampled BEV tokens (fused above).
    xmin, ymin, xmax, ymax = PC_RANGE
    xs = (jnp.arange(BEV_W, dtype=jnp.float32) + 0.5) / BEV_W * (xmax - xmin) + xmin
    ys = (jnp.arange(BEV_H, dtype=jnp.float32) + 0.5) / BEV_H * (ymax - ymin) + ymin
    gy, gx = jnp.meshgrid(ys, xs, indexing="ij")
    ref_pos_ego = jnp.broadcast_to(
        jnp.stack([gx.reshape(-1), gy.reshape(-1)], axis=-1)[None], (B, HW, 2))
    ego_last = obj_trajs[jnp.arange(B), ego_idx, -1, :]                      # (B, C_traj)
    t_x, t_y = ego_last[:, 0:1], ego_last[:, 1:2]
    r_s, r_c = ego_last[:, -6:-5], ego_last[:, -5:-4]
    ref_pos_target = ego_to_target(ref_pos_ego, t_x, t_y, r_s, r_c)
    ref_pos_target = jnp.concatenate(
        [ref_pos_target, jnp.zeros((B, HW, 1), jnp.float32)], axis=-1)

    # ---------- global token pos / mask ----------
    g_pos = jnp.concatenate([last_pos_p, ref_pos_target], axis=1)            # (B, NT_PAD, 3)
    pos_emb = gen_sineembed_for_position(g_pos[..., :2], D)                  # (B, NT_PAD, D)
    g_mask = jnp.concatenate([valid_p, jnp.ones((B, HW), dtype=bool)], axis=1)
    bias = jnp.where(g_mask, 0.0, -1e9).astype(jnp.float32)[:, None, :]      # (B, 1, NT_PAD)

    # ---------- single fused Pallas call ----------
    out = pallas_scene_encoder(x_in, m2d, valid_f, bev_tokens, pos_emb, bias,
                               last_pos_p[..., :2], params)                  # (B, N_pad, 64)

    obj_feat_out = out[:, :N, :D]
    dense_pred = out[:, :N, D:D + F7].reshape(B, N, FUTURE_LEN, 7)
    return obj_feat_out, dense_pred


# =====================================================================
# deterministic parameter init (kernel-ready packed shapes)
# =====================================================================
def init_params(seed=42):
    rng = np.random.RandomState(seed)
    D, h = D_MODEL, POINTNET_HIDDEN

    def rand(cin, cout):
        return (rng.randn(cin, cout) / math.sqrt(cin)).astype(np.float32)

    def randb(cout):
        return (rng.randn(1, cout) * 0.02).astype(np.float32)

    woff, r32 = _weight_layout()
    boff, rb = _bias_layout()
    w32 = np.zeros((r32, D), np.float32)
    b32 = np.zeros((rb, D), np.float32)

    def put_w(name, mat):
        off, n = woff[name]
        assert mat.shape == (n, D), (name, mat.shape)
        w32[off:off + n] = mat

    def put_b(name, vec):
        b32[boff[name]] = np.asarray(vec, np.float32).reshape(D)

    # ---- PointNet polyline encoder ----
    wpre = np.zeros((CIN_PAD, h), np.float32)
    wpre[:PRE_ENC_DIM + 1] = rand(PRE_ENC_DIM + 1, h)
    put_w("pn_pre", wpre); put_b("pn_pre", randb(h))
    wm1 = rand(2 * h, h)
    put_w("pn_m1a", wm1[:h]); put_w("pn_m1b", wm1[h:]); put_b("pn_m1", randb(h))
    put_w("pn_m2", rand(h, h)); put_b("pn_m2", randb(h))
    put_w("pn_o1", rand(h, h)); put_b("pn_o1", randb(h))
    put_w("pn_o2", rand(h, D)); put_b("pn_o2", randb(D))

    # ---- BEV 1x1 conv + GroupNorm + BDA projection ----
    put_w("bev_conv", rand(BEV_FEAT_DIM, D)); put_b("bev_conv", randb(D))
    gid = np.arange(D) // (D // GN_GROUPS)
    put_w("gn_sel", (gid[:, None] == gid[None, :]).astype(np.float32))
    put_b("gn_gamma", np.ones((1, D), np.float32))
    put_b("gn_beta", np.zeros((1, D), np.float32))
    put_w("bda", rand(D, D)); put_b("bda", randb(D))

    # ---- transformer encoder layers ----
    wqk_all = np.zeros((NUM_ATTN_LAYERS, D + 1, 2 * D), np.float32)
    w1_all = np.zeros((NUM_ATTN_LAYERS, D + 1, 4 * D), np.float32)
    for l in range(NUM_ATTN_LAYERS):
        wqk_all[l, :D] = np.concatenate([rand(D, D), rand(D, D)], axis=1)   # Wq|Wk pre-concat
        wqk_all[l, D:] = (rng.randn(1, 2 * D) * 0.02).astype(np.float32)
        put_w(f"wv_{l}", rand(D, D)); put_b(f"bv_{l}", randb(D))
        put_w(f"wo_{l}", rand(D, D)); put_b(f"bo_{l}", randb(D))
        put_b(f"ln1g_{l}", np.ones((1, D), np.float32))
        put_b(f"ln1b_{l}", np.zeros((1, D), np.float32))
        w1_all[l, :D] = rand(D, 4 * D)
        w1_all[l, D:] = (rng.randn(1, 4 * D) * 0.02).astype(np.float32)
        put_w(f"w2_{l}", rand(4 * D, D)); put_b(f"b2_{l}", randb(D))
        put_b(f"ln2g_{l}", np.ones((1, D), np.float32))
        put_b(f"ln2b_{l}", np.zeros((1, D), np.float32))

    # ---- in_proj_obj + dense-future prediction ----
    # TODO(synk): build_mlp / build_mlps definitions not provided; assumed Linear->ReLU->Linear
    # (dropout=0), with eval-mode BatchNorm1d folded into the dense_future_head weights.
    put_w("inp1", rand(D, D)); put_b("inp1", randb(D))
    put_w("inp2", rand(D, D)); put_b("inp2", randb(D))
    put_w("pos1", rand(2, D)); put_b("pos1", randb(D))
    put_w("pos2", rand(D, D)); put_b("pos2", randb(D))
    put_w("pos3", rand(D, D)); put_b("pos3", randb(D))

    bn_scale = 1.0 / math.sqrt(1.0 + 1e-5)          # eval-mode BN fold (gamma=1, beta=0, rm=0, rv=1)
    wd1 = rand(2 * D, D) * bn_scale
    put_w("dfh1a", wd1[:D]); put_w("dfh1b", wd1[D:]); put_b("dfh1", np.zeros((1, D)))
    put_w("dfh2", rand(D, D) * bn_scale); put_b("dfh2", np.zeros((1, D)))
    wd3 = np.zeros((D, D), np.float32)
    wd3[:, :F7] = rand(D, F7)                       # final head, zero-padded 28 -> 32 columns
    put_w("dfh3", wd3)
    bd3 = np.zeros((1, D), np.float32)
    bd3[0, :F7] = rng.randn(F7) * 0.02
    put_b("dfh3", bd3)
    mx = np.zeros((1, D), np.float32)
    my = np.zeros((1, D), np.float32)
    for f in range(FUTURE_LEN):                     # center-shift masks (x / y columns)
        mx[0, f * 7 + 0] = 1.0
        my[0, f * 7 + 1] = 1.0
    put_b("mx", mx); put_b("my", my)

    # constant channel selection [0,1,-2,-1] folded into the first future-traj MLP weight
    sel = np.zeros((F7, 4 * FUTURE_LEN), np.float32)
    for f in range(FUTURE_LEN):
        for j, c in enumerate((0, 1, 5, 6)):
            sel[f * 7 + c, f * 4 + j] = 1.0
    wf1 = rand(4 * FUTURE_LEN, D)
    fut1 = np.zeros((D, D), np.float32)
    fut1[:F7] = sel @ wf1
    put_w("fut1", fut1); put_b("fut1", randb(D))
    put_w("fut2", rand(D, D)); put_b("fut2", randb(D))
    put_w("fut3", rand(D, D)); put_b("fut3", randb(D))

    wg1 = rand(2 * D, D)
    put_w("fus1a", wg1[:D]); put_w("fus1b", wg1[D:]); put_b("fus1", randb(D))
    put_w("fus2", rand(D, D)); put_b("fus2", randb(D))
    put_w("fus3", rand(D, D)); put_b("fus3", randb(D))

    return {
        "w32": jnp.asarray(w32), "b32": jnp.asarray(b32),
        "wqk": jnp.asarray(wqk_all), "w1": jnp.asarray(w1_all),
    }


# =====================================================================
# main
# =====================================================================
if __name__ == "__main__":
    params = init_params(42)

    key = jax.random.PRNGKey(0)
    ks = jax.random.split(key, 6)
    pre_encoder_emb = jax.random.normal(ks[0], (BATCH, N_OBJ, T_STEPS, PRE_ENC_DIM), jnp.float32)
    obj_trajs = jax.random.normal(ks[1], (BATCH, N_OBJ, T_STEPS, C_TRAJ), jnp.float32)
    heading = jax.random.uniform(ks[2], (BATCH, N_OBJ, T_STEPS), jnp.float32) * 2.0 * math.pi
    obj_trajs = obj_trajs.at[..., C_TRAJ - 6].set(jnp.sin(heading))
    obj_trajs = obj_trajs.at[..., C_TRAJ - 5].set(jnp.cos(heading))
    obj_trajs_mask = jax.random.uniform(ks[3], (BATCH, N_OBJ, T_STEPS)) > 0.3
    obj_trajs_mask = obj_trajs_mask.at[:, :, -1].set(True)   # every object has >=1 valid step
    obj_trajs_last_pos = jax.random.normal(ks[4], (BATCH, N_OBJ, 3), jnp.float32) * 5.0
    ego_index = jnp.zeros((BATCH,), jnp.int32)
    bev_feature = jax.random.normal(ks[5], (BATCH, BEV_FEAT_DIM, BEV_H, BEV_W), jnp.float32)

    traj_data = {
        "obj_trajs": obj_trajs,
        "obj_trajs_mask": obj_trajs_mask,
        "obj_trajs_last_pos": obj_trajs_last_pos,
        "ego_index": ego_index,
    }

    fwd = jax.jit(scene_context_encoder_forward)
    obj_feat_out, dense_future_pred = fwd(params, traj_data, pre_encoder_emb, bev_feature)
    jax.block_until_ready((obj_feat_out, dense_future_pred))

    assert obj_feat_out.shape == (BATCH, N_OBJ, D_MODEL)
    assert dense_future_pred.shape == (BATCH, N_OBJ, FUTURE_LEN, 7)
    assert bool(jnp.all(jnp.isfinite(obj_feat_out))) and bool(jnp.all(jnp.isfinite(dense_future_pred)))
    print("KERNEL_OK")
</pallas_src>

<mosaic_0001>
module attributes {stable_mosaic.version = 11 : i64} {
  func.func @_fused_scene_kernel(%arg0: i32, %arg1: memref<1x64x16xf32, #tpu.memory_space<vmem>>, %arg2: memref<1x64x1xf32, #tpu.memory_space<vmem>>, %arg3: memref<1x8x1xf32, #tpu.memory_space<vmem>>, %arg4: memref<1x64x16xf32, #tpu.memory_space<vmem>>, %arg5: memref<1x72x32xf32, #tpu.memory_space<vmem>>, %arg6: memref<1x1x72xf32, #tpu.memory_space<vmem>>, %arg7: memref<1x8x2xf32, #tpu.memory_space<vmem>>, %arg8: memref<936x32xf32, #tpu.memory_space<vmem>>, %arg9: memref<32x32xf32, #tpu.memory_space<vmem>>, %arg10: memref<1x33x64xf32, #tpu.memory_space<vmem>>, %arg11: memref<1x33x128xf32, #tpu.memory_space<vmem>>, %arg12: memref<1x8x64xf32, #tpu.memory_space<vmem>>) attributes {dimension_semantics = [#tpu.dimension_semantics<parallel>], iteration_bounds = array<i64: 2>, scalar_prefetch = 0 : i64, scratch_operands = 0 : i64, tpu.core_type = #tpu.core_type<tc>, window_params = [{transform_indices = @transform_0, window_bounds = array<i64: 1, 64, 16>}, {transform_indices = @transform_1, window_bounds = array<i64: 1, 64, 1>}, {transform_indices = @transform_2, window_bounds = array<i64: 1, 8, 1>}, {transform_indices = @transform_3, window_bounds = array<i64: 1, 64, 16>}, {transform_indices = @transform_4, window_bounds = array<i64: 1, 72, 32>}, {transform_indices = @transform_5, window_bounds = array<i64: 1, 1, 72>}, {transform_indices = @transform_6, window_bounds = array<i64: 1, 8, 2>}, {pipeline_mode = #tpu.pipeline_mode<synchronous>, transform_indices = @transform_7, window_bounds = array<i64: 936, 32>}, {pipeline_mode = #tpu.pipeline_mode<synchronous>, transform_indices = @transform_8, window_bounds = array<i64: 32, 32>}, {pipeline_mode = #tpu.pipeline_mode<synchronous>, transform_indices = @transform_9, window_bounds = array<i64: 1, 33, 64>}, {pipeline_mode = #tpu.pipeline_mode<synchronous>, transform_indices = @transform_10, window_bounds = array<i64: 1, 33, 128>}, {transform_indices = @transform_11, window_bounds = array<i64: 1, 8, 64>}]} {
    %c0 = arith.constant 0 : index
    %c0_0 = arith.constant 0 : index
    %c0_1 = arith.constant 0 : index
    %0 = vector.load %arg1[%c0, %c0_0, %c0_1] : memref<1x64x16xf32, #tpu.memory_space<vmem>>, vector<1x64x16xf32>
    %1 = vector.shape_cast %0 : vector<1x64x16xf32> to vector<64x16xf32>
    %c0_2 = arith.constant 0 : index
    %c0_3 = arith.constant 0 : index
    %c0_4 = arith.constant 0 : index
    %2 = vector.load %arg2[%c0_2, %c0_3, %c0_4] : memref<1x64x1xf32, #tpu.memory_space<vmem>>, vector<1x64x1xf32>
    %3 = vector.shape_cast %2 : vector<1x64x1xf32> to vector<64x1xf32>
    %c0_5 = arith.constant 0 : index
    %c0_6 = arith.constant 0 : index
    %4 = vector.load %arg8[%c0_5, %c0_6] : memref<936x32xf32, #tpu.memory_space<vmem>>, vector<16x32xf32>
    %c0_7 = arith.constant 0 : index
    %c0_8 = arith.constant 0 : index
    %5 = vector.load %arg9[%c0_7, %c0_8] : memref<32x32xf32, #tpu.memory_space<vmem>>, vector<1x32xf32>
    %cst = arith.constant dense<0.000000e+00> : vector<64x32xf32>
    %6 = tpu.matmul %1, %4, %cst {dimension_numbers = #tpu.dot_dimension_numbers<[1], [0], [0], [1], [0, 0, 1, 1], [], []>} : vector<64x16xf32>, vector<16x32xf32>, vector<64x32xf32> -> vector<64x32xf32>
    %7 = vector.broadcast %5 : vector<1x32xf32> to vector<64x32xf32>
    %8 = arith.addf %6, %7 : vector<64x32xf32>
    %cst_9 = arith.constant 0.000000e+00 : f32
    %9 = vector.broadcast %cst_9 : f32 to vector<64x32xf32>
    %10 = arith.maximumf %8, %9 : vector<64x32xf32>
    %11 = vector.broadcast %3 : vector<64x1xf32> to vector<64x32xf32>
    %12 = arith.mulf %10, %11 : vector<64x32xf32>
    %13 = vector.shape_cast %12 : vector<64x32xf32> to vector<8x8x32xf32>
    %cst_10 = arith.constant dense<0xFF800000> : vector<8x32xf32>
    %14 = vector.multi_reduction <maximumf>, %13, %cst_10 [1] : vector<8x8x32xf32> to vector<8x32xf32>
    %c48 = arith.constant 48 : index
    %c0_11 = arith.constant 0 : index
    %15 = vector.load %arg8[%c48, %c0_11] : memref<936x32xf32, #tpu.memory_space<vmem>>, vector<32x32xf32>
    %c1 = arith.constant 1 : index
    %c0_12 = arith.constant 0 : index
    %16 = vector.load %arg9[%c1, %c0_12] : memref<32x32xf32, #tpu.memory_space<vmem>>, vector<1x32xf32>
    %cst_13 = arith.constant dense<0.000000e+00> : vector<8x32xf32>
    %17 = tpu.matmul %14, %15, %cst_13 {dimension_numbers = #tpu.dot_dimension_numbers<[1], [0], [0], [1], [0, 0, 1, 1], [], []>} : vector<8x32xf32>, vector<32x32xf32>, vector<8x32xf32> -> vector<8x32xf32>
    %18 = vector.broadcast %16 : vector<1x32xf32> to vector<8x32xf32>
    %19 = arith.addf %17, %18 : vector<8x32xf32>
    %20 = vector.shape_cast %19 : vector<8x32xf32> to vector<8x1x32xf32>
    %21 = vector.shape_cast %20 : vector<8x1x32xf32> to vector<8x1x32xf32>
    %22 = vector.broadcast %21 : vector<8x1x32xf32> to vector<8x8x32xf32>
    %23 = vector.shape_cast %22 : vector<8x8x32xf32> to vector<64x32xf32>
    %c16 = arith.constant 16 : index
    %c0_14 = arith.constant 0 : index
    %24 = vector.load %arg8[%c16, %c0_14] : memref<936x32xf32, #tpu.memory_space<vmem>>, vector<32x32xf32>
    %cst_15 = arith.constant dense<0.000000e+00> : vector<64x32xf32>
    %25 = tpu.matmul %12, %24, %cst_15 {dimension_numbers = #tpu.dot_dimension_numbers<[1], [0], [0], [1], [0, 0, 1, 1], [], []>} : vector<64x32xf32>, vector<32x32xf32>, vector<64x32xf32> -> vector<64x32xf32>
    %26 = arith.addf %25, %23 : vector<64x32xf32>
    %cst_16 = arith.constant 0.000000e+00 : f32
    %27 = vector.broadcast %cst_16 : f32 to vector<64x32xf32>
    %28 = arith.maximumf %26, %27 : vector<64x32xf32>
    %c80 = arith.constant 80 : index
    %c0_17 = arith.constant 0 : index
    %29 = vector.load %arg8[%c80, %c0_17] : memref<936x32xf32, #tpu.memory_space<vmem>>, vector<32x32xf32>
    %c2 = arith.constant 2 : index
    %c0_18 = arith.constant 0 : index
    %30 = vector.load %arg9[%c2, %c0_18] : memref<32x32xf32, #tpu.memory_space<vmem>>, vector<1x32xf32>
    %cst_19 = arith.constant dense<0.000000e+00> : vector<64x32xf32>
    %31 = tpu.matmul %28, %29, %cst_19 {dimension_numbers = #tpu.dot_dimension_numbers<[1], [0], [0], [1], [0, 0, 1, 1], [], []>} : vector<64x32xf32>, vector<32x32xf32>, vector<64x32xf32> -> vector<64x32xf32>
    %32 = vector.broadcast %30 : vector<1x32xf32> to vector<64x32xf32>
    %33 = arith.addf %31, %32 : vector<64x32xf32>
    %cst_20 = arith.constant 0.000000e+00 : f32
    %34 = vector.broadcast %cst_20 : f32 to vector<64x32xf32>
    %35 = arith.maximumf %33, %34 : vector<64x32xf32>
    %36 = vector.broadcast %3 : vector<64x1xf32> to vector<64x32xf32>
    %37 = arith.mulf %35, %36 : vector<64x32xf32>
    %38 = vector.shape_cast %37 : vector<64x32xf32> to vector<8x8x32xf32>
    %cst_21 = arith.constant dense<0xFF800000> : vector<8x32xf32>
    %39 = vector.multi_reduction <maximumf>, %38, %cst_21 [1] : vector<8x8x32xf32> to vector<8x32xf32>
    %c112 = arith.constant 112 : index
    %c0_22 = arith.constant 0 : index
    %40 = vector.load %arg8[%c112, %c0_22] : memref<936x32xf32, #tpu.memory_space<vmem>>, vector<32x32xf32>
    %c3 = arith.constant 3 : index
    %c0_23 = arith.constant 0 : index
    %41 = vector.load %arg9[%c3, %c0_23] : memref<32x32xf32, #tpu.memory_space<vmem>>, vector<1x32xf32>
    %cst_24 = arith.constant dense<0.000000e+00> : vector<8x32xf32>
    %42 = tpu.matmul %39, %40, %cst_24 {dimension_numbers = #tpu.dot_dimension_numbers<[1], [0], [0], [1], [0, 0, 1, 1], [], []>} : vector<8x32xf32>, vector<32x32xf32>, vector<8x32xf32> -> vector<8x32xf32>
    %43 = vector.broadcast %41 : vector<1x32xf32> to vector<8x32xf32>
    %44 = arith.addf %42, %43 : vector<8x32xf32>
    %cst_25 = arith.constant 0.000000e+00 : f32
    %45 = vector.broadcast %cst_25 : f32 to vector<8x32xf32>
    %46 = arith.maximumf %44, %45 : vector<8x32xf32>
    %c144 = arith.constant 144 : index
    %c0_26 = arith.constant 0 : index
    %47 = vector.load %arg8[%c144, %c0_26] : memref<936x32xf32, #tpu.memory_space<vmem>>, vector<32x32xf32>
    %c4 = arith.constant 4 : index
    %c0_27 = arith.constant 0 : index
    %48 = vector.load %arg9[%c4, %c0_27] : memref<32x32xf32, #tpu.memory_space<vmem>>, vector<1x32xf32>
    %cst_28 = arith.constant dense<0.000000e+00> : vector<8x32xf32>
    %49 = tpu.matmul %46, %47, %cst_28 {dimension_numbers = #tpu.dot_dimension_numbers<[1], [0], [0], [1], [0, 0, 1, 1], [], []>} : vector<8x32xf32>, vector<32x32xf32>, vector<8x32xf32> -> vector<8x32xf32>
    %50 = vector.broadcast %48 : vector<1x32xf32> to vector<8x32xf32>
    %51 = arith.addf %49, %50 : vector<8x32xf32>
    %c0_29 = arith.constant 0 : index
    %c0_30 = arith.constant 0 : index
    %c0_31 = arith.constant 0 : index
    %52 = vector.load %arg3[%c0_29, %c0_30, %c0_31] : memref<1x8x1xf32, #tpu.memory_space<vmem>>, vector<1x8x1xf32>
    %53 = vector.shape_cast %52 : vector<1x8x1xf32> to vector<8x1xf32>
    %cst_32 = arith.constant 0.000000e+00 : f32
    %54 = vector.broadcast %cst_32 : f32 to vector<8x1xf32>
    %55 = arith.cmpf ogt, %53, %54 : vector<8x1xf32>
    %cst_33 = arith.constant 0.000000e+00 : f32
    %56 = vector.shape_cast %55 : vector<8x1xi1> to vector<8x1xi1>
    %57 = vector.broadcast %56 : vector<8x1xi1> to vector<8x32xi1>
    %58 = vector.broadcast %cst_33 : f32 to vector<8x32xf32>
    %59 = arith.select %57, %51, %58 : vector<8x32xi1>, vector<8x32xf32>
    %c0_34 = arith.constant 0 : index
    %c0_35 = arith.constant 0 : index
    %c0_36 = arith.constant 0 : index
    %60 = vector.load %arg4[%c0_34, %c0_35, %c0_36] : memref<1x64x16xf32, #tpu.memory_space<vmem>>, vector<1x64x16xf32>
    %61 = vector.shape_cast %60 : vector<1x64x16xf32> to vector<64x16xf32>
    %c176 = arith.constant 176 : index
    %c0_37 = arith.constant 0 : index
    %62 = vector.load %arg8[%c176, %c0_37] : memref<936x32xf32, #tpu.memory_space<vmem>>, vector<16x32xf32>
    %c5 = arith.constant 5 : index
    %c0_38 = arith.constant 0 : index
    %63 = vector.load %arg9[%c5, %c0_38] : memref<32x32xf32, #tpu.memory_space<vmem>>, vector<1x32xf32>
    %cst_39 = arith.constant dense<0.000000e+00> : vector<64x32xf32>
    %64 = tpu.matmul %61, %62, %cst_39 {dimension_numbers = #tpu.dot_dimension_numbers<[1], [0], [0], [1], [0, 0, 1, 1], [], []>} : vector<64x16xf32>, vector<16x32xf32>, vector<64x32xf32> -> vector<64x32xf32>
    %65 = vector.broadcast %63 : vector<1x32xf32> to vector<64x32xf32>
    %66 = arith.addf %64, %65 : vector<64x32xf32>
    %cst_40 = arith.constant 1.000000e+00 : f32
    %67 = vector.broadcast %cst_40 : f32 to vector<1x64xf32>
    %c192 = arith.constant 192 : index
    %c0_41 = arith.constant 0 : index
    %68 = vector.load %arg8[%c192, %c0_41] : memref<936x32xf32, #tpu.memory_space<vmem>>, vector<32x32xf32>
    %cst_42 = arith.constant dense<0.000000e+00> : vector<1x32xf32>
    %69 = tpu.matmul %67, %66, %cst_42 {dimension_numbers = #tpu.dot_dimension_numbers<[1], [0], [0], [1], [0, 0, 1, 1], [], []>} : vector<1x64xf32>, vector<64x32xf32>, vector<1x32xf32> -> vector<1x32xf32>
    %cst_43 = arith.constant dense<0.000000e+00> : vector<1x32xf32>
    %70 = tpu.matmul %69, %68, %cst_43 {dimension_numbers = #tpu.dot_dimension_numbers<[1], [0], [0], [1], [0, 0, 1, 1], [], []>} : vector<1x32xf32>, vector<32x32xf32>, vector<1x32xf32> -> vector<1x32xf32>
    %cst_44 = arith.constant 3.906250e-03 : f32
    %71 = vector.broadcast %cst_44 : f32 to vector<1x32xf32>
    %72 = arith.mulf %70, %71 : vector<1x32xf32>
    %73 = vector.broadcast %72 : vector<1x32xf32> to vector<64x32xf32>
    %74 = arith.subf %66, %73 : vector<64x32xf32>
    %75 = arith.mulf %74, %74 : vector<64x32xf32>
    %cst_45 = arith.constant dense<0.000000e+00> : vector<1x32xf32>
    %76 = tpu.matmul %67, %75, %cst_45 {dimension_numbers = #tpu.dot_dimension_numbers<[1], [0], [0], [1], [0, 0, 1, 1], [], []>} : vector<1x64xf32>, vector<64x32xf32>, vector<1x32xf32> -> vector<1x32xf32>
    %cst_46 = arith.constant dense<0.000000e+00> : vector<1x32xf32>
    %77 = tpu.matmul %76, %68, %cst_46 {dimension_numbers = #tpu.dot_dimension_numbers<[1], [0], [0], [1], [0, 0, 1, 1], [], []>} : vector<1x32xf32>, vector<32x32xf32>, vector<1x32xf32> -> vector<1x32xf32>
    %cst_47 = arith.constant 3.906250e-03 : f32
    %78 = vector.broadcast %cst_47 : f32 to vector<1x32xf32>
    %79 = arith.mulf %77, %78 : vector<1x32xf32>
    %cst_48 = arith.constant 9.99999974E-6 : f32
    %80 = vector.broadcast %cst_48 : f32 to vector<1x32xf32>
    %81 = arith.addf %79, %80 : vector<1x32xf32>
    %82 = math.rsqrt %81 : vector<1x32xf32>
    %83 = vector.broadcast %82 : vector<1x32xf32> to vector<64x32xf32>
    %84 = arith.mulf %74, %83 : vector<64x32xf32>
    %c6 = arith.constant 6 : index
    %c0_49 = arith.constant 0 : index
    %85 = vector.load %arg9[%c6, %c0_49] : memref<32x32xf32, #tpu.memory_space<vmem>>, vector<1x32xf32>
    %86 = vector.broadcast %85 : vector<1x32xf32> to vector<64x32xf32>
    %87 = arith.mulf %84, %86 : vector<64x32xf32>
    %c7 = arith.constant 7 : index
    %c0_50 = arith.constant 0 : index
    %88 = vector.load %arg9[%c7, %c0_50] : memref<32x32xf32, #tpu.memory_space<vmem>>, vector<1x32xf32>
    %89 = vector.broadcast %88 : vector<1x32xf32> to vector<64x32xf32>
    %90 = arith.addf %87, %89 : vector<64x32xf32>
    %cst_51 = arith.constant 0.000000e+00 : f32
    %91 = vector.broadcast %cst_51 : f32 to vector<64x32xf32>
    %92 = arith.maximumf %90, %91 : vector<64x32xf32>
    %c224 = arith.constant 224 : index
    %c0_52 = arith.constant 0 : index
    %93 = vector.load %arg8[%c224, %c0_52] : memref<936x32xf32, #tpu.memory_space<vmem>>, vector<32x32xf32>
    %c8 = arith.constant 8 : index
    %c0_53 = arith.constant 0 : index
    %94 = vector.load %arg9[%c8, %c0_53] : memref<32x32xf32, #tpu.memory_space<vmem>>, vector<1x32xf32>
    %cst_54 = arith.constant dense<0.000000e+00> : vector<64x32xf32>
    %95 = tpu.matmul %92, %93, %cst_54 {dimension_numbers = #tpu.dot_dimension_numbers<[1], [0], [0], [1], [0, 0, 1, 1], [], []>} : vector<64x32xf32>, vector<32x32xf32>, vector<64x32xf32> -> vector<64x32xf32>
    %96 = vector.broadcast %94 : vector<1x32xf32> to vector<64x32xf32>
    %97 = arith.addf %95, %96 : vector<64x32xf32>
    %98 = tpu.concatenate %59, %97 in 0 : vector<8x32xf32>, vector<64x32xf32> -> vector<72x32xf32>
    %c0_55 = arith.constant 0 : index
    %c0_56 = arith.constant 0 : index
    %c0_57 = arith.constant 0 : index
    %99 = vector.load %arg5[%c0_55, %c0_56, %c0_57] : memref<1x72x32xf32, #tpu.memory_space<vmem>>, vector<1x72x32xf32>
    %100 = vector.shape_cast %99 : vector<1x72x32xf32> to vector<72x32xf32>
    %c0_58 = arith.constant 0 : index
    %c0_59 = arith.constant 0 : index
    %c0_60 = arith.constant 0 : index
    %101 = vector.load %arg6[%c0_58, %c0_59, %c0_60] : memref<1x1x72xf32, #tpu.memory_space<vmem>>, vector<1x1x72xf32>
    %102 = vector.shape_cast %101 : vector<1x1x72xf32> to vector<1x72xf32>
    %cst_61 = arith.constant 1.000000e+00 : f32
    %103 = vector.broadcast %cst_61 : f32 to vector<72x1xf32>
    %cst_62 = arith.constant 1.000000e+00 : f32
    %104 = vector.broadcast %cst_62 : f32 to vector<32x1xf32>
    %c0_63 = arith.constant 0 : index
    %c0_64 = arith.constant 0 : index
    %c0_65 = arith.constant 0 : index
    %105 = vector.load %arg10[%c0_63, %c0_64, %c0_65] : memref<1x33x64xf32, #tpu.memory_space<vmem>>, vector<1x32x64xf32>
    %106 = vector.shape_cast %105 : vector<1x32x64xf32> to vector<32x64xf32>
    %c0_66 = arith.constant 0 : index
    %c32 = arith.constant 32 : index
    %c0_67 = arith.constant 0 : index
    %107 = vector.load %arg10[%c0_66, %c32, %c0_67] : memref<1x33x64xf32, #tpu.memory_space<vmem>>, vector<1x1x64xf32>
    %108 = vector.shape_cast %107 : vector<1x1x64xf32> to vector<1x64xf32>
    %c0_68 = arith.constant 0 : index
    %c0_69 = arith.constant 0 : index
    %c0_70 = arith.constant 0 : index
    %109 = vector.load %arg11[%c0_68, %c0_69, %c0_70] : memref<1x33x128xf32, #tpu.memory_space<vmem>>, vector<1x32x128xf32>
    %110 = vector.shape_cast %109 : vector<1x32x128xf32> to vector<32x128xf32>
    %c0_71 = arith.constant 0 : index
    %c32_72 = arith.constant 32 : index
    %c0_73 = arith.constant 0 : index
    %111 = vector.load %arg11[%c0_71, %c32_72, %c0_73] : memref<1x33x128xf32, #tpu.memory_space<vmem>>, vector<1x1x128xf32>
    %112 = vector.shape_cast %111 : vector<1x1x128xf32> to vector<1x128xf32>
    %113 = arith.addf %98, %100 : vector<72x32xf32>
    %cst_74 = arith.constant dense<0.000000e+00> : vector<72x64xf32>
    %114 = tpu.matmul %113, %106, %cst_74 {dimension_numbers = #tpu.dot_dimension_numbers<[1], [0], [0], [1], [0, 0, 1, 1], [], []>} : vector<72x32xf32>, vector<32x64xf32>, vector<72x64xf32> -> vector<72x64xf32>
    %115 = vector.broadcast %108 : vector<1x64xf32> to vector<72x64xf32>
    %116 = arith.addf %114, %115 : vector<72x64xf32>
    %c256 = arith.constant 256 : index
    %c0_75 = arith.constant 0 : index
    %117 = vector.load %arg8[%c256, %c0_75] : memref<936x32xf32, #tpu.memory_space<vmem>>, vector<32x32xf32>
    %c9 = arith.constant 9 : index
    %c0_76 = arith.constant 0 : index
    %118 = vector.load %arg9[%c9, %c0_76] : memref<32x32xf32, #tpu.memory_space<vmem>>, vector<1x32xf32>
    %cst_77 = arith.constant dense<0.000000e+00> : vector<72x32xf32>
    %119 = tpu.matmul %98, %117, %cst_77 {dimension_numbers = #tpu.dot_dimension_numbers<[1], [0], [0], [1], [0, 0, 1, 1], [], []>} : vector<72x32xf32>, vector<32x32xf32>, vector<72x32xf32> -> vector<72x32xf32>
    %120 = vector.broadcast %118 : vector<1x32xf32> to vector<72x32xf32>
    %121 = arith.addf %119, %120 : vector<72x32xf32>
    %122 = vector.extract_strided_slice %116 {offsets = [0, 0], sizes = [72, 16], strides = [1, 1]} : vector<72x64xf32> to vector<72x16xf32>
    %123 = vector.extract_strided_slice %116 {offsets = [0, 32], sizes = [72, 16], strides = [1, 1]} : vector<72x64xf32> to vector<72x16xf32>
    %124 = vector.extract_strided_slice %121 {offsets = [0, 0], sizes = [72, 16], strides = [1, 1]} : vector<72x32xf32> to vector<72x16xf32>
    %cst_78 = arith.constant dense<0.000000e+00> : vector<72x72xf32>
    %125 = tpu.matmul %122, %123, %cst_78 {dimension_numbers = #tpu.dot_dimension_numbers<[1], [1], [0], [0], [0, 0, 1, 0], [], []>} : vector<72x16xf32>, vector<72x16xf32>, vector<72x72xf32> -> vector<72x72xf32>
    %cst_79 = arith.constant 2.500000e-01 : f32
    %126 = vector.broadcast %cst_79 : f32 to vector<72x72xf32>
    %127 = arith.mulf %125, %126 : vector<72x72xf32>
    %128 = vector.broadcast %102 : vector<1x72xf32> to vector<72x72xf32>
    %129 = arith.addf %127, %128 : vector<72x72xf32>
    %cst_80 = arith.constant dense<0xFF800000> : vector<72xf32>
    %130 = vector.multi_reduction <maximumf>, %129, %cst_80 [1] : vector<72x72xf32> to vector<72xf32>
    %131 = vector.shape_cast %130 : vector<72xf32> to vector<72x1xf32>
    %132 = vector.broadcast %131 : vector<72x1xf32> to vector<72x72xf32>
    %133 = arith.subf %129, %132 : vector<72x72xf32>
    %134 = math.exp %133 : vector<72x72xf32>
    %cst_81 = arith.constant dense<0.000000e+00> : vector<72x1xf32>
    %135 = tpu.matmul %134, %103, %cst_81 {dimension_numbers = #tpu.dot_dimension_numbers<[1], [0], [0], [1], [0, 0, 1, 1], [], []>} : vector<72x72xf32>, vector<72x1xf32>, vector<72x1xf32> -> vector<72x1xf32>
    %136 = tpu.reciprocal %135 {approx = true} : vector<72x1xf32> -> vector<72x1xf32>
    %137 = vector.broadcast %136 : vector<72x1xf32> to vector<72x72xf32>
    %138 = arith.mulf %134, %137 : vector<72x72xf32>
    %cst_82 = arith.constant dense<0.000000e+00> : vector<72x16xf32>
    %139 = tpu.matmul %138, %124, %cst_82 {dimension_numbers = #tpu.dot_dimension_numbers<[1], [0], [0], [1], [0, 0, 1, 1], [], []>} : vector<72x72xf32>, vector<72x16xf32>, vector<72x16xf32> -> vector<72x16xf32>
    %c288 = arith.constant 288 : index
    %c0_83 = arith.constant 0 : index
    %140 = vector.load %arg8[%c288, %c0_83] : memref<936x32xf32, #tpu.memory_space<vmem>>, vector<16x32xf32>
    %cst_84 = arith.constant dense<0.000000e+00> : vector<72x32xf32>
    %141 = tpu.matmul %139, %140, %cst_84 {dimension_numbers = #tpu.dot_dimension_numbers<[1], [0], [0], [1], [0, 0, 1, 1], [], []>} : vector<72x16xf32>, vector<16x32xf32>, vector<72x32xf32> -> vector<72x32xf32>
    %142 = vector.extract_strided_slice %116 {offsets = [0, 16], sizes = [72, 16], strides = [1, 1]} : vector<72x64xf32> to vector<72x16xf32>
    %143 = vector.extract_strided_slice %116 {offsets = [0, 48], sizes = [72, 16], strides = [1, 1]} : vector<72x64xf32> to vector<72x16xf32>
    %144 = vector.extract_strided_slice %121 {offsets = [0, 16], sizes = [72, 16], strides = [1, 1]} : vector<72x32xf32> to vector<72x16xf32>
    %cst_85 = arith.constant dense<0.000000e+00> : vector<72x72xf32>
    %145 = tpu.matmul %142, %143, %cst_85 {dimension_numbers = #tpu.dot_dimension_numbers<[1], [1], [0], [0], [0, 0, 1, 0], [], []>} : vector<72x16xf32>, vector<72x16xf32>, vector<72x72xf32> -> vector<72x72xf32>
    %cst_86 = arith.constant 2.500000e-01 : f32
    %146 = vector.broadcast %cst_86 : f32 to vector<72x72xf32>
    %147 = arith.mulf %145, %146 : vector<72x72xf32>
    %148 = vector.broadcast %102 : vector<1x72xf32> to vector<72x72xf32>
    %149 = arith.addf %147, %148 : vector<72x72xf32>
    %cst_87 = arith.constant dense<0xFF800000> : vector<72xf32>
    %150 = vector.multi_reduction <maximumf>, %149, %cst_87 [1] : vector<72x72xf32> to vector<72xf32>
    %151 = vector.shape_cast %150 : vector<72xf32> to vector<72x1xf32>
    %152 = vector.broadcast %151 : vector<72x1xf32> to vector<72x72xf32>
    %153 = arith.subf %149, %152 : vector<72x72xf32>
    %154 = math.exp %153 : vector<72x72xf32>
    %cst_88 = arith.constant dense<0.000000e+00> : vector<72x1xf32>
    %155 = tpu.matmul %154, %103, %cst_88 {dimension_numbers = #tpu.dot_dimension_numbers<[1], [0], [0], [1], [0, 0, 1, 1], [], []>} : vector<72x72xf32>, vector<72x1xf32>, vector<72x1xf32> -> vector<72x1xf32>
    %156 = tpu.reciprocal %155 {approx = true} : vector<72x1xf32> -> vector<72x1xf32>
    %157 = vector.broadcast %156 : vector<72x1xf32> to vector<72x72xf32>
    %158 = arith.mulf %154, %157 : vector<72x72xf32>
    %cst_89 = arith.constant dense<0.000000e+00> : vector<72x16xf32>
    %159 = tpu.matmul %158, %144, %cst_89 {dimension_numbers = #tpu.dot_dimension_numbers<[1], [0], [0], [1], [0, 0, 1, 1], [], []>} : vector<72x72xf32>, vector<72x16xf32>, vector<72x16xf32> -> vector<72x16xf32>
    %c304 = arith.constant 304 : index
    %c0_90 = arith.constant 0 : index
    %160 = vector.load %arg8[%c304, %c0_90] : memref<936x32xf32, #tpu.memory_space<vmem>>, vector<16x32xf32>
    %cst_91 = arith.constant dense<0.000000e+00> : vector<72x32xf32>
    %161 = tpu.matmul %159, %160, %cst_91 {dimension_numbers = #tpu.dot_dimension_numbers<[1], [0], [0], [1], [0, 0, 1, 1], [], []>} : vector<72x16xf32>, vector<16x32xf32>, vector<72x32xf32> -> vector<72x32xf32>
    %162 = arith.addf %141, %161 : vector<72x32xf32>
    %c10 = arith.constant 10 : index
    %c0_92 = arith.constant 0 : index
    %163 = vector.load %arg9[%c10, %c0_92] : memref<32x32xf32, #tpu.memory_space<vmem>>, vector<1x32xf32>
    %164 = vector.broadcast %163 : vector<1x32xf32> to vector<72x32xf32>
    %165 = arith.addf %162, %164 : vector<72x32xf32>
    %166 = arith.addf %98, %165 : vector<72x32xf32>
    %c11 = arith.constant 11 : index
    %c0_93 = arith.constant 0 : index
    %167 = vector.load %arg9[%c11, %c0_93] : memref<32x32xf32, #tpu.memory_space<vmem>>, vector<1x32xf32>
    %c12 = arith.constant 12 : index
    %c0_94 = arith.constant 0 : index
    %168 = vector.load %arg9[%c12, %c0_94] : memref<32x32xf32, #tpu.memory_space<vmem>>, vector<1x32xf32>
    %cst_95 = arith.constant dense<0.000000e+00> : vector<72x1xf32>
    %169 = tpu.matmul %166, %104, %cst_95 {dimension_numbers = #tpu.dot_dimension_numbers<[1], [0], [0], [1], [0, 0, 1, 1], [], []>} : vector<72x32xf32>, vector<32x1xf32>, vector<72x1xf32> -> vector<72x1xf32>
    %cst_96 = arith.constant 3.125000e-02 : f32
    %170 = vector.broadcast %cst_96 : f32 to vector<72x1xf32>
    %171 = arith.mulf %169, %170 : vector<72x1xf32>
    %172 = vector.broadcast %171 : vector<72x1xf32> to vector<72x32xf32>
    %173 = arith.subf %166, %172 : vector<72x32xf32>
    %174 = arith.mulf %173, %173 : vector<72x32xf32>
    %cst_97 = arith.constant dense<0.000000e+00> : vector<72x1xf32>
    %175 = tpu.matmul %174, %104, %cst_97 {dimension_numbers = #tpu.dot_dimension_numbers<[1], [0], [0], [1], [0, 0, 1, 1], [], []>} : vector<72x32xf32>, vector<32x1xf32>, vector<72x1xf32> -> vector<72x1xf32>
    %cst_98 = arith.constant 3.125000e-02 : f32
    %176 = vector.broadcast %cst_98 : f32 to vector<72x1xf32>
    %177 = arith.mulf %175, %176 : vector<72x1xf32>
    %cst_99 = arith.constant 9.99999974E-6 : f32
    %178 = vector.broadcast %cst_99 : f32 to vector<72x1xf32>
    %179 = arith.addf %177, %178 : vector<72x1xf32>
    %180 = math.rsqrt %179 : vector<72x1xf32>
    %181 = vector.broadcast %180 : vector<72x1xf32> to vector<72x32xf32>
    %182 = arith.mulf %173, %181 : vector<72x32xf32>
    %183 = vector.broadcast %167 : vector<1x32xf32> to vector<72x32xf32>
    %184 = arith.mulf %182, %183 : vector<72x32xf32>
    %185 = vector.broadcast %168 : vector<1x32xf32> to vector<72x32xf32>
    %186 = arith.addf %184, %185 : vector<72x32xf32>
    %cst_100 = arith.constant dense<0.000000e+00> : vector<72x128xf32>
    %187 = tpu.matmul %186, %110, %cst_100 {dimension_numbers = #tpu.dot_dimension_numbers<[1], [0], [0], [1], [0, 0, 1, 1], [], []>} : vector<72x32xf32>, vector<32x128xf32>, vector<72x128xf32> -> vector<72x128xf32>
    %188 = vector.broadcast %112 : vector<1x128xf32> to vector<72x128xf32>
    %189 = arith.addf %187, %188 : vector<72x128xf32>
    %cst_101 = arith.constant 0.000000e+00 : f32
    %190 = vector.broadcast %cst_101 : f32 to vector<72x128xf32>
    %191 = arith.maximumf %189, %190 : vector<72x128xf32>
    %c320 = arith.constant 320 : index
    %c0_102 = arith.constant 0 : index
    %192 = vector.load %arg8[%c320, %c0_102] : memref<936x32xf32, #tpu.memory_space<vmem>>, vector<128x32xf32>
    %c13 = arith.constant 13 : index
    %c0_103 = arith.constant 0 : index
    %193 = vector.load %arg9[%c13, %c0_103] : memref<32x32xf32, #tpu.memory_space<vmem>>, vector<1x32xf32>
    %cst_104 = arith.constant dense<0.000000e+00> : vector<72x32xf32>
    %194 = tpu.matmul %191, %192, %cst_104 {dimension_numbers = #tpu.dot_dimension_numbers<[1], [0], [0], [1], [0, 0, 1, 1], [], []>} : vector<72x128xf32>, vector<128x32xf32>, vector<72x32xf32> -> vector<72x32xf32>
    %195 = vector.broadcast %193 : vector<1x32xf32> to vector<72x32xf32>
    %196 = arith.addf %194, %195 : vector<72x32xf32>
    %197 = arith.addf %186, %196 : vector<72x32xf32>
    %c14 = arith.constant 14 : index
    %c0_105 = arith.constant 0 : index
    %198 = vector.load %arg9[%c14, %c0_105] : memref<32x32xf32, #tpu.memory_space<vmem>>, vector<1x32xf32>
    %c15 = arith.constant 15 : index
    %c0_106 = arith.constant 0 : index
    %199 = vector.load %arg9[%c15, %c0_106] : memref<32x32xf32, #tpu.memory_space<vmem>>, vector<1x32xf32>
    %cst_107 = arith.constant dense<0.000000e+00> : vector<72x1xf32>
    %200 = tpu.matmul %197, %104, %cst_107 {dimension_numbers = #tpu.dot_dimension_numbers<[1], [0], [0], [1], [0, 0, 1, 1], [], []>} : vector<72x32xf32>, vector<32x1xf32>, vector<72x1xf32> -> vector<72x1xf32>
    %cst_108 = arith.constant 3.125000e-02 : f32
    %201 = vector.broadcast %cst_108 : f32 to vector<72x1xf32>
    %202 = arith.mulf %200, %201 : vector<72x1xf32>
    %203 = vector.broadcast %202 : vector<72x1xf32> to vector<72x32xf32>
    %204 = arith.subf %197, %203 : vector<72x32xf32>
    %205 = arith.mulf %204, %204 : vector<72x32xf32>
    %cst_109 = arith.constant dense<0.000000e+00> : vector<72x1xf32>
    %206 = tpu.matmul %205, %104, %cst_109 {dimension_numbers = #tpu.dot_dimension_numbers<[1], [0], [0], [1], [0, 0, 1, 1], [], []>} : vector<72x32xf32>, vector<32x1xf32>, vector<72x1xf32> -> vector<72x1xf32>
    %cst_110 = arith.constant 3.125000e-02 : f32
    %207 = vector.broadcast %cst_110 : f32 to vector<72x1xf32>
    %208 = arith.mulf %206, %207 : vector<72x1xf32>
    %cst_111 = arith.constant 9.99999974E-6 : f32
    %209 = vector.broadcast %cst_111 : f32 to vector<72x1xf32>
    %210 = arith.addf %208, %209 : vector<72x1xf32>
    %211 = math.rsqrt %210 : vector<72x1xf32>
    %212 = vector.broadcast %211 : vector<72x1xf32> to vector<72x32xf32>
    %213 = arith.mulf %204, %212 : vector<72x32xf32>
    %214 = vector.broadcast %198 : vector<1x32xf32> to vector<72x32xf32>
    %215 = arith.mulf %213, %214 : vector<72x32xf32>
    %216 = vector.broadcast %199 : vector<1x32xf32> to vector<72x32xf32>
    %217 = arith.addf %215, %216 : vector<72x32xf32>
    %218 = vector.extract_strided_slice %217 {offsets = [0, 0], sizes = [8, 32], strides = [1, 1]} : vector<72x32xf32> to vector<8x32xf32>
    %c448 = arith.constant 448 : index
    %c0_112 = arith.constant 0 : index
    %219 = vector.load %arg8[%c448, %c0_112] : memref<936x32xf32, #tpu.memory_space<vmem>>, vector<32x32xf32>
    %c16_113 = arith.constant 16 : index
    %c0_114 = arith.constant 0 : index
    %220 = vector.load %arg9[%c16_113, %c0_114] : memref<32x32xf32, #tpu.memory_space<vmem>>, vector<1x32xf32>
    %cst_115 = arith.constant dense<0.000000e+00> : vector<8x32xf32>
    %221 = tpu.matmul %218, %219, %cst_115 {dimension_numbers = #tpu.dot_dimension_numbers<[1], [0], [0], [1], [0, 0, 1, 1], [], []>} : vector<8x32xf32>, vector<32x32xf32>, vector<8x32xf32> -> vector<8x32xf32>
    %222 = vector.broadcast %220 : vector<1x32xf32> to vector<8x32xf32>
    %223 = arith.addf %221, %222 : vector<8x32xf32>
    %cst_116 = arith.constant 0.000000e+00 : f32
    %224 = vector.broadcast %cst_116 : f32 to vector<8x32xf32>
    %225 = arith.maximumf %223, %224 : vector<8x32xf32>
    %c480 = arith.constant 480 : index
    %c0_117 = arith.constant 0 : index
    %226 = vector.load %arg8[%c480, %c0_117] : memref<936x32xf32, #tpu.memory_space<vmem>>, vector<32x32xf32>
    %c17 = arith.constant 17 : index
    %c0_118 = arith.constant 0 : index
    %227 = vector.load %arg9[%c17, %c0_118] : memref<32x32xf32, #tpu.memory_space<vmem>>, vector<1x32xf32>
    %cst_119 = arith.constant dense<0.000000e+00> : vector<8x32xf32>
    %228 = tpu.matmul %225, %226, %cst_119 {dimension_numbers = #tpu.dot_dimension_numbers<[1], [0], [0], [1], [0, 0, 1, 1], [], []>} : vector<8x32xf32>, vector<32x32xf32>, vector<8x32xf32> -> vector<8x32xf32>
    %229 = vector.broadcast %227 : vector<1x32xf32> to vector<8x32xf32>
    %230 = arith.addf %228, %229 : vector<8x32xf32>
    %cst_120 = arith.constant 0.000000e+00 : f32
    %231 = vector.shape_cast %55 : vector<8x1xi1> to vector<8x1xi1>
    %232 = vector.broadcast %231 : vector<8x1xi1> to vector<8x32xi1>
    %233 = vector.broadcast %cst_120 : f32 to vector<8x32xf32>
    %234 = arith.select %232, %230, %233 : vector<8x32xi1>, vector<8x32xf32>
    %c0_121 = arith.constant 0 : index
    %c0_122 = arith.constant 0 : index
    %c0_123 = arith.constant 0 : index
    %235 = vector.load %arg7[%c0_121, %c0_122, %c0_123] : memref<1x8x2xf32, #tpu.memory_space<vmem>>, vector<1x8x2xf32>
    %236 = vector.shape_cast %235 : vector<1x8x2xf32> to vector<8x2xf32>
    %237 = vector.extract_strided_slice %236 {offsets = [0, 0], sizes = [8, 1], strides = [1, 1]} : vector<8x2xf32> to vector<8x1xf32>
    %238 = vector.extract_strided_slice %236 {offsets = [0, 1], sizes = [8, 1], strides = [1, 1]} : vector<8x2xf32> to vector<8x1xf32>
    %c512 = arith.constant 512 : index
    %c0_124 = arith.constant 0 : index
    %239 = vector.load %arg8[%c512, %c0_124] : memref<936x32xf32, #tpu.memory_space<vmem>>, vector<2x32xf32>
    %240 = vector.extract_strided_slice %239 {offsets = [0, 0], sizes = [1, 32], strides = [1, 1]} : vector<2x32xf32> to vector<1x32xf32>
    %241 = vector.broadcast %237 : vector<8x1xf32> to vector<8x32xf32>
    %242 = vector.broadcast %240 : vector<1x32xf32> to vector<8x32xf32>
    %243 = arith.mulf %241, %242 : vector<8x32xf32>
    %244 = vector.extract_strided_slice %239 {offsets = [1, 0], sizes = [1, 32], strides = [1, 1]} : vector<2x32xf32> to vector<1x32xf32>
    %245 = vector.broadcast %238 : vector<8x1xf32> to vector<8x32xf32>
    %246 = vector.broadcast %244 : vector<1x32xf32> to vector<8x32xf32>
    %247 = arith.mulf %245, %246 : vector<8x32xf32>
    %248 = arith.addf %243, %247 : vector<8x32xf32>
    %c18 = arith.constant 18 : index
    %c0_125 = arith.constant 0 : index
    %249 = vector.load %arg9[%c18, %c0_125] : memref<32x32xf32, #tpu.memory_space<vmem>>, vector<1x32xf32>
    %250 = vector.broadcast %249 : vector<1x32xf32> to vector<8x32xf32>
    %251 = arith.addf %248, %250 : vector<8x32xf32>
    %cst_126 = arith.constant 0.000000e+00 : f32
    %252 = vector.broadcast %cst_126 : f32 to vector<8x32xf32>
    %253 = arith.maximumf %251, %252 : vector<8x32xf32>
    %c520 = arith.constant 520 : index
    %c0_127 = arith.constant 0 : index
    %254 = vector.load %arg8[%c520, %c0_127] : memref<936x32xf32, #tpu.memory_space<vmem>>, vector<32x32xf32>
    %c19 = arith.constant 19 : index
    %c0_128 = arith.constant 0 : index
    %255 = vector.load %arg9[%c19, %c0_128] : memref<32x32xf32, #tpu.memory_space<vmem>>, vector<1x32xf32>
    %cst_129 = arith.constant dense<0.000000e+00> : vector<8x32xf32>
    %256 = tpu.matmul %253, %254, %cst_129 {dimension_numbers = #tpu.dot_dimension_numbers<[1], [0], [0], [1], [0, 0, 1, 1], [], []>} : vector<8x32xf32>, vector<32x32xf32>, vector<8x32xf32> -> vector<8x32xf32>
    %257 = vector.broadcast %255 : vector<1x32xf32> to vector<8x32xf32>
    %258 = arith.addf %256, %257 : vector<8x32xf32>
    %cst_130 = arith.constant 0.000000e+00 : f32
    %259 = vector.broadcast %cst_130 : f32 to vector<8x32xf32>
    %260 = arith.maximumf %258, %259 : vector<8x32xf32>
    %c552 = arith.constant 552 : index
    %c0_131 = arith.constant 0 : index
    %261 = vector.load %arg8[%c552, %c0_131] : memref<936x32xf32, #tpu.memory_space<vmem>>, vector<32x32xf32>
    %c20 = arith.constant 20 : index
    %c0_132 = arith.constant 0 : index
    %262 = vector.load %arg9[%c20, %c0_132] : memref<32x32xf32, #tpu.memory_space<vmem>>, vector<1x32xf32>
    %cst_133 = arith.constant dense<0.000000e+00> : vector<8x32xf32>
    %263 = tpu.matmul %260, %261, %cst_133 {dimension_numbers = #tpu.dot_dimension_numbers<[1], [0], [0], [1], [0, 0, 1, 1], [], []>} : vector<8x32xf32>, vector<32x32xf32>, vector<8x32xf32> -> vector<8x32xf32>
    %264 = vector.broadcast %262 : vector<1x32xf32> to vector<8x32xf32>
    %265 = arith.addf %263, %264 : vector<8x32xf32>
    %c584 = arith.constant 584 : index
    %c0_134 = arith.constant 0 : index
    %266 = vector.load %arg8[%c584, %c0_134] : memref<936x32xf32, #tpu.memory_space<vmem>>, vector<32x32xf32>
    %cst_135 = arith.constant dense<0.000000e+00> : vector<8x32xf32>
    %267 = tpu.matmul %265, %266, %cst_135 {dimension_numbers = #tpu.dot_dimension_numbers<[1], [0], [0], [1], [0, 0, 1, 1], [], []>} : vector<8x32xf32>, vector<32x32xf32>, vector<8x32xf32> -> vector<8x32xf32>
    %c616 = arith.constant 616 : index
    %c0_136 = arith.constant 0 : index
    %268 = vector.load %arg8[%c616, %c0_136] : memref<936x32xf32, #tpu.memory_space<vmem>>, vector<32x32xf32>
    %cst_137 = arith.constant dense<0.000000e+00> : vector<8x32xf32>
    %269 = tpu.matmul %234, %268, %cst_137 {dimension_numbers = #tpu.dot_dimension_numbers<[1], [0], [0], [1], [0, 0, 1, 1], [], []>} : vector<8x32xf32>, vector<32x32xf32>, vector<8x32xf32> -> vector<8x32xf32>
    %270 = arith.addf %267, %269 : vector<8x32xf32>
    %c21 = arith.constant 21 : index
    %c0_138 = arith.constant 0 : index
    %271 = vector.load %arg9[%c21, %c0_138] : memref<32x32xf32, #tpu.memory_space<vmem>>, vector<1x32xf32>
    %272 = vector.broadcast %271 : vector<1x32xf32> to vector<8x32xf32>
    %273 = arith.addf %270, %272 : vector<8x32xf32>
    %cst_139 = arith.constant 0.000000e+00 : f32
    %274 = vector.broadcast %cst_139 : f32 to vector<8x32xf32>
    %275 = arith.maximumf %273, %274 : vector<8x32xf32>
    %c648 = arith.constant 648 : index
    %c0_140 = arith.constant 0 : index
    %276 = vector.load %arg8[%c648, %c0_140] : memref<936x32xf32, #tpu.memory_space<vmem>>, vector<32x32xf32>
    %c22 = arith.constant 22 : index
    %c0_141 = arith.constant 0 : index
    %277 = vector.load %arg9[%c22, %c0_141] : memref<32x32xf32, #tpu.memory_space<vmem>>, vector<1x32xf32>
    %cst_142 = arith.constant dense<0.000000e+00> : vector<8x32xf32>
    %278 = tpu.matmul %275, %276, %cst_142 {dimension_numbers = #tpu.dot_dimension_numbers<[1], [0], [0], [1], [0, 0, 1, 1], [], []>} : vector<8x32xf32>, vector<32x32xf32>, vector<8x32xf32> -> vector<8x32xf32>
    %279 = vector.broadcast %277 : vector<1x32xf32> to vector<8x32xf32>
    %280 = arith.addf %278, %279 : vector<8x32xf32>
    %cst_143 = arith.constant 0.000000e+00 : f32
    %281 = vector.broadcast %cst_143 : f32 to vector<8x32xf32>
    %282 = arith.maximumf %280, %281 : vector<8x32xf32>
    %c680 = arith.constant 680 : index
    %c0_144 = arith.constant 0 : index
    %283 = vector.load %arg8[%c680, %c0_144] : memref<936x32xf32, #tpu.memory_space<vmem>>, vector<32x32xf32>
    %cst_145 = arith.constant dense<0.000000e+00> : vector<8x32xf32>
    %284 = tpu.matmul %282, %283, %cst_145 {dimension_numbers = #tpu.dot_dimension_numbers<[1], [0], [0], [1], [0, 0, 1, 1], [], []>} : vector<8x32xf32>, vector<32x32xf32>, vector<8x32xf32> -> vector<8x32xf32>
    %c23 = arith.constant 23 : index
    %c0_146 = arith.constant 0 : index
    %285 = vector.load %arg9[%c23, %c0_146] : memref<32x32xf32, #tpu.memory_space<vmem>>, vector<1x32xf32>
    %286 = vector.broadcast %285 : vector<1x32xf32> to vector<8x32xf32>
    %287 = arith.addf %284, %286 : vector<8x32xf32>
    %c24 = arith.constant 24 : index
    %c0_147 = arith.constant 0 : index
    %288 = vector.load %arg9[%c24, %c0_147] : memref<32x32xf32, #tpu.memory_space<vmem>>, vector<1x32xf32>
    %289 = vector.broadcast %237 : vector<8x1xf32> to vector<8x32xf32>
    %290 = vector.broadcast %288 : vector<1x32xf32> to vector<8x32xf32>
    %291 = arith.mulf %289, %290 : vector<8x32xf32>
    %292 = arith.addf %287, %291 : vector<8x32xf32>
    %c25 = arith.constant 25 : index
    %c0_148 = arith.constant 0 : index
    %293 = vector.load %arg9[%c25, %c0_148] : memref<32x32xf32, #tpu.memory_space<vmem>>, vector<1x32xf32>
    %294 = vector.broadcast %238 : vector<8x1xf32> to vector<8x32xf32>
    %295 = vector.broadcast %293 : vector<1x32xf32> to vector<8x32xf32>
    %296 = arith.mulf %294, %295 : vector<8x32xf32>
    %297 = arith.addf %292, %296 : vector<8x32xf32>
    %c712 = arith.constant 712 : index
    %c0_149 = arith.constant 0 : index
    %298 = vector.load %arg8[%c712, %c0_149] : memref<936x32xf32, #tpu.memory_space<vmem>>, vector<32x32xf32>
    %c26 = arith.constant 26 : index
    %c0_150 = arith.constant 0 : index
    %299 = vector.load %arg9[%c26, %c0_150] : memref<32x32xf32, #tpu.memory_space<vmem>>, vector<1x32xf32>
    %cst_151 = arith.constant dense<0.000000e+00> : vector<8x32xf32>
    %300 = tpu.matmul %297, %298, %cst_151 {dimension_numbers = #tpu.dot_dimension_numbers<[1], [0], [0], [1], [0, 0, 1, 1], [], []>} : vector<8x32xf32>, vector<32x32xf32>, vector<8x32xf32> -> vector<8x32xf32>
    %301 = vector.broadcast %299 : vector<1x32xf32> to vector<8x32xf32>
    %302 = arith.addf %300, %301 : vector<8x32xf32>
    %cst_152 = arith.constant 0.000000e+00 : f32
    %303 = vector.broadcast %cst_152 : f32 to vector<8x32xf32>
    %304 = arith.maximumf %302, %303 : vector<8x32xf32>
    %c744 = arith.constant 744 : index
    %c0_153 = arith.constant 0 : index
    %305 = vector.load %arg8[%c744, %c0_153] : memref<936x32xf32, #tpu.memory_space<vmem>>, vector<32x32xf32>
    %c27 = arith.constant 27 : index
    %c0_154 = arith.constant 0 : index
    %306 = vector.load %arg9[%c27, %c0_154] : memref<32x32xf32, #tpu.memory_space<vmem>>, vector<1x32xf32>
    %cst_155 = arith.constant dense<0.000000e+00> : vector<8x32xf32>
    %307 = tpu.matmul %304, %305, %cst_155 {dimension_numbers = #tpu.dot_dimension_numbers<[1], [0], [0], [1], [0, 0, 1, 1], [], []>} : vector<8x32xf32>, vector<32x32xf32>, vector<8x32xf32> -> vector<8x32xf32>
    %308 = vector.broadcast %306 : vector<1x32xf32> to vector<8x32xf32>
    %309 = arith.addf %307, %308 : vector<8x32xf32>
    %cst_156 = arith.constant 0.000000e+00 : f32
    %310 = vector.broadcast %cst_156 : f32 to vector<8x32xf32>
    %311 = arith.maximumf %309, %310 : vector<8x32xf32>
    %c776 = arith.constant 776 : index
    %c0_157 = arith.constant 0 : index
    %312 = vector.load %arg8[%c776, %c0_157] : memref<936x32xf32, #tpu.memory_space<vmem>>, vector<32x32xf32>
    %c28 = arith.constant 28 : index
    %c0_158 = arith.constant 0 : index
    %313 = vector.load %arg9[%c28, %c0_158] : memref<32x32xf32, #tpu.memory_space<vmem>>, vector<1x32xf32>
    %cst_159 = arith.constant dense<0.000000e+00> : vector<8x32xf32>
    %314 = tpu.matmul %311, %312, %cst_159 {dimension_numbers = #tpu.dot_dimension_numbers<[1], [0], [0], [1], [0, 0, 1, 1], [], []>} : vector<8x32xf32>, vector<32x32xf32>, vector<8x32xf32> -> vector<8x32xf32>
    %315 = vector.broadcast %313 : vector<1x32xf32> to vector<8x32xf32>
    %316 = arith.addf %314, %315 : vector<8x32xf32>
    %c808 = arith.constant 808 : index
    %c0_160 = arith.constant 0 : index
    %317 = vector.load %arg8[%c808, %c0_160] : memref<936x32xf32, #tpu.memory_space<vmem>>, vector<32x32xf32>
    %cst_161 = arith.constant dense<0.000000e+00> : vector<8x32xf32>
    %318 = tpu.matmul %234, %317, %cst_161 {dimension_numbers = #tpu.dot_dimension_numbers<[1], [0], [0], [1], [0, 0, 1, 1], [], []>} : vector<8x32xf32>, vector<32x32xf32>, vector<8x32xf32> -> vector<8x32xf32>
    %c840 = arith.constant 840 : index
    %c0_162 = arith.constant 0 : index
    %319 = vector.load %arg8[%c840, %c0_162] : memref<936x32xf32, #tpu.memory_space<vmem>>, vector<32x32xf32>
    %cst_163 = arith.constant dense<0.000000e+00> : vector<8x32xf32>
    %320 = tpu.matmul %316, %319, %cst_163 {dimension_numbers = #tpu.dot_dimension_numbers<[1], [0], [0], [1], [0, 0, 1, 1], [], []>} : vector<8x32xf32>, vector<32x32xf32>, vector<8x32xf32> -> vector<8x32xf32>
    %321 = arith.addf %318, %320 : vector<8x32xf32>
    %c29 = arith.constant 29 : index
    %c0_164 = arith.constant 0 : index
    %322 = vector.load %arg9[%c29, %c0_164] : memref<32x32xf32, #tpu.memory_space<vmem>>, vector<1x32xf32>
    %323 = vector.broadcast %322 : vector<1x32xf32> to vector<8x32xf32>
    %324 = arith.addf %321, %323 : vector<8x32xf32>
    %cst_165 = arith.constant 0.000000e+00 : f32
    %325 = vector.broadcast %cst_165 : f32 to vector<8x32xf32>
    %326 = arith.maximumf %324, %325 : vector<8x32xf32>
    %c872 = arith.constant 872 : index
    %c0_166 = arith.constant 0 : index
    %327 = vector.load %arg8[%c872, %c0_166] : memref<936x32xf32, #tpu.memory_space<vmem>>, vector<32x32xf32>
    %c30 = arith.constant 30 : index
    %c0_167 = arith.constant 0 : index
    %328 = vector.load %arg9[%c30, %c0_167] : memref<32x32xf32, #tpu.memory_space<vmem>>, vector<1x32xf32>
    %cst_168 = arith.constant dense<0.000000e+00> : vector<8x32xf32>
    %329 = tpu.matmul %326, %327, %cst_168 {dimension_numbers = #tpu.dot_dimension_numbers<[1], [0], [0], [1], [0, 0, 1, 1], [], []>} : vector<8x32xf32>, vector<32x32xf32>, vector<8x32xf32> -> vector<8x32xf32>
    %330 = vector.broadcast %328 : vector<1x32xf32> to vector<8x32xf32>
    %331 = arith.addf %329, %330 : vector<8x32xf32>
    %cst_169 = arith.constant 0.000000e+00 : f32
    %332 = vector.broadcast %cst_169 : f32 to vector<8x32xf32>
    %333 = arith.maximumf %331, %332 : vector<8x32xf32>
    %c904 = arith.constant 904 : index
    %c0_170 = arith.constant 0 : index
    %334 = vector.load %arg8[%c904, %c0_170] : memref<936x32xf32, #tpu.memory_space<vmem>>, vector<32x32xf32>
    %c31 = arith.constant 31 : index
    %c0_171 = arith.constant 0 : index
    %335 = vector.load %arg9[%c31, %c0_171] : memref<32x32xf32, #tpu.memory_space<vmem>>, vector<1x32xf32>
    %cst_172 = arith.constant dense<0.000000e+00> : vector<8x32xf32>
    %336 = tpu.matmul %333, %334, %cst_172 {dimension_numbers = #tpu.dot_dimension_numbers<[1], [0], [0], [1], [0, 0, 1, 1], [], []>} : vector<8x32xf32>, vector<32x32xf32>, vector<8x32xf32> -> vector<8x32xf32>
    %337 = vector.broadcast %335 : vector<1x32xf32> to vector<8x32xf32>
    %338 = arith.addf %336, %337 : vector<8x32xf32>
    %cst_173 = arith.constant 0.000000e+00 : f32
    %339 = vector.shape_cast %55 : vector<8x1xi1> to vector<8x1xi1>
    %340 = vector.broadcast %339 : vector<8x1xi1> to vector<8x32xi1>
    %341 = vector.broadcast %cst_173 : f32 to vector<8x32xf32>
    %342 = arith.select %340, %338, %341 : vector<8x32xi1>, vector<8x32xf32>
    %cst_174 = arith.constant 0.000000e+00 : f32
    %343 = vector.shape_cast %55 : vector<8x1xi1> to vector<8x1xi1>
    %344 = vector.broadcast %343 : vector<8x1xi1> to vector<8x32xi1>
    %345 = vector.broadcast %cst_174 : f32 to vector<8x32xf32>
    %346 = arith.select %344, %297, %345 : vector<8x32xi1>, vector<8x32xf32>
    %347 = tpu.concatenate %342, %346 in 1 : vector<8x32xf32>, vector<8x32xf32> -> vector<8x64xf32>
    %c0_175 = arith.constant 0 : index
    %c0_176 = arith.constant 0 : index
    %c0_177 = arith.constant 0 : index
    %348 = vector.load %arg12[%c0_175, %c0_176, %c0_177] : memref<1x8x64xf32, #tpu.memory_space<vmem>>, vector<1x8x64xf32>
    %349 = vector.shape_cast %348 : vector<1x8x64xf32> to vector<8x64xf32>
    %350 = vector.shape_cast %347 : vector<8x64xf32> to vector<1x8x64xf32>
    tpu.vector_store %arg12[%c0_175, %c0_176, %c0_177], %350 {strides = array<i32>} : memref<1x8x64xf32, #tpu.memory_space<vmem>>, vector<1x8x64xf32>,
    return
  }
  func.func @transform_0(%arg0: i32) -> (i32, i32, i32) {
    %c0_i32 = arith.constant 0 : i32
    %c0_i32_0 = arith.constant 0 : i32
    %c0_i32_1 = arith.constant 0 : i32
    return %arg0, %c0_i32, %c0_i32_0 : i32, i32, i32
  }
  func.func @transform_1(%arg0: i32) -> (i32, i32, i32) {
    %c0_i32 = arith.constant 0 : i32
    %c0_i32_0 = arith.constant 0 : i32
    %c0_i32_1 = arith.constant 0 : i32
    return %arg0, %c0_i32, %c0_i32_0 : i32, i32, i32
  }
  func.func @transform_2(%arg0: i32) -> (i32, i32, i32) {
    %c0_i32 = arith.constant 0 : i32
    %c0_i32_0 = arith.constant 0 : i32
    %c0_i32_1 = arith.constant 0 : i32
    return %arg0, %c0_i32, %c0_i32_0 : i32, i32, i32
  }
  func.func @transform_3(%arg0: i32) -> (i32, i32, i32) {
    %c0_i32 = arith.constant 0 : i32
    %c0_i32_0 = arith.constant 0 : i32
    %c0_i32_1 = arith.constant 0 : i32
    return %arg0, %c0_i32, %c0_i32_0 : i32, i32, i32
  }
  func.func @transform_4(%arg0: i32) -> (i32, i32, i32) {
    %c0_i32 = arith.constant 0 : i32
    %c0_i32_0 = arith.constant 0 : i32
    %c0_i32_1 = arith.constant 0 : i32
    return %arg0, %c0_i32, %c0_i32_0 : i32, i32, i32
  }
  func.func @transform_5(%arg0: i32) -> (i32, i32, i32) {
    %c0_i32 = arith.constant 0 : i32
    %c0_i32_0 = arith.constant 0 : i32
    %c0_i32_1 = arith.constant 0 : i32
    return %arg0, %c0_i32, %c0_i32_0 : i32, i32, i32
  }
  func.func @transform_6(%arg0: i32) -> (i32, i32, i32) {
    %c0_i32 = arith.constant 0 : i32
    %c0_i32_0 = arith.constant 0 : i32
    %c0_i32_1 = arith.constant 0 : i32
    return %arg0, %c0_i32, %c0_i32_0 : i32, i32, i32
  }
  func.func @transform_7(%arg0: i32) -> (i32, i32) {
    %c0_i32 = arith.constant 0 : i32
    %c0_i32_0 = arith.constant 0 : i32
    %c0_i32_1 = arith.constant 0 : i32
    return %c0_i32, %c0_i32_0 : i32, i32
  }
  func.func @transform_8(%arg0: i32) -> (i32, i32) {
    %c0_i32 = arith.constant 0 : i32
    %c0_i32_0 = arith.constant 0 : i32
    %c0_i32_1 = arith.constant 0 : i32
    return %c0_i32, %c0_i32_0 : i32, i32
  }
  func.func @transform_9(%arg0: i32) -> (i32, i32, i32) {
    %c0_i32 = arith.constant 0 : i32
    %c0_i32_0 = arith.constant 0 : i32
    %c0_i32_1 = arith.constant 0 : i32
    %c0_i32_2 = arith.constant 0 : i32
    return %c0_i32, %c0_i32_0, %c0_i32_1 : i32, i32, i32
  }
  func.func @transform_10(%arg0: i32) -> (i32, i32, i32) {
    %c0_i32 = arith.constant 0 : i32
    %c0_i32_0 = arith.constant 0 : i32
    %c0_i32_1 = arith.constant 0 : i32
    %c0_i32_2 = arith.constant 0 : i32
    return %c0_i32, %c0_i32_0, %c0_i32_1 : i32, i32, i32
  }
  func.func @transform_11(%arg0: i32) -> (i32, i32, i32) {
    %c0_i32 = arith.constant 0 : i32
    %c0_i32_0 = arith.constant 0 : i32
    %c0_i32_1 = arith.constant 0 : i32
    return %arg0, %c0_i32, %c0_i32_0 : i32, i32, i32
  }
}

</mosaic_0001>

<llo_original>
// kernel: scene_context_encoder_forward.1
$region0: #{scene_context_encoder_forward.1}
  #allocation0 [shape = 'u32[]', space=smem, size = 0x4, offset = 0x4, fixed_abs, tag = 'smem constant byte address 0x4 - core index']
  #allocation1 [shape = 'u32[72,128]{1,0:T(1,128)}', space=vmem, size = 0x9000, scoped, tag = 'internal scratch']
  %s0 = inlined_call_operand.vmem [shape: f32[2,64,16], index: 0, kind: input, shape index: {}]
  %s1 = inlined_call_operand.vmem [shape: f32[2,64,1], index: 1, kind: input, shape index: {}]
  %s2 = inlined_call_operand.vmem [shape: f32[2,8,1], index: 2, kind: input, shape index: {}]
  %s3 = inlined_call_operand.vmem [shape: f32[2,64,16], index: 3, kind: input, shape index: {}]
  %s4 = inlined_call_operand.vmem [shape: f32[2,72,32], index: 4, kind: input, shape index: {}]
  %s5 = inlined_call_operand.vmem [shape: f32[2,1,72], index: 5, kind: input, shape index: {}]
  %s6 = inlined_call_operand.vmem [shape: f32[2,8,2], index: 6, kind: input, shape index: {}]
  %s7 = inlined_call_operand.vmem [shape: f32[936,32], index: 7, kind: input, shape index: {}]
  %s8 = inlined_call_operand.vmem [shape: f32[32,32], index: 8, kind: input, shape index: {}]
  %s9 = inlined_call_operand.vmem [shape: f32[1,33,64], index: 9, kind: input, shape index: {}]
  %s10 = inlined_call_operand.vmem [shape: f32[1,33,128], index: 10, kind: input, shape index: {}]
  %s11 = inlined_call_operand.vmem [shape: f32[2,8,64], index: 11, kind: output, shape index: {}]
  %s12 = sld [smem:[#allocation0]]
  $region77: #{scene_context_encoder_forward.1} parent=0
    _
  %s14 = ssub.s32 1, %s12
  %s15 = scalar_select 0, %s14, %s12
  loop: start=0, step=1, limit=4
  $region2: #{scene_context_encoder_forward.1} parent=0 // loop_pre_header
    _
  $region3: #{scene_context_encoder_forward.1} parent=0 // loop_header
    %s17 = sphi 0, %s21
    %p18 = scmp.ge.s32.totalorder %s17, 4
    %s27 = sphi 0, %s29
    %s30 = sphi 0, %s27
    %s31 = sphi 0, %s30
    %s47 = sphi 0, %s31
    %s53 = sphi 0, %s55
    %s56 = sphi 0, %s53
    %s57 = sphi 0, %s56
    %s73 = sphi 0, %s57
    %s79 = sphi 0, %s81
    %s82 = sphi 0, %s79
    %s83 = sphi 0, %s82
    %s99 = sphi 0, %s83
    %s105 = sphi 0, %s107
    %s108 = sphi 0, %s105
    %s109 = sphi 0, %s108
    %s125 = sphi 0, %s109
    %s131 = sphi 0, %s133
    %s134 = sphi 0, %s131
    %s135 = sphi 0, %s134
    %s151 = sphi 0, %s135
    %s157 = sphi 0, %s159
    %s160 = sphi 0, %s157
    %s161 = sphi 0, %s160
    %s177 = sphi 0, %s161
    %s183 = sphi 0, %s185
    %s186 = sphi 0, %s183
    %s187 = sphi 0, %s186
    %s203 = sphi 0, %s187
    %s207 = sphi 0, %s207
    %s209 = sphi 0, %s207
    %s210 = sphi 0, %s209
    %s224 = sphi 0, %s210
    %s228 = sphi 0, %s228
    %s230 = sphi 0, %s228
    %s231 = sphi 0, %s230
    %s245 = sphi 0, %s231
    %s249 = sphi 0, %s249
    %s251 = sphi 0, %s249
    %s252 = sphi 0, %s251
    %s266 = sphi 0, %s252
    %s270 = sphi 0, %s270
    %s272 = sphi 0, %s270
    %s273 = sphi 0, %s272
    %s287 = sphi 0, %s273
    %s293 = sphi 0, %s295
    %s296 = sphi 0, %s293
    %s297 = sphi 0, %s296
    %s313 = sphi 0, %s297
  $region4: #{scene_context_encoder_forward.1} parent=0 // loop_header_branch
    %20 = sbr.rel (%p18) target = $region8
  $region5: #{scene_context_encoder_forward.1} parent=0 // loop_body
    %s22 = ssub.s32 %s17, 1
    %s23 = ssub.s32 %s17, 2
    %s24 = sadd.s32 %s17, 1
    %s25 = ssub.s32 %s17, %s24
    %p26 = scmp.eq.s32.totalorder %s25, 0
    %s28 = sadd.s32 %s27, 1
    %s29 = scalar_select %p26, %s27, %s28
    %p32 = pneg %p26
    %p33 = scmp.eq.s32.totalorder %s17, 1
    %p34 = por %p32, %p33
    %p35 = scmp.ne.s32.totalorder %s27, %s30
    %p36 = scmp.eq.s32.totalorder %s17, 0
    %p37 = por %p35, %p36
    %p38 = scmp.ne.s32.totalorder %s27, %s30
    %p39 = scmp.eq.s32.totalorder %s22, 1
    %p40 = por %p38, %p39
    %p41 = scmp.ne.s32.totalorder %s30, %s31
    %p42 = scmp.eq.s32.totalorder %s22, 0
    %p43 = por %p41, %p42
    %p44 = scmp.ne.s32.totalorder %s30, %s31
    %p45 = scmp.eq.s32.totalorder %s23, 1
    %p46 = por %p44, %p45
    %p48 = scmp.ne.s32.totalorder %s31, %s47
    %p49 = scmp.eq.s32.totalorder %s23, 0
    %p50 = por %p48, %p49
    %s51 = ssub.s32 %s17, %s24
    %p52 = scmp.eq.s32.totalorder %s51, 0
    %s54 = sadd.s32 %s53, 1
    %s55 = scalar_select %p52, %s53, %s54
    %p58 = pneg %p52
    %p59 = scmp.eq.s32.totalorder %s17, 1
    %p60 = por %p58, %p59
    %p61 = scmp.ne.s32.totalorder %s53, %s56
    %p62 = scmp.eq.s32.totalorder %s17, 0
    %p63 = por %p61, %p62
    %p64 = scmp.ne.s32.totalorder %s53, %s56
    %p65 = scmp.eq.s32.totalorder %s22, 1
    %p66 = por %p64, %p65
    %p67 = scmp.ne.s32.totalorder %s56, %s57
    %p68 = scmp.eq.s32.totalorder %s22, 0
    %p69 = por %p67, %p68
    %p70 = scmp.ne.s32.totalorder %s56, %s57
    %p71 = scmp.eq.s32.totalorder %s23, 1
    %p72 = por %p70, %p71
    %p74 = scmp.ne.s32.totalorder %s57, %s73
    %p75 = scmp.eq.s32.totalorder %s23, 0
    %p76 = por %p74, %p75
    %s77 = ssub.s32 %s17, %s24
    %p78 = scmp.eq.s32.totalorder %s77, 0
    %s80 = sadd.s32 %s79, 1
    %s81 = scalar_select %p78, %s79, %s80
    %p84 = pneg %p78
    %p85 = scmp.eq.s32.totalorder %s17, 1
    %p86 = por %p84, %p85
    %p87 = scmp.ne.s32.totalorder %s79, %s82
    %p88 = scmp.eq.s32.totalorder %s17, 0
    %p89 = por %p87, %p88
    %p90 = scmp.ne.s32.totalorder %s79, %s82
    %p91 = scmp.eq.s32.totalorder %s22, 1
    %p92 = por %p90, %p91
    %p93 = scmp.ne.s32.totalorder %s82, %s83
    %p94 = scmp.eq.s32.totalorder %s22, 0
    %p95 = por %p93, %p94
    %p96 = scmp.ne.s32.totalorder %s82, %s83
    %p97 = scmp.eq.s32.totalorder %s23, 1
    %p98 = por %p96, %p97
    %p100 = scmp.ne.s32.totalorder %s83, %s99
    %p101 = scmp.eq.s32.totalorder %s23, 0
    %p102 = por %p100, %p101
    %s103 = ssub.s32 %s17, %s24
    %p104 = scmp.eq.s32.totalorder %s103, 0
    %s106 = sadd.s32 %s105, 1
    %s107 = scalar_select %p104, %s105, %s106
    %p110 = pneg %p104
    %p111 = scmp.eq.s32.totalorder %s17, 1
    %p112 = por %p110, %p111
    %p113 = scmp.ne.s32.totalorder %s105, %s108
    %p114 = scmp.eq.s32.totalorder %s17, 0
    %p115 = por %p113, %p114
    %p116 = scmp.ne.s32.totalorder %s105, %s108
    %p117 = scmp.eq.s32.totalorder %s22, 1
    %p118 = por %p116, %p117
    %p119 = scmp.ne.s32.totalorder %s108, %s109
    %p120 = scmp.eq.s32.totalorder %s22, 0
    %p121 = por %p119, %p120
    %p122 = scmp.ne.s32.totalorder %s108, %s109
    %p123 = scmp.eq.s32.totalorder %s23, 1
    %p124 = por %p122, %p123
    %p126 = scmp.ne.s32.totalorder %s109, %s125
    %p127 = scmp.eq.s32.totalorder %s23, 0
    %p128 = por %p126, %p127
    %s129 = ssub.s32 %s17, %s24
    %p130 = scmp.eq.s32.totalorder %s129, 0
    %s132 = sadd.s32 %s131, 1
    %s133 = scalar_select %p130, %s131, %s132
    %p136 = pneg %p130
    %p137 = scmp.eq.s32.totalorder %s17, 1
    %p138 = por %p136, %p137
    %p139 = scmp.ne.s32.totalorder %s131, %s134
    %p140 = scmp.eq.s32.totalorder %s17, 0
    %p141 = por %p139, %p140
    %p142 = scmp.ne.s32.totalorder %s131, %s134
    %p143 = scmp.eq.s32.totalorder %s22, 1
    %p144 = por %p142, %p143
    %p145 = scmp.ne.s32.totalorder %s134, %s135
    %p146 = scmp.eq.s32.totalorder %s22, 0
    %p147 = por %p145, %p146
    %p148 = scmp.ne.s32.totalorder %s134, %s135
    %p149 = scmp.eq.s32.totalorder %s23, 1
    %p150 = por %p148, %p149
    %p152 = scmp.ne.s32.totalorder %s135, %s151
    %p153 = scmp.eq.s32.totalorder %s23, 0
    %p154 = por %p152, %p153
    %s155 = ssub.s32 %s17, %s24
    %p156 = scmp.eq.s32.totalorder %s155, 0
    %s158 = sadd.s32 %s157, 1
    %s159 = scalar_select %p156, %s157, %s158
    %p162 = pneg %p156
    %p163 = scmp.eq.s32.totalorder %s17, 1
    %p164 = por %p162, %p163
    %p165 = scmp.ne.s32.totalorder %s157, %s160
    %p166 = scmp.eq.s32.totalorder %s17, 0
    %p167 = por %p165, %p166
    %p168 = scmp.ne.s32.totalorder %s157, %s160
    %p169 = scmp.eq.s32.totalorder %s22, 1
    %p170 = por %p168, %p169
    %p171 = scmp.ne.s32.totalorder %s160, %s161
    %p172 = scmp.eq.s32.totalorder %s22, 0
    %p173 = por %p171, %p172
    %p174 = scmp.ne.s32.totalorder %s160, %s161
    %p175 = scmp.eq.s32.totalorder %s23, 1
    %p176 = por %p174, %p175
    %p178 = scmp.ne.s32.totalorder %s161, %s177
    %p179 = scmp.eq.s32.totalorder %s23, 0
    %p180 = por %p178, %p179
    %s181 = ssub.s32 %s17, %s24
    %p182 = scmp.eq.s32.totalorder %s181, 0
    %s184 = sadd.s32 %s183, 1
    %s185 = scalar_select %p182, %s183, %s184
    %p188 = pneg %p182
    %p189 = scmp.eq.s32.totalorder %s17, 1
    %p190 = por %p188, %p189
    %p191 = scmp.ne.s32.totalorder %s183, %s186
    %p192 = scmp.eq.s32.totalorder %s17, 0
    %p193 = por %p191, %p192
    %p194 = scmp.ne.s32.totalorder %s183, %s186
    %p195 = scmp.eq.s32.totalorder %s22, 1
    %p196 = por %p194, %p195
    %p197 = scmp.ne.s32.totalorder %s186, %s187
    %p198 = scmp.eq.s32.totalorder %s22, 0
    %p199 = por %p197, %p198
    %p200 = scmp.ne.s32.totalorder %s186, %s187
    %p201 = scmp.eq.s32.totalorder %s23, 1
    %p202 = por %p200, %p201
    %p204 = scmp.ne.s32.totalorder %s187, %s203
    %p205 = scmp.eq.s32.totalorder %s23, 0
    %p206 = por %p204, %p205
    %s208 = sadd.s32 %s207, 1
    %p211 = scmp.eq.s32.totalorder %s17, 1
    %p212 = scmp.ne.s32.totalorder %s207, %s209
    %p213 = scmp.eq.s32.totalorder %s17, 0
    %p214 = por %p212, %p213
    %p215 = scmp.ne.s32.totalorder %s207, %s209
    %p216 = scmp.eq.s32.totalorder %s22, 1
    %p217 = por %p215, %p216
    %p218 = scmp.ne.s32.totalorder %s209, %s210
    %p219 = scmp.eq.s32.totalorder %s22, 0
    %p220 = por %p218, %p219
    %p221 = scmp.ne.s32.totalorder %s209, %s210
    %p222 = scmp.eq.s32.totalorder %s23, 1
    %p223 = por %p221, %p222
    %p225 = scmp.ne.s32.totalorder %s210, %s224
    %p226 = scmp.eq.s32.totalorder %s23, 0
    %p227 = por %p225, %p226
    %s229 = sadd.s32 %s228, 1
    %p232 = scmp.eq.s32.totalorder %s17, 1
    %p233 = scmp.ne.s32.totalorder %s228, %s230
    %p234 = scmp.eq.s32.totalorder %s17, 0
    %p235 = por %p233, %p234
    %p236 = scmp.ne.s32.totalorder %s228, %s230
    %p237 = scmp.eq.s32.totalorder %s22, 1
    %p238 = por %p236, %p237
    %p239 = scmp.ne.s32.totalorder %s230, %s231
    %p240 = scmp.eq.s32.totalorder %s22, 0
    %p241 = por %p239, %p240
    %p242 = scmp.ne.s32.totalorder %s230, %s231
    %p243 = scmp.eq.s32.totalorder %s23, 1
    %p244 = por %p242, %p243
    %p246 = scmp.ne.s32.totalorder %s231, %s245
    %p247 = scmp.eq.s32.totalorder %s23, 0
    %p248 = por %p246, %p247
    %s250 = sadd.s32 %s249, 1
    %p253 = scmp.eq.s32.totalorder %s17, 1
    %p254 = scmp.ne.s32.totalorder %s249, %s251
    %p255 = scmp.eq.s32.totalorder %s17, 0
    %p256 = por %p254, %p255
    %p257 = scmp.ne.s32.totalorder %s249, %s251
    %p258 = scmp.eq.s32.totalorder %s22, 1
    %p259 = por %p257, %p258
    %p260 = scmp.ne.s32.totalorder %s251, %s252
    %p261 = scmp.eq.s32.totalorder %s22, 0
    %p262 = por %p260, %p261
    %p263 = scmp.ne.s32.totalorder %s251, %s252
    %p264 = scmp.eq.s32.totalorder %s23, 1
    %p265 = por %p263, %p264
    %p267 = scmp.ne.s32.totalorder %s252, %s266
    %p268 = scmp.eq.s32.totalorder %s23, 0
    %p269 = por %p267, %p268
    %s271 = sadd.s32 %s270, 1
    %p274 = scmp.eq.s32.totalorder %s17, 1
    %p275 = scmp.ne.s32.totalorder %s270, %s272
    %p276 = scmp.eq.s32.totalorder %s17, 0
    %p277 = por %p275, %p276
    %p278 = scmp.ne.s32.totalorder %s270, %s272
    %p279 = scmp.eq.s32.totalorder %s22, 1
    %p280 = por %p278, %p279
    %p281 = scmp.ne.s32.totalorder %s272, %s273
    %p282 = scmp.eq.s32.totalorder %s22, 0
    %p283 = por %p281, %p282
    %p284 = scmp.ne.s32.totalorder %s272, %s273
    %p285 = scmp.eq.s32.totalorder %s23, 1
    %p286 = por %p284, %p285
    %p288 = scmp.ne.s32.totalorder %s273, %s287
    %p289 = scmp.eq.s32.totalorder %s23, 0
    %p290 = por %p288, %p289
    %s291 = ssub.s32 %s17, %s24
    %p292 = scmp.eq.s32.totalorder %s291, 0
    %s294 = sadd.s32 %s293, 1
    %s295 = scalar_select %p292, %s293, %s294
    %p298 = pneg %p292
    %p299 = scmp.eq.s32.totalorder %s17, 1
    %p300 = por %p298, %p299
    %p301 = scmp.ne.s32.totalorder %s293, %s296
    %p302 = scmp.eq.s32.totalorder %s17, 0
    %p303 = por %p301, %p302
    %p304 = scmp.ne.s32.totalorder %s293, %s296
    %p305 = scmp.eq.s32.totalorder %s22, 1
    %p306 = por %p304, %p305
    %p307 = scmp.ne.s32.totalorder %s296, %s297
    %p308 = scmp.eq.s32.totalorder %s22, 0
    %p309 = por %p307, %p308
    %p310 = scmp.ne.s32.totalorder %s296, %s297
    %p311 = scmp.eq.s32.totalorder %s23, 1
    %p312 = por %p310, %p311
    %p314 = scmp.ne.s32.totalorder %s297, %s313
    %p315 = scmp.eq.s32.totalorder %s23, 0
    %p316 = por %p314, %p315
    %p317 = scmp.le.s32.totalorder 1, %s17
    %p318 = scmp.lt.s32.totalorder %s17, 3
    %p319 = pnand %p317, %p318
    %p320 = pneg %p319
    // Predicated region
    $region9: #{scene_context_encoder_forward.1} parent=5 // pred_check
      _
    $region10: #{scene_context_encoder_forward.1} parent=5 // pred_check_branch
      %322 = sbr.rel (%p319) target = $region12
    $region11: #{scene_context_encoder_forward.1} parent=5 // pred_region
      %s323 = ssub.s32 %s17, 1
      // Predicated region
      $region13: #{scene_context_encoder_forward.1} parent=11 // pred_check
        %p324 = pneg %p220
      $region14: #{scene_context_encoder_forward.1} parent=11 // pred_check_branch
        %326 = sbr.rel (%p324) target = $region16
      $region15: #{scene_context_encoder_forward.1} parent=11 // pred_region
        _
      $region16: #{scene_context_encoder_forward.1} parent=11 // pred_fallthru
        _
      // Predicated region
      $region17: #{scene_context_encoder_forward.1} parent=11 // pred_check
        %p327 = pneg %p241
      $region18: #{scene_context_encoder_forward.1} parent=11 // pred_check_branch
        %329 = sbr.rel (%p327) target = $region20
      $region19: #{scene_context_encoder_forward.1} parent=11 // pred_region
        _
      $region20: #{scene_context_encoder_forward.1} parent=11 // pred_fallthru
        _
      // Predicated region
      $region21: #{scene_context_encoder_forward.1} parent=11 // pred_check
        %p330 = pneg %p262
      $region22: #{scene_context_encoder_forward.1} parent=11 // pred_check_branch
        %332 = sbr.rel (%p330) target = $region24
      $region23: #{scene_context_encoder_forward.1} parent=11 // pred_region
        _
      $region24: #{scene_context_encoder_forward.1} parent=11 // pred_fallthru
        _
      // Predicated region
      $region25: #{scene_context_encoder_forward.1} parent=11 // pred_check
        %p333 = pneg %p283
      $region26: #{scene_context_encoder_forward.1} parent=11 // pred_check_branch
        %335 = sbr.rel (%p333) target = $region28
      $region27: #{scene_context_encoder_forward.1} parent=11 // pred_region
        _
      $region28: #{scene_context_encoder_forward.1} parent=11 // pred_fallthru
        _
    $region12: #{scene_context_encoder_forward.1} parent=5 // pred_fallthru
      _
    %p336 = scmp.lt.s32.totalorder %s17, 2
    // Predicated region
    $region29: #{scene_context_encoder_forward.1} parent=5 // pred_check
      %p337 = pneg %p336
    $region30: #{scene_context_encoder_forward.1} parent=5 // pred_check_branch
      %339 = sbr.rel (%p337) target = $region32
    $region31: #{scene_context_encoder_forward.1} parent=5 // pred_region
      // Predicated region
      $region33: #{scene_context_encoder_forward.1} parent=31 // pred_check
        %p340 = pneg %p37
      $region34: #{scene_context_encoder_forward.1} parent=31 // pred_check_branch
        %342 = sbr.rel (%p340) target = $region36
      $region35: #{scene_context_encoder_forward.1} parent=31 // pred_region
        %p343 = scmp.lt.s32.totalorder %s17, 1
        %s344 = scalar_select %p343, %s17, 1
        %s345 = smul.addr %s344, 8
        %s346 = smul.addr %s345, 8
        %s347 = scalar_lea.vmem %s0, %s346
      $region36: #{scene_context_encoder_forward.1} parent=31 // pred_fallthru
        _
      // Predicated region
      $region37: #{scene_context_encoder_forward.1} parent=31 // pred_check
        %p348 = pneg %p63
      $region38: #{scene_context_encoder_forward.1} parent=31 // pred_check_branch
        %350 = sbr.rel (%p348) target = $region40
      $region39: #{scene_context_encoder_forward.1} parent=31 // pred_region
        %p351 = scmp.lt.s32.totalorder %s17, 1
        %s352 = scalar_select %p351, %s17, 1
        %s353 = smul.addr %s352, 8
        %s354 = smul.addr %s353, 8
        %s355 = scalar_lea.vmem %s1, %s354
      $region40: #{scene_context_encoder_forward.1} parent=31 // pred_fallthru
        _
      // Predicated region
      $region41: #{scene_context_encoder_forward.1} parent=31 // pred_check
        %p356 = pneg %p89
      $region42: #{scene_context_encoder_forward.1} parent=31 // pred_check_branch
        %358 = sbr.rel (%p356) target = $region44
      $region43: #{scene_context_encoder_forward.1} parent=31 // pred_region
        %p359 = scmp.lt.s32.totalorder %s17, 1
        %s360 = scalar_select %p359, %s17, 1
        %s361 = smul.addr %s360, 8
        %s362 = scalar_lea.vmem %s2, %s361
      $region44: #{scene_context_encoder_forward.1} parent=31 // pred_fallthru
        _
      // Predicated region
      $region45: #{scene_context_encoder_forward.1} parent=31 // pred_check
        %p363 = pneg %p115
      $region46: #{scene_context_encoder_forward.1} parent=31 // pred_check_branch
        %365 = sbr.rel (%p363) target = $region48
      $region47: #{scene_context_encoder_forward.1} parent=31 // pred_region
        %p366 = scmp.lt.s32.totalorder %s17, 1
        %s367 = scalar_select %p366, %s17, 1
        %s368 = smul.addr %s367, 8
        %s369 = smul.addr %s368, 8
        %s370 = scalar_lea.vmem %s3, %s369
      $region48: #{scene_context_encoder_forward.1} parent=31 // pred_fallthru
        _
      // Predicated region
      $region49: #{scene_context_encoder_forward.1} parent=31 // pred_check
        %p371 = pneg %p141
      $region50: #{scene_context_encoder_forward.1} parent=31 // pred_check_branch
        %373 = sbr.rel (%p371) target = $region52
      $region51: #{scene_context_encoder_forward.1} parent=31 // pred_region
        %p374 = scmp.lt.s32.totalorder %s17, 1
        %s375 = scalar_select %p374, %s17, 1
        %s376 = smul.addr %s375, 9
        %s377 = smul.addr %s376, 8
        %s378 = scalar_lea.vmem %s4, %s377
      $region52: #{scene_context_encoder_forward.1} parent=31 // pred_fallthru
        _
      // Predicated region
      $region53: #{scene_context_encoder_forward.1} parent=31 // pred_check
        %p379 = pneg %p167
      $region54: #{scene_context_encoder_forward.1} parent=31 // pred_check_branch
        %381 = sbr.rel (%p379) target = $region56
      $region55: #{scene_context_encoder_forward.1} parent=31 // pred_region
        %p382 = scmp.lt.s32.totalorder %s17, 1
        %s383 = scalar_select %p382, %s17, 1
        %s384 = scalar_lea.vmem %s5, %s383
      $region56: #{scene_context_encoder_forward.1} parent=31 // pred_fallthru
        _
      // Predicated region
      $region57: #{scene_context_encoder_forward.1} parent=31 // pred_check
        %p385 = pneg %p193
      $region58: #{scene_context_encoder_forward.1} parent=31 // pred_check_branch
        %387 = sbr.rel (%p385) target = $region60
      $region59: #{scene_context_encoder_forward.1} parent=31 // pred_region
        %p388 = scmp.lt.s32.totalorder %s17, 1
        %s389 = scalar_select %p388, %s17, 1
        %s390 = smul.addr %s389, 8
        %s391 = scalar_lea.vmem %s6, %s390
      $region60: #{scene_context_encoder_forward.1} parent=31 // pred_fallthru
        _
    $region32: #{scene_context_encoder_forward.1} parent=5 // pred_fallthru
      _
    %p392 = scmp.le.s32.totalorder 1, %s17
    %p393 = scmp.lt.s32.totalorder %s17, 3
    %p394 = pnand %p392, %p393
    %p395 = pneg %p394
    // Predicated region
    $region61: #{scene_context_encoder_forward.1} parent=5 // pred_check
      _
    $region62: #{scene_context_encoder_forward.1} parent=5 // pred_check_branch
      %397 = sbr.rel (%p394) target = $region64
    $region63: #{scene_context_encoder_forward.1} parent=5 // pred_region
      %s398 = ssub.s32 %s17, 1
      %p399 = scmp.lt.s32.totalorder %s22, 1
      %s400 = scalar_select %p399, %s22, 1
      %s401 = smul.addr %s400, 8
      %s402 = smul.addr %s401, 8
      %s403 = scalar_lea.vmem %s0, %s402
      %p404 = pneg %p43
      %p405 = pneg %p40
      %p406 = scmp.lt.s32.totalorder %s22, 1
      %s407 = scalar_select %p406, %s22, 1
      %s408 = smul.addr %s407, 8
      %s409 = smul.addr %s408, 8
      %s410 = scalar_lea.vmem %s1, %s409
      %p411 = pneg %p69
      %p412 = pneg %p66
      %p413 = scmp.lt.s32.totalorder %s22, 1
      %s414 = scalar_select %p413, %s22, 1
      %s415 = smul.addr %s414, 8
      %s416 = scalar_lea.vmem %s2, %s415
      %p417 = pneg %p95
      %p418 = pneg %p92
      %p419 = scmp.lt.s32.totalorder %s22, 1
      %s420 = scalar_select %p419, %s22, 1
      %s421 = smul.addr %s420, 8
      %s422 = smul.addr %s421, 8
      %s423 = scalar_lea.vmem %s3, %s422
      %p424 = pneg %p121
      %p425 = pneg %p118
      %p426 = scmp.lt.s32.totalorder %s22, 1
      %s427 = scalar_select %p426, %s22, 1
      %s428 = smul.addr %s427, 9
      %s429 = smul.addr %s428, 8
      %s430 = scalar_lea.vmem %s4, %s429
      %p431 = pneg %p147
      %p432 = pneg %p144
      %p433 = scmp.lt.s32.totalorder %s22, 1
      %s434 = scalar_select %p433, %s22, 1
      %s435 = scalar_lea.vmem %s5, %s434
      %p436 = pneg %p173
      %p437 = pneg %p170
      %p438 = scmp.lt.s32.totalorder %s22, 1
      %s439 = scalar_select %p438, %s22, 1
      %s440 = smul.addr %s439, 8
      %s441 = scalar_lea.vmem %s6, %s440
      %p442 = pneg %p199
      %p443 = pneg %p196
      %p444 = pneg %p220
      %p445 = pneg %p217
      %p446 = pneg %p241
      %p447 = pneg %p238
      %p448 = pneg %p262
      %p449 = pneg %p259
      %p450 = pneg %p283
      %p451 = pneg %p280
      %p452 = pneg %p309
      %p453 = pneg %p306
      %p454 = scmp.lt.s32.totalorder %s22, 1
      %s455 = scalar_select %p454, %s22, 1
      %s456 = smul.addr %s455, 8
      %s457 = scalar_lea.vmem %s11, %s456
      %p458 = scmp.lt.s32.totalorder %s22, 1
      %s459 = scalar_select %p458, %s22, 1
      %s460 = smul.addr %s459, 8
      %s461 = smul.addr %s460, 8
      %s462 = scalar_lea.vmem %s0, %s461
      %p463 = scmp.lt.s32.totalorder %s22, 1
      %s464 = scalar_select %p463, %s22, 1
      %s465 = smul.addr %s464, 8
      %s466 = smul.addr %s465, 8
      %s467 = scalar_lea.vmem %s1, %s466
      %p468 = scmp.lt.s32.totalorder %s22, 1
      %s469 = scalar_select %p468, %s22, 1
      %s470 = smul.addr %s469, 8
      %s471 = scalar_lea.vmem %s2, %s470
      %p472 = scmp.lt.s32.totalorder %s22, 1
      %s473 = scalar_select %p472, %s22, 1
      %s474 = smul.addr %s473, 8
      %s475 = smul.addr %s474, 8
      %s476 = scalar_lea.vmem %s3, %s475
      %p477 = scmp.lt.s32.totalorder %s22, 1
      %s478 = scalar_select %p477, %s22, 1
      %s479 = smul.addr %s478, 9
      %s480 = smul.addr %s479, 8
      %s481 = scalar_lea.vmem %s4, %s480
      %p482 = scmp.lt.s32.totalorder %s22, 1
      %s483 = scalar_select %p482, %s22, 1
      %s484 = scalar_lea.vmem %s5, %s483
      %p485 = scmp.lt.s32.totalorder %s22, 1
      %s486 = scalar_select %p485, %s22, 1
      %s487 = smul.addr %s486, 8
      %s488 = scalar_lea.vmem %s6, %s487
      %p489 = scmp.lt.s32.totalorder %s22, 1
      %s490 = scalar_select %p489, %s22, 1
      %s491 = smul.addr %s490, 8
      %s492 = scalar_lea.vmem %s11, %s491
      %v493 = vld [vmem:[%s462] sm:$0xff]
      %v494 = vld [vmem:[%s462 + $0x8] sm:$0xff]
      %v495 = vld [vmem:[%s462 + $0x10] sm:$0xff]
      %v496 = vld [vmem:[%s462 + $0x18] sm:$0xff]
      %v497 = vld [vmem:[%s462 + $0x20] sm:$0xff]
      %v498 = vld [vmem:[%s462 + $0x28] sm:$0xff]
      %v499 = vld [vmem:[%s462 + $0x30] sm:$0xff]
      %v500 = vld [vmem:[%s462 + $0x38] sm:$0xff]
      %v501 = vld [vmem:[%s467] sm:$0xff]
      %v502 = vld [vmem:[%s467 + $0x8] sm:$0xff]
      %v503 = vld [vmem:[%s467 + $0x10] sm:$0xff]
      %v504 = vld [vmem:[%s467 + $0x18] sm:$0xff]
      %v505 = vld [vmem:[%s467 + $0x20] sm:$0xff]
      %v506 = vld [vmem:[%s467 + $0x28] sm:$0xff]
      %v507 = vld [vmem:[%s467 + $0x30] sm:$0xff]
      %v508 = vld [vmem:[%s467 + $0x38] sm:$0xff]
      %v509 = vld [vmem:[%s7] sm:$0xff]
      %v510 = vld [vmem:[%s7 + $0x8] sm:$0xff]
      %v511 = vld [vmem:[%s8] sm:$0x1]
      %v512 = vperm.slane %v511, 0
      %vm513 = vcmask 130048
      %v515 = vsel %vm513, %v493, 0
      %v518 = vsel %vm513, %v494, 0
      %v521 = vsel %vm513, %v495, 0
      %v524 = vsel %vm513, %v496, 0
      %v527 = vsel %vm513, %v497, 0
      %v530 = vsel %vm513, %v498, 0
      %v533 = vsel %vm513, %v499, 0
      %v536 = vsel %vm513, %v500, 0
      %538 = vmatpush.msra.mxu0 0.0
      %539 = vmatpush.msra.mxu0 0.0
      %540 = vmatpush.msra.mxu0 0.0
      %541 = vmatpush.msra.mxu0 0.0
      %542 = vmatpush.msra.mxu0 0.0
      %543 = vmatpush.msra.mxu0 0.0
      %544 = vmatpush.msra.mxu0 0.0
      %545 = vmatpush.msra.mxu0 0.0
      %546 = vmatpush.msra.mxu0 0.0
      %547 = vmatpush.msra.mxu0 0.0
      %548 = vmatpush.msra.mxu0 0.0
      %549 = vmatpush.msra.mxu0 0.0
      %550 = vmatpush.msra.mxu0 0.0
      %551 = vmatpush.msra.mxu0 0.0
      %552 = vmatpush.msra.mxu0 %v510
      %553 = vmatpush.msra.mxu0 %v509
      %554 = vmatmul.f32.gmra.mxu0 %v515
      %v555 = vpop.f32.mrf.mxu0
      %v556 = vadd.f32 %v512, %v555
      %557 = vmatmul.f32.gmra.mxu0 %v518
      %v558 = vpop.f32.mrf.mxu0
      %v559 = vadd.f32 %v512, %v558
      %560 = vmatmul.f32.gmra.mxu0 %v521
      %v561 = vpop.f32.mrf.mxu0
      %v562 = vadd.f32 %v512, %v561
      %563 = vmatmul.f32.gmra.mxu0 %v524
      %v564 = vpop.f32.mrf.mxu0
      %v565 = vadd.f32 %v512, %v564
      %566 = vmatmul.f32.gmra.mxu0 %v527
      %v567 = vpop.f32.mrf.mxu0
      %v568 = vadd.f32 %v512, %v567
      %569 = vmatmul.f32.gmra.mxu0 %v530
      %v570 = vpop.f32.mrf.mxu0
      %v571 = vadd.f32 %v512, %v570
      %572 = vmatmul.f32.gmra.mxu0 %v533
      %v573 = vpop.f32.mrf.mxu0
      %v574 = vadd.f32 %v512, %v573
      %575 = vmatmul.f32.gmra.mxu0 %v536
      %v576 = vpop.f32.mrf.mxu0
      %v577 = vadd.f32 %v512, %v576
      %578 = vdwg.mxu0
      %v579 = vmax.f32 %v556, 0.0
      %v580 = vmax.f32 %v559, 0.0
      %v581 = vmax.f32 %v562, 0.0
      %v582 = vmax.f32 %v565, 0.0
      %v583 = vmax.f32 %v568, 0.0
      %v584 = vmax.f32 %v571, 0.0
      %v585 = vmax.f32 %v574, 0.0
      %v586 = vmax.f32 %v577, 0.0
      %588 = vset.pattern.permute.xlu0 0
      %589 = vperm.xlu0 %588, %v501
      %v590 = vpop.permute.xlu0 %589
      %593 = vset.pattern.permute.xlu0 0
      %594 = vperm.xlu0 %593, %v502
      %v595 = vpop.permute.xlu0 %594
      %598 = vset.pattern.permute.xlu0 0
      %599 = vperm.xlu0 %598, %v503
      %v600 = vpop.permute.xlu0 %599
      %603 = vset.pattern.permute.xlu0 0
      %604 = vperm.xlu0 %603, %v504
      %v605 = vpop.permute.xlu0 %604
      %608 = vset.pattern.permute.xlu0 0
      %609 = vperm.xlu0 %608, %v505
      %v610 = vpop.permute.xlu0 %609
      %613 = vset.pattern.permute.xlu0 0
      %614 = vperm.xlu0 %613, %v506
      %v615 = vpop.permute.xlu0 %614
      %618 = vset.pattern.permute.xlu0 0
      %619 = vperm.xlu0 %618, %v507
      %v620 = vpop.permute.xlu0 %619
      %623 = vset.pattern.permute.xlu0 0
      %624 = vperm.xlu0 %623, %v508
      %v625 = vpop.permute.xlu0 %624
      %v627 = vmul.f32 %v579, %v590
      %v628 = vmul.f32 %v580, %v595
      %v629 = vmul.f32 %v581, %v600
      %v630 = vmul.f32 %v582, %v605
      %v631 = vmul.f32 %v583, %v610
      %v632 = vmul.f32 %v584, %v615
      %v633 = vmul.f32 %v585, %v620
      %v634 = vmul.f32 %v586, %v625
      %vm635 = vcmask 261120
      %v636 = vsel %vm635, %v627, -inf
      %v637 = vrot.slane %v636, 4
      %v638 = vmax.f32 %v636, %v637
      %v639 = vrot.slane %v638, 2
      %v640 = vmax.f32 %v638, %v639
      %v641 = vrot.slane %v640, 1
      %v642 = vmax.f32 %v640, %v641
      %v643 = vsel %vm635, %v628, -inf
      %v644 = vrot.slane %v643, 4
      %v645 = vmax.f32 %v643, %v644
      %v646 = vrot.slane %v645, 2
      %v647 = vmax.f32 %v645, %v646
      %v648 = vrot.slane %v647, 1
      %v649 = vmax.f32 %v647, %v648
      %v650 = vsel %vm635, %v629, -inf
      %v651 = vrot.slane %v650, 4
      %v652 = vmax.f32 %v650, %v651
      %v653 = vrot.slane %v652, 2
      %v654 = vmax.f32 %v652, %v653
      %v655 = vrot.slane %v654, 1
      %v656 = vmax.f32 %v654, %v655
      %v657 = vsel %vm635, %v630, -inf
      %v658 = vrot.slane %v657, 4
      %v659 = vmax.f32 %v657, %v658
      %v660 = vrot.slane %v659, 2
      %v661 = vmax.f32 %v659, %v660
      %v662 = vrot.slane %v661, 1
      %v663 = vmax.f32 %v661, %v662
      %v664 = vsel %vm635, %v631, -inf
      %v665 = vrot.slane %v664, 4
      %v666 = vmax.f32 %v664, %v665
      %v667 = vrot.slane %v666, 2
      %v668 = vmax.f32 %v666, %v667
      %v669 = vrot.slane %v668, 1
      %v670 = vmax.f32 %v668, %v669
      %v671 = vsel %vm635, %v632, -inf
      %v672 = vrot.slane %v671, 4
      %v673 = vmax.f32 %v671, %v672
      %v674 = vrot.slane %v673, 2
      %v675 = vmax.f32 %v673, %v674
      %v676 = vrot.slane %v675, 1
      %v677 = vmax.f32 %v675, %v676
      %v678 = vsel %vm635, %v633, -inf
      %v679 = vrot.slane %v678, 4
      %v680 = vmax.f32 %v678, %v679
      %v681 = vrot.slane %v680, 2
      %v682 = vmax.f32 %v680, %v681
      %v683 = vrot.slane %v682, 1
      %v684 = vmax.f32 %v682, %v683
      %v685 = vsel %vm635, %v634, -inf
      %v686 = vrot.slane %v685, 4
      %v687 = vmax.f32 %v685, %v686
      %v688 = vrot.slane %v687, 2
      %v689 = vmax.f32 %v687, %v688
      %v690 = vrot.slane %v689, 1
      %v691 = vmax.f32 %v689, %v690
      %v692 = vld [vmem:[%s7 + $0x30] sm:$0xff]
      %v693 = vld [vmem:[%s7 + $0x38] sm:$0xff]
      %v694 = vld [vmem:[%s7 + $0x40] sm:$0xff]
      %v695 = vld [vmem:[%s7 + $0x48] sm:$0xff]
      %v696 = vld [vmem:[%s8 + $0x1] sm:$0x1]
      %v697 = vperm.slane %v696, 0
      %vm706 = vcmask 1041409
      %v707 = vsel %vm706, %v649, %v642
      %vm708 = vcmask 1042434
      %v709 = vsel %vm708, %v656, %v707
      %vm710 = vcmask 1043459
      %v711 = vsel %vm710, %v663, %v709
      %vm712 = vcmask 1044484
      %v713 = vsel %vm712, %v670, %v711
      %vm714 = vcmask 1045509
      %v715 = vsel %vm714, %v677, %v713
      %vm716 = vcmask 1046534
      %v717 = vsel %vm716, %v684, %v715
      %vm718 = vcmask 1047559
      %v719 = vsel %vm718, %v691, %v717
      %v720 = vsel %vm635, %v719, 0
      %722 = vmatpush.msra.mxu0 0.0
      %723 = vmatpush.msra.mxu0 0.0
      %724 = vmatpush.msra.mxu0 0.0
      %725 = vmatpush.msra.mxu0 0.0
      %726 = vmatpush.msra.mxu0 0.0
      %727 = vmatpush.msra.mxu0 0.0
      %728 = vmatpush.msra.mxu0 0.0
      %729 = vmatpush.msra.mxu0 0.0
      %730 = vmatpush.msra.mxu0 0.0
      %731 = vmatpush.msra.mxu0 0.0
      %732 = vmatpush.msra.mxu0 0.0
      %733 = vmatpush.msra.mxu0 0.0
      %734 = vmatpush.msra.mxu0 %v695
      %735 = vmatpush.msra.mxu0 %v694
      %736 = vmatpush.msra.mxu0 %v693
      %737 = vmatpush.msra.mxu0 %v692
      %738 = vmatmul.f32.gmra.mxu0 %v720
      %v739 = vpop.f32.mrf.mxu0
      %v740 = vadd.f32 %v697, %v739
      %741 = vdwg.mxu0
      %v743 = vrot.slane %v740, 1
      %v744 = vrot.slane %v740, 2
      %v745 = vrot.slane %v740, 3
      %v746 = vrot.slane %v740, 4
      %v747 = vrot.slane %v740, 5
      %v748 = vrot.slane %v740, 6
      %v749 = vrot.slane %v740, 7
      %v750 = vperm.slane %v740, 0
      %v751 = vperm.slane %v743, 0
      %v752 = vperm.slane %v744, 0
      %v753 = vperm.slane %v745, 0
      %v754 = vperm.slane %v746, 0
      %v755 = vperm.slane %v747, 0
      %v756 = vperm.slane %v748, 0
      %v757 = vperm.slane %v749, 0
      %v766 = vld [vmem:[%s7 + $0x10] sm:$0xff]
      %v767 = vld [vmem:[%s7 + $0x18] sm:$0xff]
      %v768 = vld [vmem:[%s7 + $0x20] sm:$0xff]
      %v769 = vld [vmem:[%s7 + $0x28] sm:$0xff]
      %v771 = vsel %vm635, %v627, 0
      %v774 = vsel %vm635, %v628, 0
      %v777 = vsel %vm635, %v629, 0
      %v780 = vsel %vm635, %v630, 0
      %v783 = vsel %vm635, %v631, 0
      %v786 = vsel %vm635, %v632, 0
      %v789 = vsel %vm635, %v633, 0
      %v792 = vsel %vm635, %v634, 0
      %794 = vmatpush.msra.mxu0 0.0
      %795 = vmatpush.msra.mxu0 0.0
      %796 = vmatpush.msra.mxu0 0.0
      %797 = vmatpush.msra.mxu0 0.0
      %798 = vmatpush.msra.mxu0 0.0
      %799 = vmatpush.msra.mxu0 0.0
      %800 = vmatpush.msra.mxu0 0.0
      %801 = vmatpush.msra.mxu0 0.0
      %802 = vmatpush.msra.mxu0 0.0
      %803 = vmatpush.msra.mxu0 0.0
      %804 = vmatpush.msra.mxu0 0.0
      %805 = vmatpush.msra.mxu0 0.0
      %806 = vmatpush.msra.mxu0 %v769
      %807 = vmatpush.msra.mxu0 %v768
      %808 = vmatpush.msra.mxu0 %v767
      %809 = vmatpush.msra.mxu0 %v766
      %810 = vmatmul.f32.gmra.mxu0 %v771
      %v811 = vpop.f32.mrf.mxu0
      %v812 = vadd.f32 %v750, %v811
      %813 = vmatmul.f32.gmra.mxu0 %v774
      %v814 = vpop.f32.mrf.mxu0
      %v815 = vadd.f32 %v751, %v814
      %816 = vmatmul.f32.gmra.mxu0 %v777
      %v817 = vpop.f32.mrf.mxu0
      %v818 = vadd.f32 %v752, %v817
      %819 = vmatmul.f32.gmra.mxu0 %v780
      %v820 = vpop.f32.mrf.mxu0
      %v821 = vadd.f32 %v753, %v820
      %822 = vmatmul.f32.gmra.mxu0 %v783
      %v823 = vpop.f32.mrf.mxu0
      %v824 = vadd.f32 %v754, %v823
      %825 = vmatmul.f32.gmra.mxu0 %v786
      %v826 = vpop.f32.mrf.mxu0
      %v827 = vadd.f32 %v755, %v826
      %828 = vmatmul.f32.gmra.mxu0 %v789
      %v829 = vpop.f32.mrf.mxu0
      %v830 = vadd.f32 %v756, %v829
      %831 = vmatmul.f32.gmra.mxu0 %v792
      %v832 = vpop.f32.mrf.mxu0
      %v833 = vadd.f32 %v757, %v832
      %834 = vdwg.mxu0
      %v835 = vmax.f32 %v812, 0.0
      %v836 = vmax.f32 %v815, 0.0
      %v837 = vmax.f32 %v818, 0.0
      %v838 = vmax.f32 %v821, 0.0
      %v839 = vmax.f32 %v824, 0.0
      %v840 = vmax.f32 %v827, 0.0
      %v841 = vmax.f32 %v830, 0.0
      %v842 = vmax.f32 %v833, 0.0
      %v843 = vld [vmem:[%s7 + $0x50] sm:$0xff]
      %v844 = vld [vmem:[%s7 + $0x58] sm:$0xff]
      %v845 = vld [vmem:[%s7 + $0x60] sm:$0xff]
      %v846 = vld [vmem:[%s7 + $0x68] sm:$0xff]
      %v847 = vld [vmem:[%s8 + $0x2] sm:$0x1]
      %v848 = vperm.slane %v847, 0
      %v850 = vsel %vm635, %v835, 0
      %v853 = vsel %vm635, %v836, 0
      %v856 = vsel %vm635, %v837, 0
      %v859 = vsel %vm635, %v838, 0
      %v862 = vsel %vm635, %v839, 0
      %v865 = vsel %vm635, %v840, 0
      %v868 = vsel %vm635, %v841, 0
      %v871 = vsel %vm635, %v842, 0
      %873 = vmatpush.msra.mxu0 0.0
      %874 = vmatpush.msra.mxu0 0.0
      %875 = vmatpush.msra.mxu0 0.0
      %876 = vmatpush.msra.mxu0 0.0
      %877 = vmatpush.msra.mxu0 0.0
      %878 = vmatpush.msra.mxu0 0.0
      %879 = vmatpush.msra.mxu0 0.0
      %880 = vmatpush.msra.mxu0 0.0
      %881 = vmatpush.msra.mxu0 0.0
      %882 = vmatpush.msra.mxu0 0.0
      %883 = vmatpush.msra.mxu0 0.0
      %884 = vmatpush.msra.mxu0 0.0
      %885 = vmatpush.msra.mxu0 %v846
      %886 = vmatpush.msra.mxu0 %v845
      %887 = vmatpush.msra.mxu0 %v844
      %888 = vmatpush.msra.mxu0 %v843
      %889 = vmatmul.f32.gmra.mxu0 %v850
      %v890 = vpop.f32.mrf.mxu0
      %v891 = vadd.f32 %v848, %v890
      %892 = vmatmul.f32.gmra.mxu0 %v853
      %v893 = vpop.f32.mrf.mxu0
      %v894 = vadd.f32 %v848, %v893
      %895 = vmatmul.f32.gmra.mxu0 %v856
      %v896 = vpop.f32.mrf.mxu0
      %v897 = vadd.f32 %v848, %v896
      %898 = vmatmul.f32.gmra.mxu0 %v859
      %v899 = vpop.f32.mrf.mxu0
      %v900 = vadd.f32 %v848, %v899
      %901 = vmatmul.f32.gmra.mxu0 %v862
      %v902 = vpop.f32.mrf.mxu0
      %v903 = vadd.f32 %v848, %v902
      %904 = vmatmul.f32.gmra.mxu0 %v865
      %v905 = vpop.f32.mrf.mxu0
      %v906 = vadd.f32 %v848, %v905
      %907 = vmatmul.f32.gmra.mxu0 %v868
      %v908 = vpop.f32.mrf.mxu0
      %v909 = vadd.f32 %v848, %v908
      %910 = vmatmul.f32.gmra.mxu0 %v871
      %v911 = vpop.f32.mrf.mxu0
      %v912 = vadd.f32 %v848, %v911
      %913 = vdwg.mxu0
      %v914 = vmax.f32 %v891, 0.0
      %v915 = vmax.f32 %v894, 0.0
      %v916 = vmax.f32 %v897, 0.0
      %v917 = vmax.f32 %v900, 0.0
      %v918 = vmax.f32 %v903, 0.0
      %v919 = vmax.f32 %v906, 0.0
      %v920 = vmax.f32 %v909, 0.0
      %v921 = vmax.f32 %v912, 0.0
      %v922 = vmul.f32 %v914, %v590
      %v923 = vmul.f32 %v915, %v595
      %v924 = vmul.f32 %v916, %v600
      %v925 = vmul.f32 %v917, %v605
      %v926 = vmul.f32 %v918, %v610
      %v927 = vmul.f32 %v919, %v615
      %v928 = vmul.f32 %v920, %v620
      %v929 = vmul.f32 %v921, %v625
      %v930 = vsel %vm635, %v922, -inf
      %v931 = vrot.slane %v930, 4
      %v932 = vmax.f32 %v930, %v931
      %v933 = vrot.slane %v932, 2
      %v934 = vmax.f32 %v932, %v933
      %v935 = vrot.slane %v934, 1
      %v936 = vmax.f32 %v934, %v935
      %v937 = vsel %vm635, %v923, -inf
      %v938 = vrot.slane %v937, 4
      %v939 = vmax.f32 %v937, %v938
      %v940 = vrot.slane %v939, 2
      %v941 = vmax.f32 %v939, %v940
      %v942 = vrot.slane %v941, 1
      %v943 = vmax.f32 %v941, %v942
      %v944 = vsel %vm635, %v924, -inf
      %v945 = vrot.slane %v944, 4
      %v946 = vmax.f32 %v944, %v945
      %v947 = vrot.slane %v946, 2
      %v948 = vmax.f32 %v946, %v947
      %v949 = vrot.slane %v948, 1
      %v950 = vmax.f32 %v948, %v949
      %v951 = vsel %vm635, %v925, -inf
      %v952 = vrot.slane %v951, 4
      %v953 = vmax.f32 %v951, %v952
      %v954 = vrot.slane %v953, 2
      %v955 = vmax.f32 %v953, %v954
      %v956 = vrot.slane %v955, 1
      %v957 = vmax.f32 %v955, %v956
      %v958 = vsel %vm635, %v926, -inf
      %v959 = vrot.slane %v958, 4
      %v960 = vmax.f32 %v958, %v959
      %v961 = vrot.slane %v960, 2
      %v962 = vmax.f32 %v960, %v961
      %v963 = vrot.slane %v962, 1
      %v964 = vmax.f32 %v962, %v963
      %v965 = vsel %vm635, %v927, -inf
      %v966 = vrot.slane %v965, 4
      %v967 = vmax.f32 %v965, %v966
      %v968 = vrot.slane %v967, 2
      %v969 = vmax.f32 %v967, %v968
      %v970 = vrot.slane %v969, 1
      %v971 = vmax.f32 %v969, %v970
      %v972 = vsel %vm635, %v928, -inf
      %v973 = vrot.slane %v972, 4
      %v974 = vmax.f32 %v972, %v973
      %v975 = vrot.slane %v974, 2
      %v976 = vmax.f32 %v974, %v975
      %v977 = vrot.slane %v976, 1
      %v978 = vmax.f32 %v976, %v977
      %v979 = vsel %vm635, %v929, -inf
      %v980 = vrot.slane %v979, 4
      %v981 = vmax.f32 %v979, %v980
      %v982 = vrot.slane %v981, 2
      %v983 = vmax.f32 %v981, %v982
      %v984 = vrot.slane %v983, 1
      %v985 = vmax.f32 %v983, %v984
      %v986 = vld [vmem:[%s7 + $0x70] sm:$0xff]
      %v987 = vld [vmem:[%s7 + $0x78] sm:$0xff]
      %v988 = vld [vmem:[%s7 + $0x80] sm:$0xff]
      %v989 = vld [vmem:[%s7 + $0x88] sm:$0xff]
      %v990 = vld [vmem:[%s8 + $0x3] sm:$0x1]
      %v991 = vperm.slane %v990, 0
      %v1000 = vsel %vm706, %v943, %v936
      %v1001 = vsel %vm708, %v950, %v1000
      %v1002 = vsel %vm710, %v957, %v1001
      %v1003 = vsel %vm712, %v964, %v1002
      %v1004 = vsel %vm714, %v971, %v1003
      %v1005 = vsel %vm716, %v978, %v1004
      %v1006 = vsel %vm718, %v985, %v1005
      %v1007 = vsel %vm635, %v1006, 0
      %1009 = vmatpush.msra.mxu0 0.0
      %1010 = vmatpush.msra.mxu0 0.0
      %1011 = vmatpush.msra.mxu0 0.0
      %1012 = vmatpush.msra.mxu0 0.0
      %1013 = vmatpush.msra.mxu0 0.0
      %1014 = vmatpush.msra.mxu0 0.0
      %1015 = vmatpush.msra.mxu0 0.0
      %1016 = vmatpush.msra.mxu0 0.0
      %1017 = vmatpush.msra.mxu0 0.0
      %1018 = vmatpush.msra.mxu0 0.0
      %1019 = vmatpush.msra.mxu0 0.0
      %1020 = vmatpush.msra.mxu0 0.0
      %1021 = vmatpush.msra.mxu0 %v989
      %1022 = vmatpush.msra.mxu0 %v988
      %1023 = vmatpush.msra.mxu0 %v987
      %1024 = vmatpush.msra.mxu0 %v986
      %1025 = vmatmul.f32.gmra.mxu0 %v1007
      %v1026 = vpop.f32.mrf.mxu0
      %v1027 = vadd.f32 %v991, %v1026
      %1028 = vdwg.mxu0
      %v1029 = vmax.f32 %v1027, 0.0
      %v1030 = vld [vmem:[%s7 + $0x90] sm:$0xff]
      %v1031 = vld [vmem:[%s7 + $0x98] sm:$0xff]
      %v1032 = vld [vmem:[%s7 + $0xa0] sm:$0xff]
      %v1033 = vld [vmem:[%s7 + $0xa8] sm:$0xff]
      %v1034 = vld [vmem:[%s8 + $0x4] sm:$0x1]
      %v1035 = vperm.slane %v1034, 0
      %v1037 = vsel %vm635, %v1029, 0
      %1039 = vmatpush.msra.mxu0 0.0
      %1040 = vmatpush.msra.mxu0 0.0
      %1041 = vmatpush.msra.mxu0 0.0
      %1042 = vmatpush.msra.mxu0 0.0
      %1043 = vmatpush.msra.mxu0 0.0
      %1044 = vmatpush.msra.mxu0 0.0
      %1045 = vmatpush.msra.mxu0 0.0
      %1046 = vmatpush.msra.mxu0 0.0
      %1047 = vmatpush.msra.mxu0 0.0
      %1048 = vmatpush.msra.mxu0 0.0
      %1049 = vmatpush.msra.mxu0 0.0
      %1050 = vmatpush.msra.mxu0 0.0
      %1051 = vmatpush.msra.mxu0 %v1033
      %1052 = vmatpush.msra.mxu0 %v1032
      %1053 = vmatpush.msra.mxu0 %v1031
      %1054 = vmatpush.msra.mxu0 %v1030
      %1055 = vmatmul.f32.gmra.mxu0 %v1037
      %v1056 = vpop.f32.mrf.mxu0
      %v1057 = vadd.f32 %v1035, %v1056
      %1058 = vdwg.mxu0
      %v1059 = vld [vmem:[%s471] sm:$0xff]
      %vm1060 = vcmp.gt.f32.partialorder %v1059, 0.0
      %v1061 = vsel %vm1060, 1, 0
      %1062 = vset.pattern.permute.xlu0 0
      %1063 = vperm.xlu0 %1062, %v1061
      %v1064 = vpop.permute.xlu0 %1063
      %vm1065 = vcmp.eq.s32.totalorder %v1064, 1
      %v1066 = vsel %vm1065, %v1057, 0.0
      %v1067 = vld [vmem:[%s476] sm:$0xff]
      %v1068 = vld [vmem:[%s476 + $0x8] sm:$0xff]
      %v1069 = vld [vmem:[%s476 + $0x10] sm:$0xff]
      %v1070 = vld [vmem:[%s476 + $0x18] sm:$0xff]
      %v1071 = vld [vmem:[%s476 + $0x20] sm:$0xff]
      %v1072 = vld [vmem:[%s476 + $0x28] sm:$0xff]
      %v1073 = vld [vmem:[%s476 + $0x30] sm:$0xff]
      %v1074 = vld [vmem:[%s476 + $0x38] sm:$0xff]
      %v1075 = vld [vmem:[%s7 + $0xb0] sm:$0xff]
      %v1076 = vld [vmem:[%s7 + $0xb8] sm:$0xff]
      %v1077 = vld [vmem:[%s8 + $0x5] sm:$0x1]
      %v1078 = vperm.slane %v1077, 0
      %v1080 = vsel %vm513, %v1067, 0
      %v1083 = vsel %vm513, %v1068, 0
      %v1086 = vsel %vm513, %v1069, 0
      %v1089 = vsel %vm513, %v1070, 0
      %v1092 = vsel %vm513, %v1071, 0
      %v1095 = vsel %vm513, %v1072, 0
      %v1098 = vsel %vm513, %v1073, 0
      %v1101 = vsel %vm513, %v1074, 0
      %1103 = vmatpush.msra.mxu0 0.0
      %1104 = vmatpush.msra.mxu0 0.0
      %1105 = vmatpush.msra.mxu0 0.0
      %1106 = vmatpush.msra.mxu0 0.0
      %1107 = vmatpush.msra.mxu0 0.0
      %1108 = vmatpush.msra.mxu0 0.0
      %1109 = vmatpush.msra.mxu0 0.0
      %1110 = vmatpush.msra.mxu0 0.0
      %1111 = vmatpush.msra.mxu0 0.0
      %1112 = vmatpush.msra.mxu0 0.0
      %1113 = vmatpush.msra.mxu0 0.0
      %1114 = vmatpush.msra.mxu0 0.0
      %1115 = vmatpush.msra.mxu0 0.0
      %1116 = vmatpush.msra.mxu0 0.0
      %1117 = vmatpush.msra.mxu0 %v1076
      %1118 = vmatpush.msra.mxu0 %v1075
      %1119 = vmatmul.f32.gmra.mxu0 %v1080
      %v1120 = vpop.f32.mrf.mxu0
      %v1121 = vadd.f32 %v1078, %v1120
      %1122 = vmatmul.f32.gmra.mxu0 %v1083
      %v1123 = vpop.f32.mrf.mxu0
      %v1124 = vadd.f32 %v1078, %v1123
      %1125 = vmatmul.f32.gmra.mxu0 %v1086
      %v1126 = vpop.f32.mrf.mxu0
      %v1127 = vadd.f32 %v1078, %v1126
      %1128 = vmatmul.f32.gmra.mxu0 %v1089
      %v1129 = vpop.f32.mrf.mxu0
      %v1130 = vadd.f32 %v1078, %v1129
      %1131 = vmatmul.f32.gmra.mxu0 %v1092
      %v1132 = vpop.f32.mrf.mxu0
      %v1133 = vadd.f32 %v1078, %v1132
      %1134 = vmatmul.f32.gmra.mxu0 %v1095
      %v1135 = vpop.f32.mrf.mxu0
      %v1136 = vadd.f32 %v1078, %v1135
      %1137 = vmatmul.f32.gmra.mxu0 %v1098
      %v1138 = vpop.f32.mrf.mxu0
      %v1139 = vadd.f32 %v1078, %v1138
      %1140 = vmatmul.f32.gmra.mxu0 %v1101
      %v1141 = vpop.f32.mrf.mxu0
      %v1142 = vadd.f32 %v1078, %v1141
      %1143 = vdwg.mxu0
      %v1144 = vld [vmem:[%s7 + $0xc0] sm:$0xff]
      %v1145 = vld [vmem:[%s7 + $0xc8] sm:$0xff]
      %v1146 = vld [vmem:[%s7 + $0xd0] sm:$0xff]
      %v1147 = vld [vmem:[%s7 + $0xd8] sm:$0xff]
      %vm1148 = vcmask 523264
      %v1150 = vsel %vm1148, 1.0, 0
      %1152 = vmatpush.msra.mxu0 0.0
      %1153 = vmatpush.msra.mxu0 0.0
      %1154 = vmatpush.msra.mxu0 0.0
      %1155 = vmatpush.msra.mxu0 0.0
      %1156 = vmatpush.msra.mxu0 0.0
      %1157 = vmatpush.msra.mxu0 0.0
      %1158 = vmatpush.msra.mxu0 0.0
      %1159 = vmatpush.msra.mxu0 0.0
      %1160 = vmatpush.msra.mxu0 %v1142
      %1161 = vmatpush.msra.mxu0 %v1139
      %1162 = vmatpush.msra.mxu0 %v1136
      %1163 = vmatpush.msra.mxu0 %v1133
      %1164 = vmatpush.msra.mxu0 %v1130
      %1165 = vmatpush.msra.mxu0 %v1127
      %1166 = vmatpush.msra.mxu0 %v1124
      %1167 = vmatpush.msra.mxu0 %v1121
      %1168 = vmatmul.f32.gmra.mxu0 %v1150
      %v1169 = vpop.f32.mrf.mxu0
      %v1170 = vadd.f32 0.0, %v1169
      %1171 = vdwg.mxu0
      %v1173 = vsel %vm635, %v1170, 0
      %1175 = vmatpush.msra.mxu0 0.0
      %1176 = vmatpush.msra.mxu0 0.0
      %1177 = vmatpush.msra.mxu0 0.0
      %1178 = vmatpush.msra.mxu0 0.0
      %1179 = vmatpush.msra.mxu0 0.0
      %1180 = vmatpush.msra.mxu0 0.0
      %1181 = vmatpush.msra.mxu0 0.0
      %1182 = vmatpush.msra.mxu0 0.0
      %1183 = vmatpush.msra.mxu0 0.0
      %1184 = vmatpush.msra.mxu0 0.0
      %1185 = vmatpush.msra.mxu0 0.0
      %1186 = vmatpush.msra.mxu0 0.0
      %1187 = vmatpush.msra.mxu0 %v1147
      %1188 = vmatpush.msra.mxu0 %v1146
      %1189 = vmatpush.msra.mxu0 %v1145
      %1190 = vmatpush.msra.mxu0 %v1144
      %1191 = vmatmul.f32.gmra.mxu0 %v1173
      %v1192 = vpop.f32.mrf.mxu0
      %v1193 = vadd.f32 0.0, %v1192
      %1194 = vdwg.mxu0
      %v1195 = vmul.f32 %v1193, 0.00390625
      %v1196 = vperm.slane %v1195, 0
      %v1197 = vsub.f32 %v1121, %v1196
      %v1198 = vsub.f32 %v1124, %v1196
      %v1199 = vsub.f32 %v1127, %v1196
      %v1200 = vsub.f32 %v1130, %v1196
      %v1201 = vsub.f32 %v1133, %v1196
      %v1202 = vsub.f32 %v1136, %v1196
      %v1203 = vsub.f32 %v1139, %v1196
      %v1204 = vsub.f32 %v1142, %v1196
      %v1205 = vmul.f32 %v1197, %v1197
      %v1206 = vmul.f32 %v1198, %v1198
      %v1207 = vmul.f32 %v1199, %v1199
      %v1208 = vmul.f32 %v1200, %v1200
      %v1209 = vmul.f32 %v1201, %v1201
      %v1210 = vmul.f32 %v1202, %v1202
      %v1211 = vmul.f32 %v1203, %v1203
      %v1212 = vmul.f32 %v1204, %v1204
      %1213 = vmatpush.msra.mxu0 0.0
      %1214 = vmatpush.msra.mxu0 0.0
      %1215 = vmatpush.msra.mxu0 0.0
      %1216 = vmatpush.msra.mxu0 0.0
      %1217 = vmatpush.msra.mxu0 0.0
      %1218 = vmatpush.msra.mxu0 0.0
      %1219 = vmatpush.msra.mxu0 0.0
      %1220 = vmatpush.msra.mxu0 0.0
      %1221 = vmatpush.msra.mxu0 %v1212
      %1222 = vmatpush.msra.mxu0 %v1211
      %1223 = vmatpush.msra.mxu0 %v1210
      %1224 = vmatpush.msra.mxu0 %v1209
      %1225 = vmatpush.msra.mxu0 %v1208
      %1226 = vmatpush.msra.mxu0 %v1207
      %1227 = vmatpush.msra.mxu0 %v1206
      %1228 = vmatpush.msra.mxu0 %v1205
      %1229 = vmatmul.f32.gmra.mxu0 %v1150
      %v1230 = vpop.f32.mrf.mxu0
      %v1231 = vadd.f32 0.0, %v1230
      %1232 = vdwg.mxu0
      %v1234 = vsel %vm635, %v1231, 0
      %1236 = vmatpush.msra.mxu0 0.0
      %1237 = vmatpush.msra.mxu0 0.0
      %1238 = vmatpush.msra.mxu0 0.0
      %1239 = vmatpush.msra.mxu0 0.0
      %1240 = vmatpush.msra.mxu0 0.0
      %1241 = vmatpush.msra.mxu0 0.0
      %1242 = vmatpush.msra.mxu0 0.0
      %1243 = vmatpush.msra.mxu0 0.0
      %1244 = vmatpush.msra.mxu0 0.0
      %1245 = vmatpush.msra.mxu0 0.0
      %1246 = vmatpush.msra.mxu0 0.0
      %1247 = vmatpush.msra.mxu0 0.0
      %1248 = vmatpush.msra.mxu0 %v1147
      %1249 = vmatpush.msra.mxu0 %v1146
      %1250 = vmatpush.msra.mxu0 %v1145
      %1251 = vmatpush.msra.mxu0 %v1144
      %1252 = vmatmul.f32.gmra.mxu0 %v1234
      %v1253 = vpop.f32.mrf.mxu0
      %v1254 = vadd.f32 0.0, %v1253
      %1255 = vdwg.mxu0
      %v1256 = vmul.f32 %v1254, 0.00390625
      %v1257 = vadd.f32 %v1256, 1e-05
      %v1258 = vrsqrt.pop %v1257
      %v1259 = vmul.f32 %v1258, %v1257
      %v1260 = vmul.f32 %v1259, %v1258
      %v1261 = vmul.f32 0.5, %v1260
      %v1262 = vsub.f32 1.5, %v1261
      %v1263 = vmul.f32 %v1258, %v1262
      %vm1264 = vweird.f32 %v1257
      %vm1265 = vweird.f32 %v1258
      %vm1266 = vmor %vm1264, %vm1265
      %v1267 = vsel %vm1266, %v1258, %v1263
      %v1268 = vperm.slane %v1267, 0
      %v1269 = vmul.f32 %v1197, %v1268
      %v1270 = vmul.f32 %v1198, %v1268
      %v1271 = vmul.f32 %v1199, %v1268
      %v1272 = vmul.f32 %v1200, %v1268
      %v1273 = vmul.f32 %v1201, %v1268
      %v1274 = vmul.f32 %v1202, %v1268
      %v1275 = vmul.f32 %v1203, %v1268
      %v1276 = vmul.f32 %v1204, %v1268
      %v1277 = vld [vmem:[%s8 + $0x6] sm:$0x1]
      %v1278 = vperm.slane %v1277, 0
      %v1279 = vmul.f32 %v1269, %v1278
      %v1280 = vmul.f32 %v1270, %v1278
      %v1281 = vmul.f32 %v1271, %v1278
      %v1282 = vmul.f32 %v1272, %v1278
      %v1283 = vmul.f32 %v1273, %v1278
      %v1284 = vmul.f32 %v1274, %v1278
      %v1285 = vmul.f32 %v1275, %v1278
      %v1286 = vmul.f32 %v1276, %v1278
      %v1287 = vld [vmem:[%s8 + $0x7] sm:$0x1]
      %v1288 = vperm.slane %v1287, 0
      %v1289 = vadd.f32 %v1279, %v1288
      %v1290 = vadd.f32 %v1280, %v1288
      %v1291 = vadd.f32 %v1281, %v1288
      %v1292 = vadd.f32 %v1282, %v1288
      %v1293 = vadd.f32 %v1283, %v1288
      %v1294 = vadd.f32 %v1284, %v1288
      %v1295 = vadd.f32 %v1285, %v1288
      %v1296 = vadd.f32 %v1286, %v1288
      %v1297 = vmax.f32 %v1289, 0.0
      %v1298 = vmax.f32 %v1290, 0.0
      %v1299 = vmax.f32 %v1291, 0.0
      %v1300 = vmax.f32 %v1292, 0.0
      %v1301 = vmax.f32 %v1293, 0.0
      %v1302 = vmax.f32 %v1294, 0.0
      %v1303 = vmax.f32 %v1295, 0.0
      %v1304 = vmax.f32 %v1296, 0.0
      %v1305 = vld [vmem:[%s7 + $0xe0] sm:$0xff]
      %v1306 = vld [vmem:[%s7 + $0xe8] sm:$0xff]
      %v1307 = vld [vmem:[%s7 + $0xf0] sm:$0xff]
      %v1308 = vld [vmem:[%s7 + $0xf8] sm:$0xff]
      %v1309 = vld [vmem:[%s8 + $0x8] sm:$0x1]
      %v1310 = vperm.slane %v1309, 0
      %v1312 = vsel %vm635, %v1297, 0
      %v1315 = vsel %vm635, %v1298, 0
      %v1318 = vsel %vm635, %v1299, 0
      %v1321 = vsel %vm635, %v1300, 0
      %v1324 = vsel %vm635, %v1301, 0
      %v1327 = vsel %vm635, %v1302, 0
      %v1330 = vsel %vm635, %v1303, 0
      %v1333 = vsel %vm635, %v1304, 0
      %1335 = vmatpush.msra.mxu0 0.0
      %1336 = vmatpush.msra.mxu0 0.0
      %1337 = vmatpush.msra.mxu0 0.0
      %1338 = vmatpush.msra.mxu0 0.0
      %1339 = vmatpush.msra.mxu0 0.0
      %1340 = vmatpush.msra.mxu0 0.0
      %1341 = vmatpush.msra.mxu0 0.0
      %1342 = vmatpush.msra.mxu0 0.0
      %1343 = vmatpush.msra.mxu0 0.0
      %1344 = vmatpush.msra.mxu0 0.0
      %1345 = vmatpush.msra.mxu0 0.0
      %1346 = vmatpush.msra.mxu0 0.0
      %1347 = vmatpush.msra.mxu0 %v1308
      %1348 = vmatpush.msra.mxu0 %v1307
      %1349 = vmatpush.msra.mxu0 %v1306
      %1350 = vmatpush.msra.mxu0 %v1305
      %1351 = vmatmul.f32.gmra.mxu0 %v1312
      %v1352 = vpop.f32.mrf.mxu0
      %v1353 = vadd.f32 %v1310, %v1352
      %1354 = vmatmul.f32.gmra.mxu0 %v1315
      %v1355 = vpop.f32.mrf.mxu0
      %v1356 = vadd.f32 %v1310, %v1355
      %1357 = vmatmul.f32.gmra.mxu0 %v1318
      %v1358 = vpop.f32.mrf.mxu0
      %v1359 = vadd.f32 %v1310, %v1358
      %1360 = vmatmul.f32.gmra.mxu0 %v1321
      %v1361 = vpop.f32.mrf.mxu0
      %v1362 = vadd.f32 %v1310, %v1361
      %1363 = vmatmul.f32.gmra.mxu0 %v1324
      %v1364 = vpop.f32.mrf.mxu0
      %v1365 = vadd.f32 %v1310, %v1364
      %1366 = vmatmul.f32.gmra.mxu0 %v1327
      %v1367 = vpop.f32.mrf.mxu0
      %v1368 = vadd.f32 %v1310, %v1367
      %1369 = vmatmul.f32.gmra.mxu0 %v1330
      %v1370 = vpop.f32.mrf.mxu0
      %v1371 = vadd.f32 %v1310, %v1370
      %1372 = vmatmul.f32.gmra.mxu0 %v1333
      %v1373 = vpop.f32.mrf.mxu0
      %v1374 = vadd.f32 %v1310, %v1373
      %1375 = vdwg.mxu0
      %v1376 = vld [vmem:[%s481] sm:$0xff]
      %v1377 = vld [vmem:[%s481 + $0x8] sm:$0xff]
      %v1378 = vld [vmem:[%s481 + $0x10] sm:$0xff]
      %v1379 = vld [vmem:[%s481 + $0x18] sm:$0xff]
      %v1380 = vld [vmem:[%s481 + $0x20] sm:$0xff]
      %v1381 = vld [vmem:[%s481 + $0x28] sm:$0xff]
      %v1382 = vld [vmem:[%s481 + $0x30] sm:$0xff]
      %v1383 = vld [vmem:[%s481 + $0x38] sm:$0xff]
      %v1384 = vld [vmem:[%s481 + $0x40] sm:$0xff]
      %v1385 = vld [vmem:[%s484] sm:$0x1]
      %v1386 = vld [vmem:[%s9] sm:$0xff]
      %v1387 = vld [vmem:[%s9 + $0x8] sm:$0xff]
      %v1388 = vld [vmem:[%s9 + $0x10] sm:$0xff]
      %v1389 = vld [vmem:[%s9 + $0x18] sm:$0xff]
      %v1390 = vld [vmem:[%s9 + $0x20] sm:$0x1]
      %v1391 = vld [vmem:[%s10] sm:$0xff]
      %v1392 = vld [vmem:[%s10 + $0x8] sm:$0xff]
      %v1393 = vld [vmem:[%s10 + $0x10] sm:$0xff]
      %v1394 = vld [vmem:[%s10 + $0x18] sm:$0xff]
      %v1395 = vld [vmem:[%s10 + $0x20] sm:$0x1]
      %v1396 = vadd.f32 %v1066, %v1376
      %v1397 = vadd.f32 %v1353, %v1377
      %v1398 = vadd.f32 %v1356, %v1378
      %v1399 = vadd.f32 %v1359, %v1379
      %v1400 = vadd.f32 %v1362, %v1380
      %v1401 = vadd.f32 %v1365, %v1381
      %v1402 = vadd.f32 %v1368, %v1382
      %v1403 = vadd.f32 %v1371, %v1383
      %v1404 = vadd.f32 %v1374, %v1384
      %v1405 = vperm.slane %v1390, 0
      %v1407 = vsel %vm635, %v1396, 0
      %v1410 = vsel %vm635, %v1397, 0
      %v1413 = vsel %vm635, %v1398, 0
      %v1416 = vsel %vm635, %v1399, 0
      %v1419 = vsel %vm635, %v1400, 0
      %v1422 = vsel %vm635, %v1401, 0
      %v1425 = vsel %vm635, %v1402, 0
      %v1428 = vsel %vm635, %v1403, 0
      %v1431 = vsel %vm635, %v1404, 0
      %1433 = vmatpush.msra.mxu0 0.0
      %1434 = vmatpush.msra.mxu0 0.0
      %1435 = vmatpush.msra.mxu0 0.0
      %1436 = vmatpush.msra.mxu0 0.0
      %1437 = vmatpush.msra.mxu0 0.0
      %1438 = vmatpush.msra.mxu0 0.0
      %1439 = vmatpush.msra.mxu0 0.0
      %1440 = vmatpush.msra.mxu0 0.0
      %1441 = vmatpush.msra.mxu0 0.0
      %1442 = vmatpush.msra.mxu0 0.0
      %1443 = vmatpush.msra.mxu0 0.0
      %1444 = vmatpush.msra.mxu0 0.0
      %1445 = vmatpush.msra.mxu0 %v1389
      %1446 = vmatpush.msra.mxu0 %v1388
      %1447 = vmatpush.msra.mxu0 %v1387
      %1448 = vmatpush.msra.mxu0 %v1386
      %1449 = vmatmul.f32.gmra.mxu0 %v1407
      %v1450 = vpop.f32.mrf.mxu0
      %v1451 = vadd.f32 %v1405, %v1450
      %1452 = vmatmul.f32.gmra.mxu0 %v1410
      %v1453 = vpop.f32.mrf.mxu0
      %v1454 = vadd.f32 %v1405, %v1453
      %1455 = vmatmul.f32.gmra.mxu0 %v1413
      %v1456 = vpop.f32.mrf.mxu0
      %v1457 = vadd.f32 %v1405, %v1456
      %1458 = vmatmul.f32.gmra.mxu0 %v1416
      %v1459 = vpop.f32.mrf.mxu0
      %v1460 = vadd.f32 %v1405, %v1459
      %1461 = vmatmul.f32.gmra.mxu0 %v1419
      %v1462 = vpop.f32.mrf.mxu0
      %v1463 = vadd.f32 %v1405, %v1462
      %1464 = vmatmul.f32.gmra.mxu0 %v1422
      %v1465 = vpop.f32.mrf.mxu0
      %v1466 = vadd.f32 %v1405, %v1465
      %1467 = vmatmul.f32.gmra.mxu0 %v1425
      %v1468 = vpop.f32.mrf.mxu0
      %v1469 = vadd.f32 %v1405, %v1468
      %1470 = vmatmul.f32.gmra.mxu0 %v1428
      %v1471 = vpop.f32.mrf.mxu0
      %v1472 = vadd.f32 %v1405, %v1471
      %1473 = vmatmul.f32.gmra.mxu0 %v1431
      %v1474 = vpop.f32.mrf.mxu0
      %v1475 = vadd.f32 %v1405, %v1474
      %1476 = vdwg.mxu0
      %v1477 = vld [vmem:[%s7 + $0x100] sm:$0xff]
      %v1478 = vld [vmem:[%s7 + $0x108] sm:$0xff]
      %v1479 = vld [vmem:[%s7 + $0x110] sm:$0xff]
      %v1480 = vld [vmem:[%s7 + $0x118] sm:$0xff]
      %v1481 = vld [vmem:[%s8 + $0x9] sm:$0x1]
      %v1482 = vperm.slane %v1481, 0
      %v1484 = vsel %vm635, %v1066, 0
      %v1487 = vsel %vm635, %v1353, 0
      %v1490 = vsel %vm635, %v1356, 0
      %v1493 = vsel %vm635, %v1359, 0
      %v1496 = vsel %vm635, %v1362, 0
      %v1499 = vsel %vm635, %v1365, 0
      %v1502 = vsel %vm635, %v1368, 0
      %v1505 = vsel %vm635, %v1371, 0
      %v1508 = vsel %vm635, %v1374, 0
      %1510 = vmatpush.msra.mxu0 0.0
      %1511 = vmatpush.msra.mxu0 0.0
      %1512 = vmatpush.msra.mxu0 0.0
      %1513 = vmatpush.msra.mxu0 0.0
      %1514 = vmatpush.msra.mxu0 0.0
      %1515 = vmatpush.msra.mxu0 0.0
      %1516 = vmatpush.msra.mxu0 0.0
      %1517 = vmatpush.msra.mxu0 0.0
      %1518 = vmatpush.msra.mxu0 0.0
      %1519 = vmatpush.msra.mxu0 0.0
      %1520 = vmatpush.msra.mxu0 0.0
      %1521 = vmatpush.msra.mxu0 0.0
      %1522 = vmatpush.msra.mxu0 %v1480
      %1523 = vmatpush.msra.mxu0 %v1479
      %1524 = vmatpush.msra.mxu0 %v1478
      %1525 = vmatpush.msra.mxu0 %v1477
      %1526 = vmatmul.f32.gmra.mxu0 %v1484
      %v1527 = vpop.f32.mrf.mxu0
      %v1528 = vadd.f32 %v1482, %v1527
      %1529 = vmatmul.f32.gmra.mxu0 %v1487
      %v1530 = vpop.f32.mrf.mxu0
      %v1531 = vadd.f32 %v1482, %v1530
      %1532 = vmatmul.f32.gmra.mxu0 %v1490
      %v1533 = vpop.f32.mrf.mxu0
      %v1534 = vadd.f32 %v1482, %v1533
      %1535 = vmatmul.f32.gmra.mxu0 %v1493
      %v1536 = vpop.f32.mrf.mxu0
      %v1537 = vadd.f32 %v1482, %v1536
      %1538 = vmatmul.f32.gmra.mxu0 %v1496
      %v1539 = vpop.f32.mrf.mxu0
      %v1540 = vadd.f32 %v1482, %v1539
      %1541 = vmatmul.f32.gmra.mxu0 %v1499
      %v1542 = vpop.f32.mrf.mxu0
      %v1543 = vadd.f32 %v1482, %v1542
      %1544 = vmatmul.f32.gmra.mxu0 %v1502
      %v1545 = vpop.f32.mrf.mxu0
      %v1546 = vadd.f32 %v1482, %v1545
      %1547 = vmatmul.f32.gmra.mxu0 %v1505
      %v1548 = vpop.f32.mrf.mxu0
      %v1549 = vadd.f32 %v1482, %v1548
      %1550 = vmatmul.f32.gmra.mxu0 %v1508
      %v1551 = vpop.f32.mrf.mxu0
      %v1552 = vadd.f32 %v1482, %v1551
      %1553 = vdwg.mxu0
      %1563 = vrot.lane.b32.xlu0 %v1451, 96
      %v1564 = vpop.permute.xlu0 %1563
      %1565 = vrot.lane.b32.xlu0 %v1454, 96
      %v1566 = vpop.permute.xlu0 %1565
      %1567 = vrot.lane.b32.xlu0 %v1457, 96
      %v1568 = vpop.permute.xlu0 %1567
      %1569 = vrot.lane.b32.xlu0 %v1460, 96
      %v1570 = vpop.permute.xlu0 %1569
      %1571 = vrot.lane.b32.xlu0 %v1463, 96
      %v1572 = vpop.permute.xlu0 %1571
      %1573 = vrot.lane.b32.xlu0 %v1466, 96
      %v1574 = vpop.permute.xlu0 %1573
      %1575 = vrot.lane.b32.xlu0 %v1469, 96
      %v1576 = vpop.permute.xlu0 %1575
      %1577 = vrot.lane.b32.xlu0 %v1472, 96
      %v1578 = vpop.permute.xlu0 %1577
      %1579 = vrot.lane.b32.xlu0 %v1475, 96
      %v1580 = vpop.permute.xlu0 %1579
      %v1581 = vsel %vm513, %v1451, 0
      %v1583 = vsel %vm513, %v1454, 0
      %v1585 = vsel %vm513, %v1457, 0
      %v1587 = vsel %vm513, %v1460, 0
      %v1589 = vsel %vm513, %v1463, 0
      %v1591 = vsel %vm513, %v1466, 0
      %v1593 = vsel %vm513, %v1469, 0
      %v1595 = vsel %vm513, %v1472, 0
      %v1597 = vsel %vm513, %v1475, 0
      %v1599 = vsel %vm513, %v1564, 0
      %v1601 = vsel %vm513, %v1566, 0
      %v1603 = vsel %vm513, %v1568, 0
      %v1605 = vsel %vm513, %v1570, 0
      %v1607 = vsel %vm513, %v1572, 0
      %v1609 = vsel %vm513, %v1574, 0
      %v1611 = vsel %vm513, %v1576, 0
      %v1613 = vsel %vm513, %v1578, 0
      %v1615 = vsel %vm513, %v1580, 0
      %1617 = vmatpush.xpose.msra.mxu0 0.0
      %1618 = vmatpush.xpose.msra.mxu0 0.0
      %1619 = vmatpush.xpose.msra.mxu0 0.0
      %1620 = vmatpush.xpose.msra.mxu0 0.0
      %1621 = vmatpush.xpose.msra.mxu0 0.0
      %1622 = vmatpush.xpose.msra.mxu0 0.0
      %1623 = vmatpush.xpose.msra.mxu0 0.0
      %1624 = vmatpush.xpose.msra.mxu0 %v1615
      %1625 = vmatpush.xpose.msra.mxu0 %v1613
      %1626 = vmatpush.xpose.msra.mxu0 %v1611
      %1627 = vmatpush.xpose.msra.mxu0 %v1609
      %1628 = vmatpush.xpose.msra.mxu0 %v1607
      %1629 = vmatpush.xpose.msra.mxu0 %v1605
      %1630 = vmatpush.xpose.msra.mxu0 %v1603
      %1631 = vmatpush.xpose.msra.mxu0 %v1601
      %1632 = vmatpush.xpose.msra.mxu0 %v1599
      %1633 = vmatmul.f32.gmra.mxu0 %v1581
      %v1634 = vpop.f32.mrf.mxu0
      %v1635 = vadd.f32 0.0, %v1634
      %1636 = vmatmul.f32.gmra.mxu0 %v1583
      %v1637 = vpop.f32.mrf.mxu0
      %v1638 = vadd.f32 0.0, %v1637
      %1639 = vmatmul.f32.gmra.mxu0 %v1585
      %v1640 = vpop.f32.mrf.mxu0
      %v1641 = vadd.f32 0.0, %v1640
      %1642 = vmatmul.f32.gmra.mxu0 %v1587
      %v1643 = vpop.f32.mrf.mxu0
      %v1644 = vadd.f32 0.0, %v1643
      %1645 = vmatmul.f32.gmra.mxu0 %v1589
      %v1646 = vpop.f32.mrf.mxu0
      %v1647 = vadd.f32 0.0, %v1646
      %1648 = vmatmul.f32.gmra.mxu0 %v1591
      %v1649 = vpop.f32.mrf.mxu0
      %v1650 = vadd.f32 0.0, %v1649
      %1651 = vmatmul.f32.gmra.mxu0 %v1593
      %v1652 = vpop.f32.mrf.mxu0
      %v1653 = vadd.f32 0.0, %v1652
      %1654 = vmatmul.f32.gmra.mxu0 %v1595
      %v1655 = vpop.f32.mrf.mxu0
      %v1656 = vadd.f32 0.0, %v1655
      %1657 = vmatmul.f32.gmra.mxu0 %v1597
      %v1658 = vpop.f32.mrf.mxu0
      %v1659 = vadd.f32 0.0, %v1658
      %1660 = vdwg.mxu0
      %v1661 = vmul.f32 %v1635, 0.25
      %v1662 = vmul.f32 %v1638, 0.25
      %v1663 = vmul.f32 %v1641, 0.25
      %v1664 = vmul.f32 %v1644, 0.25
      %v1665 = vmul.f32 %v1647, 0.25
      %v1666 = vmul.f32 %v1650, 0.25
      %v1667 = vmul.f32 %v1653, 0.25
      %v1668 = vmul.f32 %v1656, 0.25
      %v1669 = vmul.f32 %v1659, 0.25
      %v1671 = vperm.slane %v1385, 0
      %v1673 = vadd.f32 %v1661, %v1671
      %v1674 = vadd.f32 %v1662, %v1671
      %v1675 = vadd.f32 %v1663, %v1671
      %v1676 = vadd.f32 %v1664, %v1671
      %v1677 = vadd.f32 %v1665, %v1671
      %v1678 = vadd.f32 %v1666, %v1671
      %v1679 = vadd.f32 %v1667, %v1671
      %v1680 = vadd.f32 %v1668, %v1671
      %v1681 = vadd.f32 %v1669, %v1671
      %vm1682 = vcmask 588800
      %v1683 = vsel %vm1682, %v1673, -inf
      %1684 = vmax.xlane.f32.xlu0 %v1683
      %v1685 = vpop.xlane.xlu0 %1684
      %v1686 = vsel %vm1682, %v1674, -inf
      %1687 = vmax.xlane.f32.xlu0 %v1686
      %v1688 = vpop.xlane.xlu0 %1687
      %v1689 = vsel %vm1682, %v1675, -inf
      %1690 = vmax.xlane.f32.xlu0 %v1689
      %v1691 = vpop.xlane.xlu0 %1690
      %v1692 = vsel %vm1682, %v1676, -inf
      %1693 = vmax.xlane.f32.xlu0 %v1692
      %v1694 = vpop.xlane.xlu0 %1693
      %v1695 = vsel %vm1682, %v1677, -inf
      %1696 = vmax.xlane.f32.xlu0 %v1695
      %v1697 = vpop.xlane.xlu0 %1696
      %v1698 = vsel %vm1682, %v1678, -inf
      %1699 = vmax.xlane.f32.xlu0 %v1698
      %v1700 = vpop.xlane.xlu0 %1699
      %v1701 = vsel %vm1682, %v1679, -inf
      %1702 = vmax.xlane.f32.xlu0 %v1701
      %v1703 = vpop.xlane.xlu0 %1702
      %v1704 = vsel %vm1682, %v1680, -inf
      %1705 = vmax.xlane.f32.xlu0 %v1704
      %v1706 = vpop.xlane.xlu0 %1705
      %v1707 = vsel %vm1682, %v1681, -inf
      %1708 = vmax.xlane.f32.xlu0 %v1707
      %v1709 = vpop.xlane.xlu0 %1708
      %v1710 = vsub.f32 %v1673, %v1685
      %v1711 = vsub.f32 %v1674, %v1688
      %v1712 = vsub.f32 %v1675, %v1691
      %v1713 = vsub.f32 %v1676, %v1694
      %v1714 = vsub.f32 %v1677, %v1697
      %v1715 = vsub.f32 %v1678, %v1700
      %v1716 = vsub.f32 %v1679, %v1703
      %v1717 = vsub.f32 %v1680, %v1706
      %v1718 = vsub.f32 %v1681, %v1709
      %v1719 = vmul.f32 %v1710, 1.442695
      %v1720 = vpow.pop %v1719
      %v1721 = vmul.f32 %v1711, 1.442695
      %v1722 = vpow.pop %v1721
      %v1723 = vmul.f32 %v1712, 1.442695
      %v1724 = vpow.pop %v1723
      %v1725 = vmul.f32 %v1713, 1.442695
      %v1726 = vpow.pop %v1725
      %v1727 = vmul.f32 %v1714, 1.442695
      %v1728 = vpow.pop %v1727
      %v1729 = vmul.f32 %v1715, 1.442695
      %v1730 = vpow.pop %v1729
      %v1731 = vmul.f32 %v1716, 1.442695
      %v1732 = vpow.pop %v1731
      %v1733 = vmul.f32 %v1717, 1.442695
      %v1734 = vpow.pop %v1733
      %v1735 = vmul.f32 %v1718, 1.442695
      %v1736 = vpow.pop %v1735
      %v1738 = vsel %vm1682, %v1720, 0
      %v1741 = vsel %vm1682, %v1722, 0
      %v1744 = vsel %vm1682, %v1724, 0
      %v1747 = vsel %vm1682, %v1726, 0
      %v1750 = vsel %vm1682, %v1728, 0
      %v1753 = vsel %vm1682, %v1730, 0
      %v1756 = vsel %vm1682, %v1732, 0
      %v1759 = vsel %vm1682, %v1734, 0
      %v1762 = vsel %vm1682, %v1736, 0
      %1764 = vmatpush.msra.mxu0 0.0
      %1765 = vmatpush.msra.mxu0 0.0
      %1766 = vmatpush.msra.mxu0 0.0
      %1767 = vmatpush.msra.mxu0 0.0
      %1768 = vmatpush.msra.mxu0 0.0
      %1769 = vmatpush.msra.mxu0 0.0
      %1770 = vmatpush.msra.mxu0 0.0
      %1771 = vmatpush.msra.mxu0 1.0
      %1772 = vmatpush.msra.mxu0 1.0
      %1773 = vmatpush.msra.mxu0 1.0
      %1774 = vmatpush.msra.mxu0 1.0
      %1775 = vmatpush.msra.mxu0 1.0
      %1776 = vmatpush.msra.mxu0 1.0
      %1777 = vmatpush.msra.mxu0 1.0
      %1778 = vmatpush.msra.mxu0 1.0
      %1779 = vmatpush.msra.mxu0 1.0
      %1780 = vmatmul.f32.gmra.mxu0 %v1738
      %v1781 = vpop.f32.mrf.mxu0
      %v1782 = vadd.f32 0.0, %v1781
      %1783 = vmatmul.f32.gmra.mxu0 %v1741
      %v1784 = vpop.f32.mrf.mxu0
      %v1785 = vadd.f32 0.0, %v1784
      %1786 = vmatmul.f32.gmra.mxu0 %v1744
      %v1787 = vpop.f32.mrf.mxu0
      %v1788 = vadd.f32 0.0, %v1787
      %1789 = vmatmul.f32.gmra.mxu0 %v1747
      %v1790 = vpop.f32.mrf.mxu0
      %v1791 = vadd.f32 0.0, %v1790
      %1792 = vmatmul.f32.gmra.mxu0 %v1750
      %v1793 = vpop.f32.mrf.mxu0
      %v1794 = vadd.f32 0.0, %v1793
      %1795 = vmatmul.f32.gmra.mxu0 %v1753
      %v1796 = vpop.f32.mrf.mxu0
      %v1797 = vadd.f32 0.0, %v1796
      %1798 = vmatmul.f32.gmra.mxu0 %v1756
      %v1799 = vpop.f32.mrf.mxu0
      %v1800 = vadd.f32 0.0, %v1799
      %1801 = vmatmul.f32.gmra.mxu0 %v1759
      %v1802 = vpop.f32.mrf.mxu0
      %v1803 = vadd.f32 0.0, %v1802
      %1804 = vmatmul.f32.gmra.mxu0 %v1762
      %v1805 = vpop.f32.mrf.mxu0
      %v1806 = vadd.f32 0.0, %v1805
      %1807 = vdwg.mxu0
      %v1808 = vrcp.pop %v1782
      %v1809 = vrcp.pop %v1785
      %v1810 = vrcp.pop %v1788
      %v1811 = vrcp.pop %v1791
      %v1812 = vrcp.pop %v1794
      %v1813 = vrcp.pop %v1797
      %v1814 = vrcp.pop %v1800
      %v1815 = vrcp.pop %v1803
      %v1816 = vrcp.pop %v1806
      %1818 = vset.pattern.permute.xlu0 0
      %1819 = vperm.xlu0 %1818, %v1808
      %v1820 = vpop.permute.xlu0 %1819
      %1823 = vset.pattern.permute.xlu0 0
      %1824 = vperm.xlu0 %1823, %v1809
      %v1825 = vpop.permute.xlu0 %1824
      %1828 = vset.pattern.permute.xlu0 0
      %1829 = vperm.xlu0 %1828, %v1810
      %v1830 = vpop.permute.xlu0 %1829
      %1833 = vset.pattern.permute.xlu0 0
      %1834 = vperm.xlu0 %1833, %v1811
      %v1835 = vpop.permute.xlu0 %1834
      %1838 = vset.pattern.permute.xlu0 0
      %1839 = vperm.xlu0 %1838, %v1812
      %v1840 = vpop.permute.xlu0 %1839
      %1843 = vset.pattern.permute.xlu0 0
      %1844 = vperm.xlu0 %1843, %v1813
      %v1845 = vpop.permute.xlu0 %1844
      %1848 = vset.pattern.permute.xlu0 0
      %1849 = vperm.xlu0 %1848, %v1814
      %v1850 = vpop.permute.xlu0 %1849
      %1853 = vset.pattern.permute.xlu0 0
      %1854 = vperm.xlu0 %1853, %v1815
      %v1855 = vpop.permute.xlu0 %1854
      %1858 = vset.pattern.permute.xlu0 0
      %1859 = vperm.xlu0 %1858, %v1816
      %v1860 = vpop.permute.xlu0 %1859
      %v1862 = vmul.f32 %v1720, %v1820
      %v1863 = vmul.f32 %v1722, %v1825
      %v1864 = vmul.f32 %v1724, %v1830
      %v1865 = vmul.f32 %v1726, %v1835
      %v1866 = vmul.f32 %v1728, %v1840
      %v1867 = vmul.f32 %v1730, %v1845
      %v1868 = vmul.f32 %v1732, %v1850
      %v1869 = vmul.f32 %v1734, %v1855
      %v1870 = vmul.f32 %v1736, %v1860
      %v1872 = vsel %vm1682, %v1862, 0
      %v1875 = vsel %vm1682, %v1863, 0
      %v1878 = vsel %vm1682, %v1864, 0
      %v1881 = vsel %vm1682, %v1865, 0
      %v1884 = vsel %vm1682, %v1866, 0
      %v1887 = vsel %vm1682, %v1867, 0
      %v1890 = vsel %vm1682, %v1868, 0
      %v1893 = vsel %vm1682, %v1869, 0
      %v1896 = vsel %vm1682, %v1870, 0
      %1898 = vmatpush.msra.mxu0 0.0
      %1899 = vmatpush.msra.mxu0 0.0
      %1900 = vmatpush.msra.mxu0 0.0
      %1901 = vmatpush.msra.mxu0 0.0
      %1902 = vmatpush.msra.mxu0 0.0
      %1903 = vmatpush.msra.mxu0 0.0
      %1904 = vmatpush.msra.mxu0 0.0
      %1905 = vmatpush.msra.mxu0 %v1552
      %1906 = vmatpush.msra.mxu0 %v1549
      %1907 = vmatpush.msra.mxu0 %v1546
      %1908 = vmatpush.msra.mxu0 %v1543
      %1909 = vmatpush.msra.mxu0 %v1540
      %1910 = vmatpush.msra.mxu0 %v1537
      %1911 = vmatpush.msra.mxu0 %v1534
      %1912 = vmatpush.msra.mxu0 %v1531
      %1913 = vmatpush.msra.mxu0 %v1528
      %1914 = vmatmul.f32.gmra.mxu0 %v1872
      %v1915 = vpop.f32.mrf.mxu0
      %v1916 = vadd.f32 0.0, %v1915
      %1917 = vmatmul.f32.gmra.mxu0 %v1875
      %v1918 = vpop.f32.mrf.mxu0
      %v1919 = vadd.f32 0.0, %v1918
      %1920 = vmatmul.f32.gmra.mxu0 %v1878
      %v1921 = vpop.f32.mrf.mxu0
      %v1922 = vadd.f32 0.0, %v1921
      %1923 = vmatmul.f32.gmra.mxu0 %v1881
      %v1924 = vpop.f32.mrf.mxu0
      %v1925 = vadd.f32 0.0, %v1924
      %1926 = vmatmul.f32.gmra.mxu0 %v1884
      %v1927 = vpop.f32.mrf.mxu0
      %v1928 = vadd.f32 0.0, %v1927
      %1929 = vmatmul.f32.gmra.mxu0 %v1887
      %v1930 = vpop.f32.mrf.mxu0
      %v1931 = vadd.f32 0.0, %v1930
      %1932 = vmatmul.f32.gmra.mxu0 %v1890
      %v1933 = vpop.f32.mrf.mxu0
      %v1934 = vadd.f32 0.0, %v1933
      %1935 = vmatmul.f32.gmra.mxu0 %v1893
      %v1936 = vpop.f32.mrf.mxu0
      %v1937 = vadd.f32 0.0, %v1936
      %1938 = vmatmul.f32.gmra.mxu0 %v1896
      %v1939 = vpop.f32.mrf.mxu0
      %v1940 = vadd.f32 0.0, %v1939
      %1941 = vdwg.mxu0
      %v1942 = vld [vmem:[%s7 + $0x120] sm:$0xff]
      %v1943 = vld [vmem:[%s7 + $0x128] sm:$0xff]
      %1944 = vrot.lane.b32.xlu0 %v1451, 112
      %v1945 = vpop.permute.xlu0 %1944
      %1946 = vrot.lane.b32.xlu0 %v1454, 112
      %v1947 = vpop.permute.xlu0 %1946
      %1948 = vrot.lane.b32.xlu0 %v1457, 112
      %v1949 = vpop.permute.xlu0 %1948
      %1950 = vrot.lane.b32.xlu0 %v1460, 112
      %v1951 = vpop.permute.xlu0 %1950
      %1952 = vrot.lane.b32.xlu0 %v1463, 112
      %v1953 = vpop.permute.xlu0 %1952
      %1954 = vrot.lane.b32.xlu0 %v1466, 112
      %v1955 = vpop.permute.xlu0 %1954
      %1956 = vrot.lane.b32.xlu0 %v1469, 112
      %v1957 = vpop.permute.xlu0 %1956
      %1958 = vrot.lane.b32.xlu0 %v1472, 112
      %v1959 = vpop.permute.xlu0 %1958
      %1960 = vrot.lane.b32.xlu0 %v1475, 112
      %v1961 = vpop.permute.xlu0 %1960
      %1962 = vrot.lane.b32.xlu0 %v1451, 80
      %v1963 = vpop.permute.xlu0 %1962
      %1964 = vrot.lane.b32.xlu0 %v1454, 80
      %v1965 = vpop.permute.xlu0 %1964
      %1966 = vrot.lane.b32.xlu0 %v1457, 80
      %v1967 = vpop.permute.xlu0 %1966
      %1968 = vrot.lane.b32.xlu0 %v1460, 80
      %v1969 = vpop.permute.xlu0 %1968
      %1970 = vrot.lane.b32.xlu0 %v1463, 80
      %v1971 = vpop.permute.xlu0 %1970
      %1972 = vrot.lane.b32.xlu0 %v1466, 80
      %v1973 = vpop.permute.xlu0 %1972
      %1974 = vrot.lane.b32.xlu0 %v1469, 80
      %v1975 = vpop.permute.xlu0 %1974
      %1976 = vrot.lane.b32.xlu0 %v1472, 80
      %v1977 = vpop.permute.xlu0 %1976
      %1978 = vrot.lane.b32.xlu0 %v1475, 80
      %v1979 = vpop.permute.xlu0 %1978
      %v1980 = vsel %vm513, %v1945, 0
      %v1982 = vsel %vm513, %v1947, 0
      %v1984 = vsel %vm513, %v1949, 0
      %v1986 = vsel %vm513, %v1951, 0
      %v1988 = vsel %vm513, %v1953, 0
      %v1990 = vsel %vm513, %v1955, 0
      %v1992 = vsel %vm513, %v1957, 0
      %v1994 = vsel %vm513, %v1959, 0
      %v1996 = vsel %vm513, %v1961, 0
      %v1998 = vsel %vm513, %v1963, 0
      %v2000 = vsel %vm513, %v1965, 0
      %v2002 = vsel %vm513, %v1967, 0
      %v2004 = vsel %vm513, %v1969, 0
      %v2006 = vsel %vm513, %v1971, 0
      %v2008 = vsel %vm513, %v1973, 0
      %v2010 = vsel %vm513, %v1975, 0
      %v2012 = vsel %vm513, %v1977, 0
      %v2014 = vsel %vm513, %v1979, 0
      %2016 = vmatpush.xpose.msra.mxu0 0.0
      %2017 = vmatpush.xpose.msra.mxu0 0.0
      %2018 = vmatpush.xpose.msra.mxu0 0.0
      %2019 = vmatpush.xpose.msra.mxu0 0.0
      %2020 = vmatpush.xpose.msra.mxu0 0.0
      %2021 = vmatpush.xpose.msra.mxu0 0.0
      %2022 = vmatpush.xpose.msra.mxu0 0.0
      %2023 = vmatpush.xpose.msra.mxu0 %v2014
      %2024 = vmatpush.xpose.msra.mxu0 %v2012
      %2025 = vmatpush.xpose.msra.mxu0 %v2010
      %2026 = vmatpush.xpose.msra.mxu0 %v2008
      %2027 = vmatpush.xpose.msra.mxu0 %v2006
      %2028 = vmatpush.xpose.msra.mxu0 %v2004
      %2029 = vmatpush.xpose.msra.mxu0 %v2002
      %2030 = vmatpush.xpose.msra.mxu0 %v2000
      %2031 = vmatpush.xpose.msra.mxu0 %v1998
      %2032 = vmatmul.f32.gmra.mxu0 %v1980
      %v2033 = vpop.f32.mrf.mxu0
      %v2034 = vadd.f32 0.0, %v2033
      %2035 = vmatmul.f32.gmra.mxu0 %v1982
      %v2036 = vpop.f32.mrf.mxu0
      %v2037 = vadd.f32 0.0, %v2036
      %2038 = vmatmul.f32.gmra.mxu0 %v1984
      %v2039 = vpop.f32.mrf.mxu0
      %v2040 = vadd.f32 0.0, %v2039
      %2041 = vmatmul.f32.gmra.mxu0 %v1986
      %v2042 = vpop.f32.mrf.mxu0
      %v2043 = vadd.f32 0.0, %v2042
      %2044 = vmatmul.f32.gmra.mxu0 %v1988
      %v2045 = vpop.f32.mrf.mxu0
      %v2046 = vadd.f32 0.0, %v2045
      %2047 = vmatmul.f32.gmra.mxu0 %v1990
      %v2048 = vpop.f32.mrf.mxu0
      %v2049 = vadd.f32 0.0, %v2048
      %2050 = vmatmul.f32.gmra.mxu0 %v1992
      %v2051 = vpop.f32.mrf.mxu0
      %v2052 = vadd.f32 0.0, %v2051
      %2053 = vmatmul.f32.gmra.mxu0 %v1994
      %v2054 = vpop.f32.mrf.mxu0
      %v2055 = vadd.f32 0.0, %v2054
      %2056 = vmatmul.f32.gmra.mxu0 %v1996
      %v2057 = vpop.f32.mrf.mxu0
      %v2058 = vadd.f32 0.0, %v2057
      %2059 = vdwg.mxu0
      %v2060 = vmul.f32 %v2034, 0.25
      %v2061 = vmul.f32 %v2037, 0.25
      %v2062 = vmul.f32 %v2040, 0.25
      %v2063 = vmul.f32 %v2043, 0.25
      %v2064 = vmul.f32 %v2046, 0.25
      %v2065 = vmul.f32 %v2049, 0.25
      %v2066 = vmul.f32 %v2052, 0.25
      %v2067 = vmul.f32 %v2055, 0.25
      %v2068 = vmul.f32 %v2058, 0.25
      %v2069 = vadd.f32 %v2060, %v1671
      %v2070 = vadd.f32 %v2061, %v1671
      %v2071 = vadd.f32 %v2062, %v1671
      %v2072 = vadd.f32 %v2063, %v1671
      %v2073 = vadd.f32 %v2064, %v1671
      %v2074 = vadd.f32 %v2065, %v1671
      %v2075 = vadd.f32 %v2066, %v1671
      %v2076 = vadd.f32 %v2067, %v1671
      %v2077 = vadd.f32 %v2068, %v1671
      %v2078 = vsel %vm1682, %v2069, -inf
      %2079 = vmax.xlane.f32.xlu0 %v2078
      %v2080 = vpop.xlane.xlu0 %2079
      %v2081 = vsel %vm1682, %v2070, -inf
      %2082 = vmax.xlane.f32.xlu0 %v2081
      %v2083 = vpop.xlane.xlu0 %2082
      %v2084 = vsel %vm1682, %v2071, -inf
      %2085 = vmax.xlane.f32.xlu0 %v2084
      %v2086 = vpop.xlane.xlu0 %2085
      %v2087 = vsel %vm1682, %v2072, -inf
      %2088 = vmax.xlane.f32.xlu0 %v2087
      %v2089 = vpop.xlane.xlu0 %2088
      %v2090 = vsel %vm1682, %v2073, -inf
      %2091 = vmax.xlane.f32.xlu0 %v2090
      %v2092 = vpop.xlane.xlu0 %2091
      %v2093 = vsel %vm1682, %v2074, -inf
      %2094 = vmax.xlane.f32.xlu0 %v2093
      %v2095 = vpop.xlane.xlu0 %2094
      %v2096 = vsel %vm1682, %v2075, -inf
      %2097 = vmax.xlane.f32.xlu0 %v2096
      %v2098 = vpop.xlane.xlu0 %2097
      %v2099 = vsel %vm1682, %v2076, -inf
      %2100 = vmax.xlane.f32.xlu0 %v2099
      %v2101 = vpop.xlane.xlu0 %2100
      %v2102 = vsel %vm1682, %v2077, -inf
      %2103 = vmax.xlane.f32.xlu0 %v2102
      %v2104 = vpop.xlane.xlu0 %2103
      %v2105 = vsub.f32 %v2069, %v2080
      %v2106 = vsub.f32 %v2070, %v2083
      %v2107 = vsub.f32 %v2071, %v2086
      %v2108 = vsub.f32 %v2072, %v2089
      %v2109 = vsub.f32 %v2073, %v2092
      %v2110 = vsub.f32 %v2074, %v2095
      %v2111 = vsub.f32 %v2075, %v2098
      %v2112 = vsub.f32 %v2076, %v2101
      %v2113 = vsub.f32 %v2077, %v2104
      %v2114 = vmul.f32 %v2105, 1.442695
      %v2115 = vpow.pop %v2114
      %v2116 = vmul.f32 %v2106, 1.442695
      %v2117 = vpow.pop %v2116
      %v2118 = vmul.f32 %v2107, 1.442695
      %v2119 = vpow.pop %v2118
      %v2120 = vmul.f32 %v2108, 1.442695
      %v2121 = vpow.pop %v2120
      %v2122 = vmul.f32 %v2109, 1.442695
      %v2123 = vpow.pop %v2122
      %v2124 = vmul.f32 %v2110, 1.442695
      %v2125 = vpow.pop %v2124
      %v2126 = vmul.f32 %v2111, 1.442695
      %v2127 = vpow.pop %v2126
      %v2128 = vmul.f32 %v2112, 1.442695
      %v2129 = vpow.pop %v2128
      %v2130 = vmul.f32 %v2113, 1.442695
      %v2131 = vpow.pop %v2130
      %v2133 = vsel %vm1682, %v2115, 0
      %v2136 = vsel %vm1682, %v2117, 0
      %v2139 = vsel %vm1682, %v2119, 0
      %v2142 = vsel %vm1682, %v2121, 0
      %v2145 = vsel %vm1682, %v2123, 0
      %v2148 = vsel %vm1682, %v2125, 0
      %v2151 = vsel %vm1682, %v2127, 0
      %v2154 = vsel %vm1682, %v2129, 0
      %v2157 = vsel %vm1682, %v2131, 0
      %2159 = vmatpush.msra.mxu0 0.0
      %2160 = vmatpush.msra.mxu0 0.0
      %2161 = vmatpush.msra.mxu0 0.0
      %2162 = vmatpush.msra.mxu0 0.0
      %2163 = vmatpush.msra.mxu0 0.0
      %2164 = vmatpush.msra.mxu0 0.0
      %2165 = vmatpush.msra.mxu0 0.0
      %2166 = vmatpush.msra.mxu0 1.0
      %2167 = vmatpush.msra.mxu0 1.0
      %2168 = vmatpush.msra.mxu0 1.0
      %2169 = vmatpush.msra.mxu0 1.0
      %2170 = vmatpush.msra.mxu0 1.0
      %2171 = vmatpush.msra.mxu0 1.0
      %2172 = vmatpush.msra.mxu0 1.0
      %2173 = vmatpush.msra.mxu0 1.0
      %2174 = vmatpush.msra.mxu0 1.0
      %2175 = vmatmul.f32.gmra.mxu0 %v2133
      %v2176 = vpop.f32.mrf.mxu0
      %v2177 = vadd.f32 0.0, %v2176
      %2178 = vmatmul.f32.gmra.mxu0 %v2136
      %v2179 = vpop.f32.mrf.mxu0
      %v2180 = vadd.f32 0.0, %v2179
      %2181 = vmatmul.f32.gmra.mxu0 %v2139
      %v2182 = vpop.f32.mrf.mxu0
      %v2183 = vadd.f32 0.0, %v2182
      %2184 = vmatmul.f32.gmra.mxu0 %v2142
      %v2185 = vpop.f32.mrf.mxu0
      %v2186 = vadd.f32 0.0, %v2185
      %2187 = vmatmul.f32.gmra.mxu0 %v2145
      %v2188 = vpop.f32.mrf.mxu0
      %v2189 = vadd.f32 0.0, %v2188
      %2190 = vmatmul.f32.gmra.mxu0 %v2148
      %v2191 = vpop.f32.mrf.mxu0
      %v2192 = vadd.f32 0.0, %v2191
      %2193 = vmatmul.f32.gmra.mxu0 %v2151
      %v2194 = vpop.f32.mrf.mxu0
      %v2195 = vadd.f32 0.0, %v2194
      %2196 = vmatmul.f32.gmra.mxu0 %v2154
      %v2197 = vpop.f32.mrf.mxu0
      %v2198 = vadd.f32 0.0, %v2197
      %2199 = vmatmul.f32.gmra.mxu0 %v2157
      %v2200 = vpop.f32.mrf.mxu0
      %v2201 = vadd.f32 0.0, %v2200
      %2202 = vdwg.mxu0
      %v2203 = vrcp.pop %v2177
      %v2204 = vrcp.pop %v2180
      %v2205 = vrcp.pop %v2183
      %v2206 = vrcp.pop %v2186
      %v2207 = vrcp.pop %v2189
      %v2208 = vrcp.pop %v2192
      %v2209 = vrcp.pop %v2195
      %v2210 = vrcp.pop %v2198
      %v2211 = vrcp.pop %v2201
      %2213 = vset.pattern.permute.xlu0 0
      %2214 = vperm.xlu0 %2213, %v2203
      %v2215 = vpop.permute.xlu0 %2214
      %2218 = vset.pattern.permute.xlu0 0
      %2219 = vperm.xlu0 %2218, %v2204
      %v2220 = vpop.permute.xlu0 %2219
      %2223 = vset.pattern.permute.xlu0 0
      %2224 = vperm.xlu0 %2223, %v2205
      %v2225 = vpop.permute.xlu0 %2224
      %2228 = vset.pattern.permute.xlu0 0
      %2229 = vperm.xlu0 %2228, %v2206
      %v2230 = vpop.permute.xlu0 %2229
      %2233 = vset.pattern.permute.xlu0 0
      %2234 = vperm.xlu0 %2233, %v2207
      %v2235 = vpop.permute.xlu0 %2234
      %2238 = vset.pattern.permute.xlu0 0
      %2239 = vperm.xlu0 %2238, %v2208
      %v2240 = vpop.permute.xlu0 %2239
      %2243 = vset.pattern.permute.xlu0 0
      %2244 = vperm.xlu0 %2243, %v2209
      %v2245 = vpop.permute.xlu0 %2244
      %2248 = vset.pattern.permute.xlu0 0
      %2249 = vperm.xlu0 %2248, %v2210
      %v2250 = vpop.permute.xlu0 %2249
      %2253 = vset.pattern.permute.xlu0 0
      %2254 = vperm.xlu0 %2253, %v2211
      %v2255 = vpop.permute.xlu0 %2254
      %v2257 = vmul.f32 %v2115, %v2215
      %v2258 = vmul.f32 %v2117, %v2220
      %v2259 = vmul.f32 %v2119, %v2225
      %v2260 = vmul.f32 %v2121, %v2230
      %v2261 = vmul.f32 %v2123, %v2235
      %v2262 = vmul.f32 %v2125, %v2240
      %v2263 = vmul.f32 %v2127, %v2245
      %v2264 = vmul.f32 %v2129, %v2250
      %v2265 = vmul.f32 %v2131, %v2255
      %2275 = vrot.lane.b32.xlu0 %v1528, 112
      %v2276 = vpop.permute.xlu0 %2275
      %2277 = vrot.lane.b32.xlu0 %v1531, 112
      %v2278 = vpop.permute.xlu0 %2277
      %2279 = vrot.lane.b32.xlu0 %v1534, 112
      %v2280 = vpop.permute.xlu0 %2279
      %2281 = vrot.lane.b32.xlu0 %v1537, 112
      %v2282 = vpop.permute.xlu0 %2281
      %2283 = vrot.lane.b32.xlu0 %v1540, 112
      %v2284 = vpop.permute.xlu0 %2283
      %2285 = vrot.lane.b32.xlu0 %v1543, 112
      %v2286 = vpop.permute.xlu0 %2285
      %2287 = vrot.lane.b32.xlu0 %v1546, 112
      %v2288 = vpop.permute.xlu0 %2287
      %2289 = vrot.lane.b32.xlu0 %v1549, 112
      %v2290 = vpop.permute.xlu0 %2289
      %2291 = vrot.lane.b32.xlu0 %v1552, 112
      %v2292 = vpop.permute.xlu0 %2291
      %v2303 = vsel %vm1682, %v2257, 0
      %v2306 = vsel %vm1682, %v2258, 0
      %v2309 = vsel %vm1682, %v2259, 0
      %v2312 = vsel %vm1682, %v2260, 0
      %v2315 = vsel %vm1682, %v2261, 0
      %v2318 = vsel %vm1682, %v2262, 0
      %v2321 = vsel %vm1682, %v2263, 0
      %v2324 = vsel %vm1682, %v2264, 0
      %v2327 = vsel %vm1682, %v2265, 0
      %2329 = vmatpush.msra.mxu0 0.0
      %2330 = vmatpush.msra.mxu0 0.0
      %2331 = vmatpush.msra.mxu0 0.0
      %2332 = vmatpush.msra.mxu0 0.0
      %2333 = vmatpush.msra.mxu0 0.0
      %2334 = vmatpush.msra.mxu0 0.0
      %2335 = vmatpush.msra.mxu0 0.0
      %2336 = vmatpush.msra.mxu0 %v2292
      %2337 = vmatpush.msra.mxu0 %v2290
      %2338 = vmatpush.msra.mxu0 %v2288
      %2339 = vmatpush.msra.mxu0 %v2286
      %2340 = vmatpush.msra.mxu0 %v2284
      %2341 = vmatpush.msra.mxu0 %v2282
      %2342 = vmatpush.msra.mxu0 %v2280
      %2343 = vmatpush.msra.mxu0 %v2278
      %2344 = vmatpush.msra.mxu0 %v2276
      %2345 = vmatmul.f32.gmra.mxu0 %v2303
      %v2346 = vpop.f32.mrf.mxu0
      %v2347 = vadd.f32 0.0, %v2346
      %2348 = vmatmul.f32.gmra.mxu0 %v2306
      %v2349 = vpop.f32.mrf.mxu0
      %v2350 = vadd.f32 0.0, %v2349
      %2351 = vmatmul.f32.gmra.mxu0 %v2309
      %v2352 = vpop.f32.mrf.mxu0
      %v2353 = vadd.f32 0.0, %v2352
      %2354 = vmatmul.f32.gmra.mxu0 %v2312
      %v2355 = vpop.f32.mrf.mxu0
      %v2356 = vadd.f32 0.0, %v2355
      %2357 = vmatmul.f32.gmra.mxu0 %v2315
      %v2358 = vpop.f32.mrf.mxu0
      %v2359 = vadd.f32 0.0, %v2358
      %2360 = vmatmul.f32.gmra.mxu0 %v2318
      %v2361 = vpop.f32.mrf.mxu0
      %v2362 = vadd.f32 0.0, %v2361
      %2363 = vmatmul.f32.gmra.mxu0 %v2321
      %v2364 = vpop.f32.mrf.mxu0
      %v2365 = vadd.f32 0.0, %v2364
      %2366 = vmatmul.f32.gmra.mxu0 %v2324
      %v2367 = vpop.f32.mrf.mxu0
      %v2368 = vadd.f32 0.0, %v2367
      %2369 = vmatmul.f32.gmra.mxu0 %v2327
      %v2370 = vpop.f32.mrf.mxu0
      %v2371 = vadd.f32 0.0, %v2370
      %2372 = vdwg.mxu0
      %v2373 = vld [vmem:[%s7 + $0x130] sm:$0xff]
      %v2374 = vld [vmem:[%s7 + $0x138] sm:$0xff]
      %v2376 = vsel %vm513, %v2347, 0
      %v2379 = vsel %vm513, %v2350, 0
      %v2382 = vsel %vm513, %v2353, 0
      %v2385 = vsel %vm513, %v2356, 0
      %v2388 = vsel %vm513, %v2359, 0
      %v2391 = vsel %vm513, %v2362, 0
      %v2394 = vsel %vm513, %v2365, 0
      %v2397 = vsel %vm513, %v2368, 0
      %v2400 = vsel %vm513, %v2371, 0
      %2402 = vmatpush.msra.mxu0 0.0
      %2403 = vmatpush.msra.mxu0 0.0
      %2404 = vmatpush.msra.mxu0 0.0
      %2405 = vmatpush.msra.mxu0 0.0
      %2406 = vmatpush.msra.mxu0 0.0
      %2407 = vmatpush.msra.mxu0 0.0
      %2408 = vmatpush.msra.mxu0 0.0
      %2409 = vmatpush.msra.mxu0 0.0
      %2410 = vmatpush.msra.mxu0 0.0
      %2411 = vmatpush.msra.mxu0 0.0
      %2412 = vmatpush.msra.mxu0 0.0
      %2413 = vmatpush.msra.mxu0 0.0
      %2414 = vmatpush.msra.mxu0 0.0
      %2415 = vmatpush.msra.mxu0 0.0
      %2416 = vmatpush.msra.mxu0 %v2374
      %2417 = vmatpush.msra.mxu0 %v2373
      %2418 = vmatmul.f32.gmra.mxu0 %v2376
      %v2419 = vpop.f32.mrf.mxu0
      %v2420 = vadd.f32 0.0, %v2419
      %2421 = vmatmul.f32.gmra.mxu0 %v2379
      %v2422 = vpop.f32.mrf.mxu0
      %v2423 = vadd.f32 0.0, %v2422
      %2424 = vmatmul.f32.gmra.mxu0 %v2382
      %v2425 = vpop.f32.mrf.mxu0
      %v2426 = vadd.f32 0.0, %v2425
      %2427 = vmatmul.f32.gmra.mxu0 %v2385
      %v2428 = vpop.f32.mrf.mxu0
      %v2429 = vadd.f32 0.0, %v2428
      %2430 = vmatmul.f32.gmra.mxu0 %v2388
      %v2431 = vpop.f32.mrf.mxu0
      %v2432 = vadd.f32 0.0, %v2431
      %2433 = vmatmul.f32.gmra.mxu0 %v2391
      %v2434 = vpop.f32.mrf.mxu0
      %v2435 = vadd.f32 0.0, %v2434
      %2436 = vmatmul.f32.gmra.mxu0 %v2394
      %v2437 = vpop.f32.mrf.mxu0
      %v2438 = vadd.f32 0.0, %v2437
      %2439 = vmatmul.f32.gmra.mxu0 %v2397
      %v2440 = vpop.f32.mrf.mxu0
      %v2441 = vadd.f32 0.0, %v2440
      %2442 = vmatmul.f32.gmra.mxu0 %v2400
      %v2443 = vpop.f32.mrf.mxu0
      %v2444 = vadd.f32 0.0, %v2443
      %2445 = vdwg.mxu0
      %v2447 = vsel %vm513, %v1916, 0
      %v2450 = vsel %vm513, %v1919, 0
      %v2453 = vsel %vm513, %v1922, 0
      %v2456 = vsel %vm513, %v1925, 0
      %v2459 = vsel %vm513, %v1928, 0
      %v2462 = vsel %vm513, %v1931, 0
      %v2465 = vsel %vm513, %v1934, 0
      %v2468 = vsel %vm513, %v1937, 0
      %v2471 = vsel %vm513, %v1940, 0
      %2473 = vmatpush.msra.mxu0 0.0
      %2474 = vmatpush.msra.mxu0 0.0
      %2475 = vmatpush.msra.mxu0 0.0
      %2476 = vmatpush.msra.mxu0 0.0
      %2477 = vmatpush.msra.mxu0 0.0
      %2478 = vmatpush.msra.mxu0 0.0
      %2479 = vmatpush.msra.mxu0 0.0
      %2480 = vmatpush.msra.mxu0 0.0
      %2481 = vmatpush.msra.mxu0 0.0
      %2482 = vmatpush.msra.mxu0 0.0
      %2483 = vmatpush.msra.mxu0 0.0
      %2484 = vmatpush.msra.mxu0 0.0
      %2485 = vmatpush.msra.mxu0 0.0
      %2486 = vmatpush.msra.mxu0 0.0
      %2487 = vmatpush.msra.mxu0 %v1943
      %2488 = vmatpush.msra.mxu0 %v1942
      %2489 = vmatmul.f32.gmra.mxu0 %v2447
      %v2490 = vpop.f32.mrf.mxu0
      %v2491 = vadd.f32 %v2420, %v2490
      %2492 = vmatmul.f32.gmra.mxu0 %v2450
      %v2493 = vpop.f32.mrf.mxu0
      %v2494 = vadd.f32 %v2423, %v2493
      %2495 = vmatmul.f32.gmra.mxu0 %v2453
      %v2496 = vpop.f32.mrf.mxu0
      %v2497 = vadd.f32 %v2426, %v2496
      %2498 = vmatmul.f32.gmra.mxu0 %v2456
      %v2499 = vpop.f32.mrf.mxu0
      %v2500 = vadd.f32 %v2429, %v2499
      %2501 = vmatmul.f32.gmra.mxu0 %v2459
      %v2502 = vpop.f32.mrf.mxu0
      %v2503 = vadd.f32 %v2432, %v2502
      %2504 = vmatmul.f32.gmra.mxu0 %v2462
      %v2505 = vpop.f32.mrf.mxu0
      %v2506 = vadd.f32 %v2435, %v2505
      %2507 = vmatmul.f32.gmra.mxu0 %v2465
      %v2508 = vpop.f32.mrf.mxu0
      %v2509 = vadd.f32 %v2438, %v2508
      %2510 = vmatmul.f32.gmra.mxu0 %v2468
      %v2511 = vpop.f32.mrf.mxu0
      %v2512 = vadd.f32 %v2441, %v2511
      %2513 = vmatmul.f32.gmra.mxu0 %v2471
      %v2514 = vpop.f32.mrf.mxu0
      %v2515 = vadd.f32 %v2444, %v2514
      %2516 = vdwg.mxu0
      %v2517 = vld [vmem:[%s8 + $0xa] sm:$0x1]
      %v2518 = vperm.slane %v2517, 0
      %v2519 = vadd.f32 %v2491, %v2518
      %v2520 = vadd.f32 %v2494, %v2518
      %v2521 = vadd.f32 %v2497, %v2518
      %v2522 = vadd.f32 %v2500, %v2518
      %v2523 = vadd.f32 %v2503, %v2518
      %v2524 = vadd.f32 %v2506, %v2518
      %v2525 = vadd.f32 %v2509, %v2518
      %v2526 = vadd.f32 %v2512, %v2518
      %v2527 = vadd.f32 %v2515, %v2518
      %v2528 = vadd.f32 %v1066, %v2519
      %v2529 = vadd.f32 %v1353, %v2520
      %v2530 = vadd.f32 %v1356, %v2521
      %v2531 = vadd.f32 %v1359, %v2522
      %v2532 = vadd.f32 %v1362, %v2523
      %v2533 = vadd.f32 %v1365, %v2524
      %v2534 = vadd.f32 %v1368, %v2525
      %v2535 = vadd.f32 %v1371, %v2526
      %v2536 = vadd.f32 %v1374, %v2527
      %v2537 = vld [vmem:[%s8 + $0xb] sm:$0x1]
      %v2538 = vld [vmem:[%s8 + $0xc] sm:$0x1]
      %v2540 = vsel %vm635, %v2528, 0
      %v2543 = vsel %vm635, %v2529, 0
      %v2546 = vsel %vm635, %v2530, 0
      %v2549 = vsel %vm635, %v2531, 0
      %v2552 = vsel %vm635, %v2532, 0
      %v2555 = vsel %vm635, %v2533, 0
      %v2558 = vsel %vm635, %v2534, 0
      %v2561 = vsel %vm635, %v2535, 0
      %v2564 = vsel %vm635, %v2536, 0
      %2566 = vmatpush.msra.mxu0 0.0
      %2567 = vmatpush.msra.mxu0 0.0
      %2568 = vmatpush.msra.mxu0 0.0
      %2569 = vmatpush.msra.mxu0 0.0
      %2570 = vmatpush.msra.mxu0 0.0
      %2571 = vmatpush.msra.mxu0 0.0
      %2572 = vmatpush.msra.mxu0 0.0
      %2573 = vmatpush.msra.mxu0 0.0
      %2574 = vmatpush.msra.mxu0 0.0
      %2575 = vmatpush.msra.mxu0 0.0
      %2576 = vmatpush.msra.mxu0 0.0
      %2577 = vmatpush.msra.mxu0 0.0
      %2578 = vmatpush.msra.mxu0 1.0
      %2579 = vmatpush.msra.mxu0 1.0
      %2580 = vmatpush.msra.mxu0 1.0
      %2581 = vmatpush.msra.mxu0 1.0
      %2582 = vmatmul.f32.gmra.mxu0 %v2540
      %v2583 = vpop.f32.mrf.mxu0
      %v2584 = vadd.f32 0.0, %v2583
      %2585 = vmatmul.f32.gmra.mxu0 %v2543
      %v2586 = vpop.f32.mrf.mxu0
      %v2587 = vadd.f32 0.0, %v2586
      %2588 = vmatmul.f32.gmra.mxu0 %v2546
      %v2589 = vpop.f32.mrf.mxu0
      %v2590 = vadd.f32 0.0, %v2589
      %2591 = vmatmul.f32.gmra.mxu0 %v2549
      %v2592 = vpop.f32.mrf.mxu0
      %v2593 = vadd.f32 0.0, %v2592
      %2594 = vmatmul.f32.gmra.mxu0 %v2552
      %v2595 = vpop.f32.mrf.mxu0
      %v2596 = vadd.f32 0.0, %v2595
      %2597 = vmatmul.f32.gmra.mxu0 %v2555
      %v2598 = vpop.f32.mrf.mxu0
      %v2599 = vadd.f32 0.0, %v2598
      %2600 = vmatmul.f32.gmra.mxu0 %v2558
      %v2601 = vpop.f32.mrf.mxu0
      %v2602 = vadd.f32 0.0, %v2601
      %2603 = vmatmul.f32.gmra.mxu0 %v2561
      %v2604 = vpop.f32.mrf.mxu0
      %v2605 = vadd.f32 0.0, %v2604
      %2606 = vmatmul.f32.gmra.mxu0 %v2564
      %v2607 = vpop.f32.mrf.mxu0
      %v2608 = vadd.f32 0.0, %v2607
      %2609 = vdwg.mxu0
      %v2610 = vmul.f32 %v2584, 0.03125
      %v2611 = vmul.f32 %v2587, 0.03125
      %v2612 = vmul.f32 %v2590, 0.03125
      %v2613 = vmul.f32 %v2593, 0.03125
      %v2614 = vmul.f32 %v2596, 0.03125
      %v2615 = vmul.f32 %v2599, 0.03125
      %v2616 = vmul.f32 %v2602, 0.03125
      %v2617 = vmul.f32 %v2605, 0.03125
      %v2618 = vmul.f32 %v2608, 0.03125
      %2620 = vset.pattern.permute.xlu0 0
      %2621 = vperm.xlu0 %2620, %v2610
      %v2622 = vpop.permute.xlu0 %2621
      %2625 = vset.pattern.permute.xlu0 0
      %2626 = vperm.xlu0 %2625, %v2611
      %v2627 = vpop.permute.xlu0 %2626
      %2630 = vset.pattern.permute.xlu0 0
      %2631 = vperm.xlu0 %2630, %v2612
      %v2632 = vpop.permute.xlu0 %2631
      %2635 = vset.pattern.permute.xlu0 0
      %2636 = vperm.xlu0 %2635, %v2613
      %v2637 = vpop.permute.xlu0 %2636
      %2640 = vset.pattern.permute.xlu0 0
      %2641 = vperm.xlu0 %2640, %v2614
      %v2642 = vpop.permute.xlu0 %2641
      %2645 = vset.pattern.permute.xlu0 0
      %2646 = vperm.xlu0 %2645, %v2615
      %v2647 = vpop.permute.xlu0 %2646
      %2650 = vset.pattern.permute.xlu0 0
      %2651 = vperm.xlu0 %2650, %v2616
      %v2652 = vpop.permute.xlu0 %2651
      %2655 = vset.pattern.permute.xlu0 0
      %2656 = vperm.xlu0 %2655, %v2617
      %v2657 = vpop.permute.xlu0 %2656
      %2660 = vset.pattern.permute.xlu0 0
      %2661 = vperm.xlu0 %2660, %v2618
      %v2662 = vpop.permute.xlu0 %2661
      %v2664 = vsub.f32 %v2528, %v2622
      %v2665 = vsub.f32 %v2529, %v2627
      %v2666 = vsub.f32 %v2530, %v2632
      %v2667 = vsub.f32 %v2531, %v2637
      %v2668 = vsub.f32 %v2532, %v2642
      %v2669 = vsub.f32 %v2533, %v2647
      %v2670 = vsub.f32 %v2534, %v2652
      %v2671 = vsub.f32 %v2535, %v2657
      %v2672 = vsub.f32 %v2536, %v2662
      %v2673 = vmul.f32 %v2664, %v2664
      %v2674 = vmul.f32 %v2665, %v2665
      %v2675 = vmul.f32 %v2666, %v2666
      %v2676 = vmul.f32 %v2667, %v2667
      %v2677 = vmul.f32 %v2668, %v2668
      %v2678 = vmul.f32 %v2669, %v2669
      %v2679 = vmul.f32 %v2670, %v2670
      %v2680 = vmul.f32 %v2671, %v2671
      %v2681 = vmul.f32 %v2672, %v2672
      %v2683 = vsel %vm635, %v2673, 0
      %v2686 = vsel %vm635, %v2674, 0
      %v2689 = vsel %vm635, %v2675, 0
      %v2692 = vsel %vm635, %v2676, 0
      %v2695 = vsel %vm635, %v2677, 0
      %v2698 = vsel %vm635, %v2678, 0
      %v2701 = vsel %vm635, %v2679, 0
      %v2704 = vsel %vm635, %v2680, 0
      %v2707 = vsel %vm635, %v2681, 0
      %2709 = vmatpush.msra.mxu0 0.0
      %2710 = vmatpush.msra.mxu0 0.0
      %2711 = vmatpush.msra.mxu0 0.0
      %2712 = vmatpush.msra.mxu0 0.0
      %2713 = vmatpush.msra.mxu0 0.0
      %2714 = vmatpush.msra.mxu0 0.0
      %2715 = vmatpush.msra.mxu0 0.0
      %2716 = vmatpush.msra.mxu0 0.0
      %2717 = vmatpush.msra.mxu0 0.0
      %2718 = vmatpush.msra.mxu0 0.0
      %2719 = vmatpush.msra.mxu0 0.0
      %2720 = vmatpush.msra.mxu0 0.0
      %2721 = vmatpush.msra.mxu0 1.0
      %2722 = vmatpush.msra.mxu0 1.0
      %2723 = vmatpush.msra.mxu0 1.0
      %2724 = vmatpush.msra.mxu0 1.0
      %2725 = vmatmul.f32.gmra.mxu0 %v2683
      %v2726 = vpop.f32.mrf.mxu0
      %v2727 = vadd.f32 0.0, %v2726
      %2728 = vmatmul.f32.gmra.mxu0 %v2686
      %v2729 = vpop.f32.mrf.mxu0
      %v2730 = vadd.f32 0.0, %v2729
      %2731 = vmatmul.f32.gmra.mxu0 %v2689
      %v2732 = vpop.f32.mrf.mxu0
      %v2733 = vadd.f32 0.0, %v2732
      %2734 = vmatmul.f32.gmra.mxu0 %v2692
      %v2735 = vpop.f32.mrf.mxu0
      %v2736 = vadd.f32 0.0, %v2735
      %2737 = vmatmul.f32.gmra.mxu0 %v2695
      %v2738 = vpop.f32.mrf.mxu0
      %v2739 = vadd.f32 0.0, %v2738
      %2740 = vmatmul.f32.gmra.mxu0 %v2698
      %v2741 = vpop.f32.mrf.mxu0
      %v2742 = vadd.f32 0.0, %v2741
      %2743 = vmatmul.f32.gmra.mxu0 %v2701
      %v2744 = vpop.f32.mrf.mxu0
      %v2745 = vadd.f32 0.0, %v2744
      %2746 = vmatmul.f32.gmra.mxu0 %v2704
      %v2747 = vpop.f32.mrf.mxu0
      %v2748 = vadd.f32 0.0, %v2747
      %2749 = vmatmul.f32.gmra.mxu0 %v2707
      %v2750 = vpop.f32.mrf.mxu0
      %v2751 = vadd.f32 0.0, %v2750
      %2752 = vdwg.mxu0
      %v2753 = vmul.f32 %v2727, 0.03125
      %v2754 = vmul.f32 %v2730, 0.03125
      %v2755 = vmul.f32 %v2733, 0.03125
      %v2756 = vmul.f32 %v2736, 0.03125
      %v2757 = vmul.f32 %v2739, 0.03125
      %v2758 = vmul.f32 %v2742, 0.03125
      %v2759 = vmul.f32 %v2745, 0.03125
      %v2760 = vmul.f32 %v2748, 0.03125
      %v2761 = vmul.f32 %v2751, 0.03125
      %v2762 = vadd.f32 %v2753, 1e-05
      %v2763 = vadd.f32 %v2754, 1e-05
      %v2764 = vadd.f32 %v2755, 1e-05
      %v2765 = vadd.f32 %v2756, 1e-05
      %v2766 = vadd.f32 %v2757, 1e-05
      %v2767 = vadd.f32 %v2758, 1e-05
      %v2768 = vadd.f32 %v2759, 1e-05
      %v2769 = vadd.f32 %v2760, 1e-05
      %v2770 = vadd.f32 %v2761, 1e-05
      %v2771 = vrsqrt.pop %v2762
      %v2772 = vmul.f32 %v2771, %v2762
      %v2773 = vmul.f32 %v2772, %v2771
      %v2774 = vmul.f32 0.5, %v2773
      %v2775 = vsub.f32 1.5, %v2774
      %v2776 = vmul.f32 %v2771, %v2775
      %vm2777 = vweird.f32 %v2762
      %vm2778 = vweird.f32 %v2771
      %vm2779 = vmor %vm2777, %vm2778
      %v2780 = vsel %vm2779, %v2771, %v2776
      %v2781 = vrsqrt.pop %v2763
      %v2782 = vmul.f32 %v2781, %v2763
      %v2783 = vmul.f32 %v2782, %v2781
      %v2784 = vmul.f32 0.5, %v2783
      %v2785 = vsub.f32 1.5, %v2784
      %v2786 = vmul.f32 %v2781, %v2785
      %vm2787 = vweird.f32 %v2763
      %vm2788 = vweird.f32 %v2781
      %vm2789 = vmor %vm2787, %vm2788
      %v2790 = vsel %vm2789, %v2781, %v2786
      %v2791 = vrsqrt.pop %v2764
      %v2792 = vmul.f32 %v2791, %v2764
      %v2793 = vmul.f32 %v2792, %v2791
      %v2794 = vmul.f32 0.5, %v2793
      %v2795 = vsub.f32 1.5, %v2794
      %v2796 = vmul.f32 %v2791, %v2795
      %vm2797 = vweird.f32 %v2764
      %vm2798 = vweird.f32 %v2791
      %vm2799 = vmor %vm2797, %vm2798
      %v2800 = vsel %vm2799, %v2791, %v2796
      %v2801 = vrsqrt.pop %v2765
      %v2802 = vmul.f32 %v2801, %v2765
      %v2803 = vmul.f32 %v2802, %v2801
      %v2804 = vmul.f32 0.5, %v2803
      %v2805 = vsub.f32 1.5, %v2804
      %v2806 = vmul.f32 %v2801, %v2805
      %vm2807 = vweird.f32 %v2765
      %vm2808 = vweird.f32 %v2801
      %vm2809 = vmor %vm2807, %vm2808
      %v2810 = vsel %vm2809, %v2801, %v2806
      %v2811 = vrsqrt.pop %v2766
      %v2812 = vmul.f32 %v2811, %v2766
      %v2813 = vmul.f32 %v2812, %v2811
      %v2814 = vmul.f32 0.5, %v2813
      %v2815 = vsub.f32 1.5, %v2814
      %v2816 = vmul.f32 %v2811, %v2815
      %vm2817 = vweird.f32 %v2766
      %vm2818 = vweird.f32 %v2811
      %vm2819 = vmor %vm2817, %vm2818
      %v2820 = vsel %vm2819, %v2811, %v2816
      %v2821 = vrsqrt.pop %v2767
      %v2822 = vmul.f32 %v2821, %v2767
      %v2823 = vmul.f32 %v2822, %v2821
      %v2824 = vmul.f32 0.5, %v2823
      %v2825 = vsub.f32 1.5, %v2824
      %v2826 = vmul.f32 %v2821, %v2825
      %vm2827 = vweird.f32 %v2767
      %vm2828 = vweird.f32 %v2821
      %vm2829 = vmor %vm2827, %vm2828
      %v2830 = vsel %vm2829, %v2821, %v2826
      %v2831 = vrsqrt.pop %v2768
      %v2832 = vmul.f32 %v2831, %v2768
      %v2833 = vmul.f32 %v2832, %v2831
      %v2834 = vmul.f32 0.5, %v2833
      %v2835 = vsub.f32 1.5, %v2834
      %v2836 = vmul.f32 %v2831, %v2835
      %vm2837 = vweird.f32 %v2768
      %vm2838 = vweird.f32 %v2831
      %vm2839 = vmor %vm2837, %vm2838
      %v2840 = vsel %vm2839, %v2831, %v2836
      %v2841 = vrsqrt.pop %v2769
      %v2842 = vmul.f32 %v2841, %v2769
      %v2843 = vmul.f32 %v2842, %v2841
      %v2844 = vmul.f32 0.5, %v2843
      %v2845 = vsub.f32 1.5, %v2844
      %v2846 = vmul.f32 %v2841, %v2845
      %vm2847 = vweird.f32 %v2769
      %vm2848 = vweird.f32 %v2841
      %vm2849 = vmor %vm2847, %vm2848
      %v2850 = vsel %vm2849, %v2841, %v2846
      %v2851 = vrsqrt.pop %v2770
      %v2852 = vmul.f32 %v2851, %v2770
      %v2853 = vmul.f32 %v2852, %v2851
      %v2854 = vmul.f32 0.5, %v2853
      %v2855 = vsub.f32 1.5, %v2854
      %v2856 = vmul.f32 %v2851, %v2855
      %vm2857 = vweird.f32 %v2770
      %vm2858 = vweird.f32 %v2851
      %vm2859 = vmor %vm2857, %vm2858
      %v2860 = vsel %vm2859, %v2851, %v2856
      %2862 = vset.pattern.permute.xlu0 0
      %2863 = vperm.xlu0 %2862, %v2780
      %v2864 = vpop.permute.xlu0 %2863
      %2867 = vset.pattern.permute.xlu0 0
      %2868 = vperm.xlu0 %2867, %v2790
      %v2869 = vpop.permute.xlu0 %2868
      %2872 = vset.pattern.permute.xlu0 0
      %2873 = vperm.xlu0 %2872, %v2800
      %v2874 = vpop.permute.xlu0 %2873
      %2877 = vset.pattern.permute.xlu0 0
      %2878 = vperm.xlu0 %2877, %v2810
      %v2879 = vpop.permute.xlu0 %2878
      %2882 = vset.pattern.permute.xlu0 0
      %2883 = vperm.xlu0 %2882, %v2820
      %v2884 = vpop.permute.xlu0 %2883
      %2887 = vset.pattern.permute.xlu0 0
      %2888 = vperm.xlu0 %2887, %v2830
      %v2889 = vpop.permute.xlu0 %2888
      %2892 = vset.pattern.permute.xlu0 0
      %2893 = vperm.xlu0 %2892, %v2840
      %v2894 = vpop.permute.xlu0 %2893
      %2897 = vset.pattern.permute.xlu0 0
      %2898 = vperm.xlu0 %2897, %v2850
      %v2899 = vpop.permute.xlu0 %2898
      %2902 = vset.pattern.permute.xlu0 0
      %2903 = vperm.xlu0 %2902, %v2860
      %v2904 = vpop.permute.xlu0 %2903
      %v2906 = vmul.f32 %v2664, %v2864
      %v2907 = vmul.f32 %v2665, %v2869
      %v2908 = vmul.f32 %v2666, %v2874
      %v2909 = vmul.f32 %v2667, %v2879
      %v2910 = vmul.f32 %v2668, %v2884
      %v2911 = vmul.f32 %v2669, %v2889
      %v2912 = vmul.f32 %v2670, %v2894
      %v2913 = vmul.f32 %v2671, %v2899
      %v2914 = vmul.f32 %v2672, %v2904
      %v2915 = vperm.slane %v2537, 0
      %v2916 = vmul.f32 %v2906, %v2915
      %v2917 = vmul.f32 %v2907, %v2915
      %v2918 = vmul.f32 %v2908, %v2915
      %v2919 = vmul.f32 %v2909, %v2915
      %v2920 = vmul.f32 %v2910, %v2915
      %v2921 = vmul.f32 %v2911, %v2915
      %v2922 = vmul.f32 %v2912, %v2915
      %v2923 = vmul.f32 %v2913, %v2915
      %v2924 = vmul.f32 %v2914, %v2915
      %v2925 = vperm.slane %v2538, 0
      %v2926 = vadd.f32 %v2916, %v2925
      %v2927 = vadd.f32 %v2917, %v2925
      %v2928 = vadd.f32 %v2918, %v2925
      %v2929 = vadd.f32 %v2919, %v2925
      %v2930 = vadd.f32 %v2920, %v2925
      %v2931 = vadd.f32 %v2921, %v2925
      %v2932 = vadd.f32 %v2922, %v2925
      %v2933 = vadd.f32 %v2923, %v2925
      %v2934 = vadd.f32 %v2924, %v2925
      %v2935 = vperm.slane %v1395, 0
      %v2937 = vsel %vm635, %v2926, 0
      %v2940 = vsel %vm635, %v2927, 0
      %v2943 = vsel %vm635, %v2928, 0
      %v2946 = vsel %vm635, %v2929, 0
      %v2949 = vsel %vm635, %v2930, 0
      %v2952 = vsel %vm635, %v2931, 0
      %v2955 = vsel %vm635, %v2932, 0
      %v2958 = vsel %vm635, %v2933, 0
      %v2961 = vsel %vm635, %v2934, 0
      %2963 = vmatpush.msra.mxu0 0.0
      %2964 = vmatpush.msra.mxu0 0.0
      %2965 = vmatpush.msra.mxu0 0.0
      %2966 = vmatpush.msra.mxu0 0.0
      %2967 = vmatpush.msra.mxu0 0.0
      %2968 = vmatpush.msra.mxu0 0.0
      %2969 = vmatpush.msra.mxu0 0.0
      %2970 = vmatpush.msra.mxu0 0.0
      %2971 = vmatpush.msra.mxu0 0.0
      %2972 = vmatpush.msra.mxu0 0.0
      %2973 = vmatpush.msra.mxu0 0.0
      %2974 = vmatpush.msra.mxu0 0.0
      %2975 = vmatpush.msra.mxu0 %v1394
      %2976 = vmatpush.msra.mxu0 %v1393
      %2977 = vmatpush.msra.mxu0 %v1392
      %2978 = vmatpush.msra.mxu0 %v1391
      %2979 = vmatmul.f32.gmra.mxu0 %v2937
      %v2980 = vpop.f32.mrf.mxu0
      %v2981 = vadd.f32 %v2935, %v2980
      %2982 = vmatmul.f32.gmra.mxu0 %v2940
      %v2983 = vpop.f32.mrf.mxu0
      %v2984 = vadd.f32 %v2935, %v2983
      %2985 = vmatmul.f32.gmra.mxu0 %v2943
      %v2986 = vpop.f32.mrf.mxu0
      %v2987 = vadd.f32 %v2935, %v2986
      %2988 = vmatmul.f32.gmra.mxu0 %v2946
      %v2989 = vpop.f32.mrf.mxu0
      %v2990 = vadd.f32 %v2935, %v2989
      %2991 = vmatmul.f32.gmra.mxu0 %v2949
      %v2992 = vpop.f32.mrf.mxu0
      %v2993 = vadd.f32 %v2935, %v2992
      %2994 = vmatmul.f32.gmra.mxu0 %v2952
      %v2995 = vpop.f32.mrf.mxu0
      %v2996 = vadd.f32 %v2935, %v2995
      %2997 = vmatmul.f32.gmra.mxu0 %v2955
      %v2998 = vpop.f32.mrf.mxu0
      %v2999 = vadd.f32 %v2935, %v2998
      %3000 = vmatmul.f32.gmra.mxu0 %v2958
      %v3001 = vpop.f32.mrf.mxu0
      %v3002 = vadd.f32 %v2935, %v3001
      %3003 = vmatmul.f32.gmra.mxu0 %v2961
      %v3004 = vpop.f32.mrf.mxu0
      %v3005 = vadd.f32 %v2935, %v3004
      %3006 = vdwg.mxu0
      %v3007 = vmax.f32 %v2981, 0.0
      %v3008 = vmax.f32 %v2984, 0.0
      %v3009 = vmax.f32 %v2987, 0.0
      %v3010 = vmax.f32 %v2990, 0.0
      %v3011 = vmax.f32 %v2993, 0.0
      %v3012 = vmax.f32 %v2996, 0.0
      %v3013 = vmax.f32 %v2999, 0.0
      %v3014 = vmax.f32 %v3002, 0.0
      %v3015 = vmax.f32 %v3005, 0.0
      %v3016 = vld [vmem:[%s7 + $0x140] sm:$0xff]
      %v3017 = vld [vmem:[%s7 + $0x148] sm:$0xff]
      %v3018 = vld [vmem:[%s7 + $0x150] sm:$0xff]
      %v3019 = vld [vmem:[%s7 + $0x158] sm:$0xff]
      %v3020 = vld [vmem:[%s7 + $0x160] sm:$0xff]
      %v3021 = vld [vmem:[%s7 + $0x168] sm:$0xff]
      %v3022 = vld [vmem:[%s7 + $0x170] sm:$0xff]
      %v3023 = vld [vmem:[%s7 + $0x178] sm:$0xff]
      %v3024 = vld [vmem:[%s7 + $0x180] sm:$0xff]
      %v3025 = vld [vmem:[%s7 + $0x188] sm:$0xff]
      %v3026 = vld [vmem:[%s7 + $0x190] sm:$0xff]
      %v3027 = vld [vmem:[%s7 + $0x198] sm:$0xff]
      %v3028 = vld [vmem:[%s7 + $0x1a0] sm:$0xff]
      %v3029 = vld [vmem:[%s7 + $0x1a8] sm:$0xff]
      %v3030 = vld [vmem:[%s7 + $0x1b0] sm:$0xff]
      %v3031 = vld [vmem:[%s7 + $0x1b8] sm:$0xff]
      %v3032 = vld [vmem:[%s8 + $0xd] sm:$0x1]
      %v3033 = vperm.slane %v3032, 0
      %3034 = vmatpush.msra.mxu0 %v3031
      %3035 = vmatpush.msra.mxu0 %v3030
      %3036 = vmatpush.msra.mxu0 %v3029
      %3037 = vmatpush.msra.mxu0 %v3028
      %3038 = vmatpush.msra.mxu0 %v3027
      %3039 = vmatpush.msra.mxu0 %v3026
      %3040 = vmatpush.msra.mxu0 %v3025
      %3041 = vmatpush.msra.mxu0 %v3024
      %3042 = vmatpush.msra.mxu0 %v3023
      %3043 = vmatpush.msra.mxu0 %v3022
      %3044 = vmatpush.msra.mxu0 %v3021
      %3045 = vmatpush.msra.mxu0 %v3020
      %3046 = vmatpush.msra.mxu0 %v3019
      %3047 = vmatpush.msra.mxu0 %v3018
      %3048 = vmatpush.msra.mxu0 %v3017
      %3049 = vmatpush.msra.mxu0 %v3016
      %3050 = vmatmul.f32.gmra.mxu0 %v3007
      %v3051 = vpop.f32.mrf.mxu0
      %v3052 = vadd.f32 %v3033, %v3051
      %3053 = vmatmul.f32.gmra.mxu0 %v3008
      %v3054 = vpop.f32.mrf.mxu0
      %v3055 = vadd.f32 %v3033, %v3054
      %3056 = vmatmul.f32.gmra.mxu0 %v3009
      %v3057 = vpop.f32.mrf.mxu0
      %v3058 = vadd.f32 %v3033, %v3057
      %3059 = vmatmul.f32.gmra.mxu0 %v3010
      %v3060 = vpop.f32.mrf.mxu0
      %v3061 = vadd.f32 %v3033, %v3060
      %3062 = vmatmul.f32.gmra.mxu0 %v3011
      %v3063 = vpop.f32.mrf.mxu0
      %v3064 = vadd.f32 %v3033, %v3063
      %3065 = vmatmul.f32.gmra.mxu0 %v3012
      %v3066 = vpop.f32.mrf.mxu0
      %v3067 = vadd.f32 %v3033, %v3066
      %3068 = vmatmul.f32.gmra.mxu0 %v3013
      %v3069 = vpop.f32.mrf.mxu0
      %v3070 = vadd.f32 %v3033, %v3069
      %3071 = vmatmul.f32.gmra.mxu0 %v3014
      %v3072 = vpop.f32.mrf.mxu0
      %v3073 = vadd.f32 %v3033, %v3072
      %3074 = vmatmul.f32.gmra.mxu0 %v3015
      %v3075 = vpop.f32.mrf.mxu0
      %v3076 = vadd.f32 %v3033, %v3075
      %3077 = vdwg.mxu0
      %v3078 = vadd.f32 %v2926, %v3052
      %v3079 = vadd.f32 %v2927, %v3055
      %v3080 = vadd.f32 %v2928, %v3058
      %v3081 = vadd.f32 %v2929, %v3061
      %v3082 = vadd.f32 %v2930, %v3064
      %v3083 = vadd.f32 %v2931, %v3067
      %v3084 = vadd.f32 %v2932, %v3070
      %v3085 = vadd.f32 %v2933, %v3073
      %v3086 = vadd.f32 %v2934, %v3076
      %v3087 = vld [vmem:[%s8 + $0xe] sm:$0x1]
      %v3088 = vld [vmem:[%s8 + $0xf] sm:$0x1]
      %v3090 = vsel %vm635, %v3078, 0
      %v3093 = vsel %vm635, %v3079, 0
      %v3096 = vsel %vm635, %v3080, 0
      %v3099 = vsel %vm635, %v3081, 0
      %v3102 = vsel %vm635, %v3082, 0
      %v3105 = vsel %vm635, %v3083, 0
      %v3108 = vsel %vm635, %v3084, 0
      %v3111 = vsel %vm635, %v3085, 0
      %v3114 = vsel %vm635, %v3086, 0
      %3116 = vmatpush.msra.mxu0 0.0
      %3117 = vmatpush.msra.mxu0 0.0
      %3118 = vmatpush.msra.mxu0 0.0
      %3119 = vmatpush.msra.mxu0 0.0
      %3120 = vmatpush.msra.mxu0 0.0
      %3121 = vmatpush.msra.mxu0 0.0
      %3122 = vmatpush.msra.mxu0 0.0
      %3123 = vmatpush.msra.mxu0 0.0
      %3124 = vmatpush.msra.mxu0 0.0
      %3125 = vmatpush.msra.mxu0 0.0
      %3126 = vmatpush.msra.mxu0 0.0
      %3127 = vmatpush.msra.mxu0 0.0
      %3128 = vmatpush.msra.mxu0 1.0
      %3129 = vmatpush.msra.mxu0 1.0
      %3130 = vmatpush.msra.mxu0 1.0
      %3131 = vmatpush.msra.mxu0 1.0
      %3132 = vmatmul.f32.gmra.mxu0 %v3090
      %v3133 = vpop.f32.mrf.mxu0
      %v3134 = vadd.f32 0.0, %v3133
      %3135 = vmatmul.f32.gmra.mxu0 %v3093
      %v3136 = vpop.f32.mrf.mxu0
      %v3137 = vadd.f32 0.0, %v3136
      %3138 = vmatmul.f32.gmra.mxu0 %v3096
      %v3139 = vpop.f32.mrf.mxu0
      %v3140 = vadd.f32 0.0, %v3139
      %3141 = vmatmul.f32.gmra.mxu0 %v3099
      %v3142 = vpop.f32.mrf.mxu0
      %v3143 = vadd.f32 0.0, %v3142
      %3144 = vmatmul.f32.gmra.mxu0 %v3102
      %v3145 = vpop.f32.mrf.mxu0
      %v3146 = vadd.f32 0.0, %v3145
      %3147 = vmatmul.f32.gmra.mxu0 %v3105
      %v3148 = vpop.f32.mrf.mxu0
      %v3149 = vadd.f32 0.0, %v3148
      %3150 = vmatmul.f32.gmra.mxu0 %v3108
      %v3151 = vpop.f32.mrf.mxu0
      %v3152 = vadd.f32 0.0, %v3151
      %3153 = vmatmul.f32.gmra.mxu0 %v3111
      %v3154 = vpop.f32.mrf.mxu0
      %v3155 = vadd.f32 0.0, %v3154
      %3156 = vmatmul.f32.gmra.mxu0 %v3114
      %v3157 = vpop.f32.mrf.mxu0
      %v3158 = vadd.f32 0.0, %v3157
      %3159 = vdwg.mxu0
      %v3160 = vmul.f32 %v3134, 0.03125
      %v3161 = vmul.f32 %v3137, 0.03125
      %v3162 = vmul.f32 %v3140, 0.03125
      %v3163 = vmul.f32 %v3143, 0.03125
      %v3164 = vmul.f32 %v3146, 0.03125
      %v3165 = vmul.f32 %v3149, 0.03125
      %v3166 = vmul.f32 %v3152, 0.03125
      %v3167 = vmul.f32 %v3155, 0.03125
      %v3168 = vmul.f32 %v3158, 0.03125
      %3170 = vset.pattern.permute.xlu0 0
      %3171 = vperm.xlu0 %3170, %v3160
      %v3172 = vpop.permute.xlu0 %3171
      %3175 = vset.pattern.permute.xlu0 0
      %3176 = vperm.xlu0 %3175, %v3161
      %v3177 = vpop.permute.xlu0 %3176
      %3180 = vset.pattern.permute.xlu0 0
      %3181 = vperm.xlu0 %3180, %v3162
      %v3182 = vpop.permute.xlu0 %3181
      %3185 = vset.pattern.permute.xlu0 0
      %3186 = vperm.xlu0 %3185, %v3163
      %v3187 = vpop.permute.xlu0 %3186
      %3190 = vset.pattern.permute.xlu0 0
      %3191 = vperm.xlu0 %3190, %v3164
      %v3192 = vpop.permute.xlu0 %3191
      %3195 = vset.pattern.permute.xlu0 0
      %3196 = vperm.xlu0 %3195, %v3165
      %v3197 = vpop.permute.xlu0 %3196
      %3200 = vset.pattern.permute.xlu0 0
      %3201 = vperm.xlu0 %3200, %v3166
      %v3202 = vpop.permute.xlu0 %3201
      %3205 = vset.pattern.permute.xlu0 0
      %3206 = vperm.xlu0 %3205, %v3167
      %v3207 = vpop.permute.xlu0 %3206
      %3210 = vset.pattern.permute.xlu0 0
      %3211 = vperm.xlu0 %3210, %v3168
      %v3212 = vpop.permute.xlu0 %3211
      %v3214 = vsub.f32 %v3078, %v3172
      %v3215 = vsub.f32 %v3079, %v3177
      %v3216 = vsub.f32 %v3080, %v3182
      %v3217 = vsub.f32 %v3081, %v3187
      %v3218 = vsub.f32 %v3082, %v3192
      %v3219 = vsub.f32 %v3083, %v3197
      %v3220 = vsub.f32 %v3084, %v3202
      %v3221 = vsub.f32 %v3085, %v3207
      %v3222 = vsub.f32 %v3086, %v3212
      %v3223 = vmul.f32 %v3214, %v3214
      %v3224 = vmul.f32 %v3215, %v3215
      %v3225 = vmul.f32 %v3216, %v3216
      %v3226 = vmul.f32 %v3217, %v3217
      %v3227 = vmul.f32 %v3218, %v3218
      %v3228 = vmul.f32 %v3219, %v3219
      %v3229 = vmul.f32 %v3220, %v3220
      %v3230 = vmul.f32 %v3221, %v3221
      %v3231 = vmul.f32 %v3222, %v3222
      %v3233 = vsel %vm635, %v3223, 0
      %v3236 = vsel %vm635, %v3224, 0
      %v3239 = vsel %vm635, %v3225, 0
      %v3242 = vsel %vm635, %v3226, 0
      %v3245 = vsel %vm635, %v3227, 0
      %v3248 = vsel %vm635, %v3228, 0
      %v3251 = vsel %vm635, %v3229, 0
      %v3254 = vsel %vm635, %v3230, 0
      %v3257 = vsel %vm635, %v3231, 0
      %3259 = vmatpush.msra.mxu0 0.0
      %3260 = vmatpush.msra.mxu0 0.0
      %3261 = vmatpush.msra.mxu0 0.0
      %3262 = vmatpush.msra.mxu0 0.0
      %3263 = vmatpush.msra.mxu0 0.0
      %3264 = vmatpush.msra.mxu0 0.0
      %3265 = vmatpush.msra.mxu0 0.0
      %3266 = vmatpush.msra.mxu0 0.0
      %3267 = vmatpush.msra.mxu0 0.0
      %3268 = vmatpush.msra.mxu0 0.0
      %3269 = vmatpush.msra.mxu0 0.0
      %3270 = vmatpush.msra.mxu0 0.0
      %3271 = vmatpush.msra.mxu0 1.0
      %3272 = vmatpush.msra.mxu0 1.0
      %3273 = vmatpush.msra.mxu0 1.0
      %3274 = vmatpush.msra.mxu0 1.0
      %3275 = vmatmul.f32.gmra.mxu0 %v3233
      %v3276 = vpop.f32.mrf.mxu0
      %v3277 = vadd.f32 0.0, %v3276
      %3278 = vmatmul.f32.gmra.mxu0 %v3236
      %v3279 = vpop.f32.mrf.mxu0
      %3280 = vmatmul.f32.gmra.mxu0 %v3239
      %v3281 = vpop.f32.mrf.mxu0
      %3282 = vmatmul.f32.gmra.mxu0 %v3242
      %v3283 = vpop.f32.mrf.mxu0
      %3284 = vmatmul.f32.gmra.mxu0 %v3245
      %v3285 = vpop.f32.mrf.mxu0
      %3286 = vmatmul.f32.gmra.mxu0 %v3248
      %v3287 = vpop.f32.mrf.mxu0
      %3288 = vmatmul.f32.gmra.mxu0 %v3251
      %v3289 = vpop.f32.mrf.mxu0
      %3290 = vmatmul.f32.gmra.mxu0 %v3254
      %v3291 = vpop.f32.mrf.mxu0
      %3292 = vmatmul.f32.gmra.mxu0 %v3257
      %v3293 = vpop.f32.mrf.mxu0
      %3294 = vdwg.mxu0
      %v3295 = vmul.f32 %v3277, 0.03125
      %v3296 = vadd.f32 %v3295, 1e-05
      %v3297 = vrsqrt.pop %v3296
      %v3298 = vmul.f32 %v3297, %v3296
      %v3299 = vmul.f32 %v3298, %v3297
      %v3300 = vmul.f32 0.5, %v3299
      %v3301 = vsub.f32 1.5, %v3300
      %v3302 = vmul.f32 %v3297, %v3301
      %vm3303 = vweird.f32 %v3296
      %vm3304 = vweird.f32 %v3297
      %vm3305 = vmor %vm3303, %vm3304
      %v3306 = vsel %vm3305, %v3297, %v3302
      %3308 = vset.pattern.permute.xlu0 0
      %3309 = vperm.xlu0 %3308, %v3306
      %v3310 = vpop.permute.xlu0 %3309
      %v3312 = vmul.f32 %v3214, %v3310
      %v3313 = vperm.slane %v3087, 0
      %v3314 = vmul.f32 %v3312, %v3313
      %v3315 = vperm.slane %v3088, 0
      %v3316 = vadd.f32 %v3314, %v3315
      %v3317 = vld [vmem:[%s7 + $0x1c0] sm:$0xff]
      %v3318 = vld [vmem:[%s7 + $0x1c8] sm:$0xff]
      %v3319 = vld [vmem:[%s7 + $0x1d0] sm:$0xff]
      %v3320 = vld [vmem:[%s7 + $0x1d8] sm:$0xff]
      %v3321 = vld [vmem:[%s8 + $0x10] sm:$0x1]
      %v3322 = vperm.slane %v3321, 0
      %v3324 = vsel %vm635, %v3316, 0
      %3326 = vmatpush.msra.mxu0 0.0
      %3327 = vmatpush.msra.mxu0 0.0
      %3328 = vmatpush.msra.mxu0 0.0
      %3329 = vmatpush.msra.mxu0 0.0
      %3330 = vmatpush.msra.mxu0 0.0
      %3331 = vmatpush.msra.mxu0 0.0
      %3332 = vmatpush.msra.mxu0 0.0
      %3333 = vmatpush.msra.mxu0 0.0
      %3334 = vmatpush.msra.mxu0 0.0
      %3335 = vmatpush.msra.mxu0 0.0
      %3336 = vmatpush.msra.mxu0 0.0
      %3337 = vmatpush.msra.mxu0 0.0
      %3338 = vmatpush.msra.mxu0 %v3320
      %3339 = vmatpush.msra.mxu0 %v3319
      %3340 = vmatpush.msra.mxu0 %v3318
      %3341 = vmatpush.msra.mxu0 %v3317
      %3342 = vmatmul.f32.gmra.mxu0 %v3324
      %v3343 = vpop.f32.mrf.mxu0
      %v3344 = vadd.f32 %v3322, %v3343
      %3345 = vdwg.mxu0
      %v3346 = vmax.f32 %v3344, 0.0
      %v3347 = vld [vmem:[%s7 + $0x1e0] sm:$0xff]
      %v3348 = vld [vmem:[%s7 + $0x1e8] sm:$0xff]
      %v3349 = vld [vmem:[%s7 + $0x1f0] sm:$0xff]
      %v3350 = vld [vmem:[%s7 + $0x1f8] sm:$0xff]
      %v3351 = vld [vmem:[%s8 + $0x11] sm:$0x1]
      %v3352 = vperm.slane %v3351, 0
      %v3354 = vsel %vm635, %v3346, 0
      %3356 = vmatpush.msra.mxu0 0.0
      %3357 = vmatpush.msra.mxu0 0.0
      %3358 = vmatpush.msra.mxu0 0.0
      %3359 = vmatpush.msra.mxu0 0.0
      %3360 = vmatpush.msra.mxu0 0.0
      %3361 = vmatpush.msra.mxu0 0.0
      %3362 = vmatpush.msra.mxu0 0.0
      %3363 = vmatpush.msra.mxu0 0.0
      %3364 = vmatpush.msra.mxu0 0.0
      %3365 = vmatpush.msra.mxu0 0.0
      %3366 = vmatpush.msra.mxu0 0.0
      %3367 = vmatpush.msra.mxu0 0.0
      %3368 = vmatpush.msra.mxu0 %v3350
      %3369 = vmatpush.msra.mxu0 %v3349
      %3370 = vmatpush.msra.mxu0 %v3348
      %3371 = vmatpush.msra.mxu0 %v3347
      %3372 = vmatmul.f32.gmra.mxu0 %v3354
      %v3373 = vpop.f32.mrf.mxu0
      %v3374 = vadd.f32 %v3352, %v3373
      %3375 = vdwg.mxu0
      %v3376 = vsel %vm1065, %v3374, 0.0
      %v3377 = vld [vmem:[%s488] sm:$0xff]
      %v3378 = vld [vmem:[%s7 + $0x200] sm:$0x3]
      %3380 = vset.pattern.permute.xlu0 0
      %3381 = vperm.xlu0 %3380, %v3377
      %v3382 = vpop.permute.xlu0 %3381
      %v3384 = vperm.slane %v3378, 0
      %v3385 = vmul.f32 %v3382, %v3384
      %3386 = vset.pattern.permute.xlu0 1
      %3387 = vperm.xlu0 %3386, %v3377
      %v3388 = vpop.permute.xlu0 %3387
      %v3390 = vperm.slane %v3378, 1
      %v3391 = vmul.f32 %v3388, %v3390
      %v3392 = vadd.f32 %v3385, %v3391
      %v3393 = vld [vmem:[%s8 + $0x12] sm:$0x1]
      %v3394 = vperm.slane %v3393, 0
      %v3395 = vadd.f32 %v3392, %v3394
      %v3396 = vmax.f32 %v3395, 0.0
      %v3397 = vld [vmem:[%s7 + $0x208] sm:$0xff]
      %v3398 = vld [vmem:[%s7 + $0x210] sm:$0xff]
      %v3399 = vld [vmem:[%s7 + $0x218] sm:$0xff]
      %v3400 = vld [vmem:[%s7 + $0x220] sm:$0xff]
      %v3401 = vld [vmem:[%s8 + $0x13] sm:$0x1]
      %v3402 = vperm.slane %v3401, 0
      %v3404 = vsel %vm635, %v3396, 0
      %3406 = vmatpush.msra.mxu0 0.0
      %3407 = vmatpush.msra.mxu0 0.0
      %3408 = vmatpush.msra.mxu0 0.0
      %3409 = vmatpush.msra.mxu0 0.0
      %3410 = vmatpush.msra.mxu0 0.0
      %3411 = vmatpush.msra.mxu0 0.0
      %3412 = vmatpush.msra.mxu0 0.0
      %3413 = vmatpush.msra.mxu0 0.0
      %3414 = vmatpush.msra.mxu0 0.0
      %3415 = vmatpush.msra.mxu0 0.0
      %3416 = vmatpush.msra.mxu0 0.0
      %3417 = vmatpush.msra.mxu0 0.0
      %3418 = vmatpush.msra.mxu0 %v3400
      %3419 = vmatpush.msra.mxu0 %v3399
      %3420 = vmatpush.msra.mxu0 %v3398
      %3421 = vmatpush.msra.mxu0 %v3397
      %3422 = vmatmul.f32.gmra.mxu0 %v3404
      %v3423 = vpop.f32.mrf.mxu0
      %v3424 = vadd.f32 %v3402, %v3423
      %3425 = vdwg.mxu0
      %v3426 = vmax.f32 %v3424, 0.0
      %v3427 = vld [vmem:[%s7 + $0x228] sm:$0xff]
      %v3428 = vld [vmem:[%s7 + $0x230] sm:$0xff]
      %v3429 = vld [vmem:[%s7 + $0x238] sm:$0xff]
      %v3430 = vld [vmem:[%s7 + $0x240] sm:$0xff]
      %v3431 = vld [vmem:[%s8 + $0x14] sm:$0x1]
      %v3432 = vperm.slane %v3431, 0
      %v3434 = vsel %vm635, %v3426, 0
      %3436 = vmatpush.msra.mxu0 0.0
      %3437 = vmatpush.msra.mxu0 0.0
      %3438 = vmatpush.msra.mxu0 0.0
      %3439 = vmatpush.msra.mxu0 0.0
      %3440 = vmatpush.msra.mxu0 0.0
      %3441 = vmatpush.msra.mxu0 0.0
      %3442 = vmatpush.msra.mxu0 0.0
      %3443 = vmatpush.msra.mxu0 0.0
      %3444 = vmatpush.msra.mxu0 0.0
      %3445 = vmatpush.msra.mxu0 0.0
      %3446 = vmatpush.msra.mxu0 0.0
      %3447 = vmatpush.msra.mxu0 0.0
      %3448 = vmatpush.msra.mxu0 %v3430
      %3449 = vmatpush.msra.mxu0 %v3429
      %3450 = vmatpush.msra.mxu0 %v3428
      %3451 = vmatpush.msra.mxu0 %v3427
      %3452 = vmatmul.f32.gmra.mxu0 %v3434
      %v3453 = vpop.f32.mrf.mxu0
      %v3454 = vadd.f32 %v3432, %v3453
      %3455 = vdwg.mxu0
      %v3456 = vld [vmem:[%s7 + $0x248] sm:$0xff]
      %v3457 = vld [vmem:[%s7 + $0x250] sm:$0xff]
      %v3458 = vld [vmem:[%s7 + $0x258] sm:$0xff]
      %v3459 = vld [vmem:[%s7 + $0x260] sm:$0xff]
      %v3460 = vld [vmem:[%s7 + $0x268] sm:$0xff]
      %v3461 = vld [vmem:[%s7 + $0x270] sm:$0xff]
      %v3462 = vld [vmem:[%s7 + $0x278] sm:$0xff]
      %v3463 = vld [vmem:[%s7 + $0x280] sm:$0xff]
      %v3465 = vsel %vm635, %v3376, 0
      %3467 = vmatpush.msra.mxu0 0.0
      %3468 = vmatpush.msra.mxu0 0.0
      %3469 = vmatpush.msra.mxu0 0.0
      %3470 = vmatpush.msra.mxu0 0.0
      %3471 = vmatpush.msra.mxu0 0.0
      %3472 = vmatpush.msra.mxu0 0.0
      %3473 = vmatpush.msra.mxu0 0.0
      %3474 = vmatpush.msra.mxu0 0.0
      %3475 = vmatpush.msra.mxu0 0.0
      %3476 = vmatpush.msra.mxu0 0.0
      %3477 = vmatpush.msra.mxu0 0.0
      %3478 = vmatpush.msra.mxu0 0.0
      %3479 = vmatpush.msra.mxu0 %v3463
      %3480 = vmatpush.msra.mxu0 %v3462
      %3481 = vmatpush.msra.mxu0 %v3461
      %3482 = vmatpush.msra.mxu0 %v3460
      %3483 = vmatmul.f32.gmra.mxu0 %v3465
      %v3484 = vpop.f32.mrf.mxu0
      %v3485 = vadd.f32 0.0, %v3484
      %3486 = vdwg.mxu0
      %v3488 = vsel %vm635, %v3454, 0
      %3490 = vmatpush.msra.mxu0 0.0
      %3491 = vmatpush.msra.mxu0 0.0
      %3492 = vmatpush.msra.mxu0 0.0
      %3493 = vmatpush.msra.mxu0 0.0
      %3494 = vmatpush.msra.mxu0 0.0
      %3495 = vmatpush.msra.mxu0 0.0
      %3496 = vmatpush.msra.mxu0 0.0
      %3497 = vmatpush.msra.mxu0 0.0
      %3498 = vmatpush.msra.mxu0 0.0
      %3499 = vmatpush.msra.mxu0 0.0
      %3500 = vmatpush.msra.mxu0 0.0
      %3501 = vmatpush.msra.mxu0 0.0
      %3502 = vmatpush.msra.mxu0 %v3459
      %3503 = vmatpush.msra.mxu0 %v3458
      %3504 = vmatpush.msra.mxu0 %v3457
      %3505 = vmatpush.msra.mxu0 %v3456
      %3506 = vmatmul.f32.gmra.mxu0 %v3488
      %v3507 = vpop.f32.mrf.mxu0
      %v3508 = vadd.f32 %v3485, %v3507
      %3509 = vdwg.mxu0
      %v3510 = vld [vmem:[%s8 + $0x15] sm:$0x1]
      %v3511 = vperm.slane %v3510, 0
      %v3512 = vadd.f32 %v3508, %v3511
      %v3513 = vmax.f32 %v3512, 0.0
      %v3514 = vld [vmem:[%s7 + $0x288] sm:$0xff]
      %v3515 = vld [vmem:[%s7 + $0x290] sm:$0xff]
      %v3516 = vld [vmem:[%s7 + $0x298] sm:$0xff]
      %v3517 = vld [vmem:[%s7 + $0x2a0] sm:$0xff]
      %v3518 = vld [vmem:[%s8 + $0x16] sm:$0x1]
      %v3519 = vperm.slane %v3518, 0
      %v3521 = vsel %vm635, %v3513, 0
      %3523 = vmatpush.msra.mxu0 0.0
      %3524 = vmatpush.msra.mxu0 0.0
      %3525 = vmatpush.msra.mxu0 0.0
      %3526 = vmatpush.msra.mxu0 0.0
      %3527 = vmatpush.msra.mxu0 0.0
      %3528 = vmatpush.msra.mxu0 0.0
      %3529 = vmatpush.msra.mxu0 0.0
      %3530 = vmatpush.msra.mxu0 0.0
      %3531 = vmatpush.msra.mxu0 0.0
      %3532 = vmatpush.msra.mxu0 0.0
      %3533 = vmatpush.msra.mxu0 0.0
      %3534 = vmatpush.msra.mxu0 0.0
      %3535 = vmatpush.msra.mxu0 %v3517
      %3536 = vmatpush.msra.mxu0 %v3516
      %3537 = vmatpush.msra.mxu0 %v3515
      %3538 = vmatpush.msra.mxu0 %v3514
      %3539 = vmatmul.f32.gmra.mxu0 %v3521
      %v3540 = vpop.f32.mrf.mxu0
      %v3541 = vadd.f32 %v3519, %v3540
      %3542 = vdwg.mxu0
      %v3543 = vmax.f32 %v3541, 0.0
      %v3544 = vld [vmem:[%s7 + $0x2a8] sm:$0xff]
      %v3545 = vld [vmem:[%s7 + $0x2b0] sm:$0xff]
      %v3546 = vld [vmem:[%s7 + $0x2b8] sm:$0xff]
      %v3547 = vld [vmem:[%s7 + $0x2c0] sm:$0xff]
      %v3548 = vld [vmem:[%s8 + $0x17] sm:$0x1]
      %v3549 = vperm.slane %v3548, 0
      %v3551 = vsel %vm635, %v3543, 0
      %3553 = vmatpush.msra.mxu0 0.0
      %3554 = vmatpush.msra.mxu0 0.0
      %3555 = vmatpush.msra.mxu0 0.0
      %3556 = vmatpush.msra.mxu0 0.0
      %3557 = vmatpush.msra.mxu0 0.0
      %3558 = vmatpush.msra.mxu0 0.0
      %3559 = vmatpush.msra.mxu0 0.0
      %3560 = vmatpush.msra.mxu0 0.0
      %3561 = vmatpush.msra.mxu0 0.0
      %3562 = vmatpush.msra.mxu0 0.0
      %3563 = vmatpush.msra.mxu0 0.0
      %3564 = vmatpush.msra.mxu0 0.0
      %3565 = vmatpush.msra.mxu0 %v3547
      %3566 = vmatpush.msra.mxu0 %v3546
      %3567 = vmatpush.msra.mxu0 %v3545
      %3568 = vmatpush.msra.mxu0 %v3544
      %3569 = vmatmul.f32.gmra.mxu0 %v3551
      %v3570 = vpop.f32.mrf.mxu0
      %v3571 = vadd.f32 %v3549, %v3570
      %3572 = vdwg.mxu0
      %v3573 = vld [vmem:[%s8 + $0x18] sm:$0x1]
      %v3574 = vperm.slane %v3573, 0
      %v3575 = vmul.f32 %v3382, %v3574
      %v3576 = vadd.f32 %v3571, %v3575
      %v3577 = vld [vmem:[%s8 + $0x19] sm:$0x1]
      %v3578 = vperm.slane %v3577, 0
      %v3579 = vmul.f32 %v3388, %v3578
      %v3580 = vadd.f32 %v3576, %v3579
      %v3581 = vld [vmem:[%s7 + $0x2c8] sm:$0xff]
      %v3582 = vld [vmem:[%s7 + $0x2d0] sm:$0xff]
      %v3583 = vld [vmem:[%s7 + $0x2d8] sm:$0xff]
      %v3584 = vld [vmem:[%s7 + $0x2e0] sm:$0xff]
      %v3585 = vld [vmem:[%s8 + $0x1a] sm:$0x1]
      %v3586 = vperm.slane %v3585, 0
      %v3588 = vsel %vm635, %v3580, 0
      %3590 = vmatpush.msra.mxu0 0.0
      %3591 = vmatpush.msra.mxu0 0.0
      %3592 = vmatpush.msra.mxu0 0.0
      %3593 = vmatpush.msra.mxu0 0.0
      %3594 = vmatpush.msra.mxu0 0.0
      %3595 = vmatpush.msra.mxu0 0.0
      %3596 = vmatpush.msra.mxu0 0.0
      %3597 = vmatpush.msra.mxu0 0.0
      %3598 = vmatpush.msra.mxu0 0.0
      %3599 = vmatpush.msra.mxu0 0.0
      %3600 = vmatpush.msra.mxu0 0.0
      %3601 = vmatpush.msra.mxu0 0.0
      %3602 = vmatpush.msra.mxu0 %v3584
      %3603 = vmatpush.msra.mxu0 %v3583
      %3604 = vmatpush.msra.mxu0 %v3582
      %3605 = vmatpush.msra.mxu0 %v3581
      %3606 = vmatmul.f32.gmra.mxu0 %v3588
      %v3607 = vpop.f32.mrf.mxu0
      %v3608 = vadd.f32 %v3586, %v3607
      %3609 = vdwg.mxu0
      %v3610 = vmax.f32 %v3608, 0.0
      %v3611 = vld [vmem:[%s7 + $0x2e8] sm:$0xff]
      %v3612 = vld [vmem:[%s7 + $0x2f0] sm:$0xff]
      %v3613 = vld [vmem:[%s7 + $0x2f8] sm:$0xff]
      %v3614 = vld [vmem:[%s7 + $0x300] sm:$0xff]
      %v3615 = vld [vmem:[%s8 + $0x1b] sm:$0x1]
      %v3616 = vperm.slane %v3615, 0
      %v3618 = vsel %vm635, %v3610, 0
      %3620 = vmatpush.msra.mxu0 0.0
      %3621 = vmatpush.msra.mxu0 0.0
      %3622 = vmatpush.msra.mxu0 0.0
      %3623 = vmatpush.msra.mxu0 0.0
      %3624 = vmatpush.msra.mxu0 0.0
      %3625 = vmatpush.msra.mxu0 0.0
      %3626 = vmatpush.msra.mxu0 0.0
      %3627 = vmatpush.msra.mxu0 0.0
      %3628 = vmatpush.msra.mxu0 0.0
      %3629 = vmatpush.msra.mxu0 0.0
      %3630 = vmatpush.msra.mxu0 0.0
      %3631 = vmatpush.msra.mxu0 0.0
      %3632 = vmatpush.msra.mxu0 %v3614
      %3633 = vmatpush.msra.mxu0 %v3613
      %3634 = vmatpush.msra.mxu0 %v3612
      %3635 = vmatpush.msra.mxu0 %v3611
      %3636 = vmatmul.f32.gmra.mxu0 %v3618
      %v3637 = vpop.f32.mrf.mxu0
      %v3638 = vadd.f32 %v3616, %v3637
      %3639 = vdwg.mxu0
      %v3640 = vmax.f32 %v3638, 0.0
      %v3641 = vld [vmem:[%s7 + $0x308] sm:$0xff]
      %v3642 = vld [vmem:[%s7 + $0x310] sm:$0xff]
      %v3643 = vld [vmem:[%s7 + $0x318] sm:$0xff]
      %v3644 = vld [vmem:[%s7 + $0x320] sm:$0xff]
      %v3645 = vld [vmem:[%s8 + $0x1c] sm:$0x1]
      %v3646 = vperm.slane %v3645, 0
      %v3648 = vsel %vm635, %v3640, 0
      %3650 = vmatpush.msra.mxu0 0.0
      %3651 = vmatpush.msra.mxu0 0.0
      %3652 = vmatpush.msra.mxu0 0.0
      %3653 = vmatpush.msra.mxu0 0.0
      %3654 = vmatpush.msra.mxu0 0.0
      %3655 = vmatpush.msra.mxu0 0.0
      %3656 = vmatpush.msra.mxu0 0.0
      %3657 = vmatpush.msra.mxu0 0.0
      %3658 = vmatpush.msra.mxu0 0.0
      %3659 = vmatpush.msra.mxu0 0.0
      %3660 = vmatpush.msra.mxu0 0.0
      %3661 = vmatpush.msra.mxu0 0.0
      %3662 = vmatpush.msra.mxu0 %v3644
      %3663 = vmatpush.msra.mxu0 %v3643
      %3664 = vmatpush.msra.mxu0 %v3642
      %3665 = vmatpush.msra.mxu0 %v3641
      %3666 = vmatmul.f32.gmra.mxu0 %v3648
      %v3667 = vpop.f32.mrf.mxu0
      %v3668 = vadd.f32 %v3646, %v3667
      %3669 = vdwg.mxu0
      %v3670 = vld [vmem:[%s7 + $0x328] sm:$0xff]
      %v3671 = vld [vmem:[%s7 + $0x330] sm:$0xff]
      %v3672 = vld [vmem:[%s7 + $0x338] sm:$0xff]
      %v3673 = vld [vmem:[%s7 + $0x340] sm:$0xff]
      %v3674 = vld [vmem:[%s7 + $0x348] sm:$0xff]
      %v3675 = vld [vmem:[%s7 + $0x350] sm:$0xff]
      %v3676 = vld [vmem:[%s7 + $0x358] sm:$0xff]
      %v3677 = vld [vmem:[%s7 + $0x360] sm:$0xff]
      %v3679 = vsel %vm635, %v3668, 0
      %3681 = vmatpush.msra.mxu0 0.0
      %3682 = vmatpush.msra.mxu0 0.0
      %3683 = vmatpush.msra.mxu0 0.0
      %3684 = vmatpush.msra.mxu0 0.0
      %3685 = vmatpush.msra.mxu0 0.0
      %3686 = vmatpush.msra.mxu0 0.0
      %3687 = vmatpush.msra.mxu0 0.0
      %3688 = vmatpush.msra.mxu0 0.0
      %3689 = vmatpush.msra.mxu0 0.0
      %3690 = vmatpush.msra.mxu0 0.0
      %3691 = vmatpush.msra.mxu0 0.0
      %3692 = vmatpush.msra.mxu0 0.0
      %3693 = vmatpush.msra.mxu0 %v3677
      %3694 = vmatpush.msra.mxu0 %v3676
      %3695 = vmatpush.msra.mxu0 %v3675
      %3696 = vmatpush.msra.mxu0 %v3674
      %3697 = vmatmul.f32.gmra.mxu0 %v3679
      %v3698 = vpop.f32.mrf.mxu0
      %v3699 = vadd.f32 0.0, %v3698
      %3700 = vdwg.mxu0
      %3701 = vmatpush.msra.mxu0 0.0
      %3702 = vmatpush.msra.mxu0 0.0
      %3703 = vmatpush.msra.mxu0 0.0
      %3704 = vmatpush.msra.mxu0 0.0
      %3705 = vmatpush.msra.mxu0 0.0
      %3706 = vmatpush.msra.mxu0 0.0
      %3707 = vmatpush.msra.mxu0 0.0
      %3708 = vmatpush.msra.mxu0 0.0
      %3709 = vmatpush.msra.mxu0 0.0
      %3710 = vmatpush.msra.mxu0 0.0
      %3711 = vmatpush.msra.mxu0 0.0
      %3712 = vmatpush.msra.mxu0 0.0
      %3713 = vmatpush.msra.mxu0 %v3673
      %3714 = vmatpush.msra.mxu0 %v3672
      %3715 = vmatpush.msra.mxu0 %v3671
      %3716 = vmatpush.msra.mxu0 %v3670
      %3717 = vmatmul.f32.gmra.mxu0 %v3465
      %v3718 = vpop.f32.mrf.mxu0
      %v3719 = vadd.f32 %v3699, %v3718
      %3720 = vdwg.mxu0
      %v3721 = vld [vmem:[%s8 + $0x1d] sm:$0x1]
      %v3722 = vperm.slane %v3721, 0
      %v3723 = vadd.f32 %v3719, %v3722
      %v3724 = vmax.f32 %v3723, 0.0
      %v3725 = vld [vmem:[%s7 + $0x368] sm:$0xff]
      %v3726 = vld [vmem:[%s7 + $0x370] sm:$0xff]
      %v3727 = vld [vmem:[%s7 + $0x378] sm:$0xff]
      %v3728 = vld [vmem:[%s7 + $0x380] sm:$0xff]
      %v3729 = vld [vmem:[%s8 + $0x1e] sm:$0x1]
      %v3730 = vperm.slane %v3729, 0
      %v3732 = vsel %vm635, %v3724, 0
      %3734 = vmatpush.msra.mxu0 0.0
      %3735 = vmatpush.msra.mxu0 0.0
      %3736 = vmatpush.msra.mxu0 0.0
      %3737 = vmatpush.msra.mxu0 0.0
      %3738 = vmatpush.msra.mxu0 0.0
      %3739 = vmatpush.msra.mxu0 0.0
      %3740 = vmatpush.msra.mxu0 0.0
      %3741 = vmatpush.msra.mxu0 0.0
      %3742 = vmatpush.msra.mxu0 0.0
      %3743 = vmatpush.msra.mxu0 0.0
      %3744 = vmatpush.msra.mxu0 0.0
      %3745 = vmatpush.msra.mxu0 0.0
      %3746 = vmatpush.msra.mxu0 %v3728
      %3747 = vmatpush.msra.mxu0 %v3727
      %3748 = vmatpush.msra.mxu0 %v3726
      %3749 = vmatpush.msra.mxu0 %v3725
      %3750 = vmatmul.f32.gmra.mxu0 %v3732
      %v3751 = vpop.f32.mrf.mxu0
      %v3752 = vadd.f32 %v3730, %v3751
      %3753 = vdwg.mxu0
      %v3754 = vmax.f32 %v3752, 0.0
      %v3755 = vld [vmem:[%s7 + $0x388] sm:$0xff]
      %v3756 = vld [vmem:[%s7 + $0x390] sm:$0xff]
      %v3757 = vld [vmem:[%s7 + $0x398] sm:$0xff]
      %v3758 = vld [vmem:[%s7 + $0x3a0] sm:$0xff]
      %v3759 = vld [vmem:[%s8 + $0x1f] sm:$0x1]
      %v3760 = vperm.slane %v3759, 0
      %v3762 = vsel %vm635, %v3754, 0
      %3764 = vmatpush.msra.mxu0 0.0
      %3765 = vmatpush.msra.mxu0 0.0
      %3766 = vmatpush.msra.mxu0 0.0
      %3767 = vmatpush.msra.mxu0 0.0
      %3768 = vmatpush.msra.mxu0 0.0
      %3769 = vmatpush.msra.mxu0 0.0
      %3770 = vmatpush.msra.mxu0 0.0
      %3771 = vmatpush.msra.mxu0 0.0
      %3772 = vmatpush.msra.mxu0 0.0
      %3773 = vmatpush.msra.mxu0 0.0
      %3774 = vmatpush.msra.mxu0 0.0
      %3775 = vmatpush.msra.mxu0 0.0
      %3776 = vmatpush.msra.mxu0 %v3758
      %3777 = vmatpush.msra.mxu0 %v3757
      %3778 = vmatpush.msra.mxu0 %v3756
      %3779 = vmatpush.msra.mxu0 %v3755
      %3780 = vmatmul.f32.gmra.mxu0 %v3762
      %v3781 = vpop.f32.mrf.mxu0
      %v3782 = vadd.f32 %v3760, %v3781
      %3783 = vdwg.mxu0
      %v3784 = vsel %vm1065, %v3782, 0.0
      %v3785 = vsel %vm1065, %v3580, 0.0
      %3787 = vrot.lane.b32.xlu0 %v3785, 32
      %v3788 = vpop.permute.xlu0 %3787
      %v3790 = vsel %vm635, %v3784, %v3788
      %3791 = vst.msk [vmem:[%s492] sm:$0xff] %vm1148, %v3790
      %p3792 = scmp.lt.s32.totalorder %s22, 1
      %s3793 = scalar_select %p3792, %s22, 1
      %s3794 = smul.addr %s3793, 8
      %s3795 = scalar_lea.vmem %s11, %s3794
      // Predicated region
      $region65: #{scene_context_encoder_forward.1} parent=63 // pred_check
        %p3796 = pneg %p306
      $region66: #{scene_context_encoder_forward.1} parent=63 // pred_check_branch
        %3798 = sbr.rel (%p3796) target = $region68
      $region67: #{scene_context_encoder_forward.1} parent=63 // pred_region
        _
      $region68: #{scene_context_encoder_forward.1} parent=63 // pred_fallthru
        _
    $region64: #{scene_context_encoder_forward.1} parent=5 // pred_fallthru
      _
    %p3799 = scmp.le.s32.totalorder 2, %s17
    // Predicated region
    $region69: #{scene_context_encoder_forward.1} parent=5 // pred_check
      %p3800 = pneg %p3799
    $region70: #{scene_context_encoder_forward.1} parent=5 // pred_check_branch
      %3802 = sbr.rel (%p3800) target = $region72
    $region71: #{scene_context_encoder_forward.1} parent=5 // pred_region
      %s3803 = ssub.s32 %s17, 2
      // Predicated region
      $region73: #{scene_context_encoder_forward.1} parent=71 // pred_check
        %p3804 = pneg %p312
      $region74: #{scene_context_encoder_forward.1} parent=71 // pred_check_branch
        %3806 = sbr.rel (%p3804) target = $region76
      $region75: #{scene_context_encoder_forward.1} parent=71 // pred_region
        %p3807 = scmp.lt.s32.totalorder %s23, 1
        %s3808 = scalar_select %p3807, %s23, 1
        %s3809 = smul.addr %s3808, 8
        %s3810 = scalar_lea.vmem %s11, %s3809
      $region76: #{scene_context_encoder_forward.1} parent=71 // pred_fallthru
        _
    $region72: #{scene_context_encoder_forward.1} parent=5 // pred_fallthru
      _
  $region6: #{scene_context_encoder_forward.1} parent=0 // loop_footer
    %s21 = sadd.s32 1, %s17
  $region7: #{scene_context_encoder_forward.1} parent=0 // loop_footer_branch
    %16 = sbr.rel target = $region3
  $region8: #{scene_context_encoder_forward.1} parent=0 // loop_exit
    _

</llo_original>
